<compile_context>
chip_gen: v7x
topology: tpu7x:2x2x1
jax: 0.10.0
libtpu: 0.0.40
codegen_flags: <defaults>
</compile_context>

<pallas_src>
import functools
import math

import numpy as np
import jax
import jax.numpy as jnp
from jax.experimental import pallas as pl
from jax.experimental.pallas import tpu as pltpu

EPS = 1e-5  # PyTorch BatchNorm default eps


# ---------------------------------------------------------------------------
# small helpers
# ---------------------------------------------------------------------------

def _row_tile(m, target=512):
    """Largest row tile <= target that divides m and is a multiple of 8
    (falls back to the full extent, which is always a legal block)."""
    if m <= target:
        return m
    for t in range(target, 7, -1):
        if m % t == 0 and t % 8 == 0:
            return t
    return m


def _lane_fold(c, m):
    """Fold factor F so that F*c is a multiple of 128 lanes (lane-dense
    elementwise passes).  Falls back to 1 if F does not divide m."""
    f = 128 // math.gcd(c, 128)
    return f if (m % f == 0) else 1


def _elu(y):
    # nn.ELU(alpha=1).  exp(y)-1 vs expm1: the delta is far below the bf16
    # matmul noise floor at these scales.
    return jnp.where(y > 0, y, jnp.exp(y) - 1.0)


# ---------------------------------------------------------------------------
# Kernel 1: down-conv matmul (bias dropped) + fused BN-stats epilogue
# ---------------------------------------------------------------------------

def _mm_stats_kernel(a_ref, w_ref, y_ref, s_ref, q_ref):
    # (tm, K) bf16 @ (K, C) bf16 -> f32 on the MXU.  No bias: it is cancelled
    # exactly by the training-mode BN mean subtraction.
    y = jnp.dot(a_ref[...], w_ref[...], preferred_element_type=jnp.float32)
    y_ref[...] = y

    # per-channel sum / sum-of-squares, accumulated across the M tiles
    @pl.when(pl.program_id(0) == 0)
    def _init():
        s_ref[...] = jnp.zeros_like(s_ref)
        q_ref[...] = jnp.zeros_like(q_ref)

    s_ref[...] += jnp.sum(y, axis=0, keepdims=True)
    q_ref[...] += jnp.sum(y * y, axis=0, keepdims=True)


def matmul_stats(a, w):
    """a:(M,K) bf16, w:(K,C) bf16 -> (y:(M,C) f32, sum:(1,C) f32, sq:(1,C) f32).

    K = 8*Cin for the strided down-conv, so the whole (K, C) weight easily fits
    VMEM even at real VNet widths (no K tiling needed here)."""
    M, K = a.shape
    _, C = w.shape
    tm = _row_tile(M)
    return pl.pallas_call(
        _mm_stats_kernel,
        out_shape=(jax.ShapeDtypeStruct((M, C), jnp.float32),
                   jax.ShapeDtypeStruct((1, C), jnp.float32),
                   jax.ShapeDtypeStruct((1, C), jnp.float32)),
        grid=(M // tm,),
        in_specs=[pl.BlockSpec((tm, K), lambda i: (i, 0)),
                  pl.BlockSpec((K, C), lambda i: (0, 0))],
        out_specs=(pl.BlockSpec((tm, C), lambda i: (i, 0)),
                   pl.BlockSpec((1, C), lambda i: (0, 0)),
                   pl.BlockSpec((1, C), lambda i: (0, 0))),
        compiler_params=pltpu.CompilerParams(
            dimension_semantics=("arbitrary",),   # stats accumulate across M tiles
            vmem_limit_bytes=32 * 1024 * 1024),
    )(a, w)


# ---------------------------------------------------------------------------
# Kernel 2: fused 5x5x5 LUConv (tap loop in VMEM) + BN-stats epilogue
# ---------------------------------------------------------------------------
# Layout: the padded NDHWC volume is flattened per depth-plane to rows of
# (Hpp*Wp, C) so that each (kh, kw) tap is a *constant row offset* of a
# 2-D VMEM tile (no in-kernel reshapes, plain MXU matmuls).  The kd tap is a
# grid axis, so plane (n, d+kd) is a standard Blocked index_map (no halo
# overlap).  The output plane is kept at padded (Hp, Wp) resolution; garbage
# rows (h>=H2 or w>=W2) are masked out of the BN statistics and sliced away
# in the wrapper.

def _lu_conv_kernel(x_ref, w_ref, m_ref, y_ref, s_ref, q_ref, *, wp, hwp):
    n = pl.program_id(0)
    d = pl.program_id(1)
    kd = pl.program_id(2)

    @pl.when((n == 0) & (d == 0) & (kd == 0))
    def _init_stats():
        s_ref[...] = jnp.zeros_like(s_ref)
        q_ref[...] = jnp.zeros_like(q_ref)

    @pl.when(kd == 0)
    def _init_acc():
        y_ref[...] = jnp.zeros_like(y_ref)

    # 25 in-plane taps for this kd; all operands are VMEM-resident.
    contrib = None
    for kh in range(5):
        for kw in range(5):
            shift = kh * wp + kw                          # static row offset
            a = x_ref[0, 0, pl.ds(shift, hwp), :]          # (HWp, C) bf16
            wt = w_ref[0, kh * 5 + kw]                     # (C, C)  bf16
            part = jnp.dot(a, wt, preferred_element_type=jnp.float32)
            contrib = part if contrib is None else contrib + part
    y_ref[0, 0] += contrib                                 # f32 accumulation over kd

    @pl.when(kd == 4)
    def _finalize_stats():
        acc = y_ref[0, 0]                                  # full 125-tap sum
        masked = acc * m_ref[...]                          # zero the garbage rows
        s_ref[...] += jnp.sum(masked, axis=0, keepdims=True)
        q_ref[...] += jnp.sum(masked * acc, axis=0, keepdims=True)


def lu_conv(xp_flat, w_taps, mask, *, wp):
    """xp_flat:(N, Dp, Hpp*Wp, C) bf16 padded planes, w_taps:(5,25,C,C) bf16,
    mask:(Hp*Wp, 1) f32 validity mask.
    Returns y:(N, D2, Hp*Wp, C) f32 (padded-plane resolution), sum, sq."""
    N, Dp, PR, C = xp_flat.shape
    HWp = mask.shape[0]
    D2 = Dp - 4
    kern = functools.partial(_lu_conv_kernel, wp=wp, hwp=HWp)
    return pl.pallas_call(
        kern,
        out_shape=(jax.ShapeDtypeStruct((N, D2, HWp, C), jnp.float32),
                   jax.ShapeDtypeStruct((1, C), jnp.float32),
                   jax.ShapeDtypeStruct((1, C), jnp.float32)),
        grid=(N, D2, 5),                                   # kd innermost
        in_specs=[
            pl.BlockSpec((1, 1, PR, C), lambda n, d, kd: (n, d + kd, 0, 0)),
            pl.BlockSpec((1, 25, C, C), lambda n, d, kd: (kd, 0, 0, 0)),
            pl.BlockSpec((HWp, 1), lambda n, d, kd: (0, 0)),
        ],
        out_specs=(pl.BlockSpec((1, 1, HWp, C), lambda n, d, kd: (n, d, 0, 0)),
                   pl.BlockSpec((1, C), lambda n, d, kd: (0, 0)),
                   pl.BlockSpec((1, C), lambda n, d, kd: (0, 0))),
        compiler_params=pltpu.CompilerParams(
            dimension_semantics=("arbitrary", "arbitrary", "arbitrary"),
            vmem_limit_bytes=32 * 1024 * 1024),
    )(xp_flat, w_taps, mask)


# ---------------------------------------------------------------------------
# Kernels 3/4: tiled, lane-dense BN normalize + ELU (optionally + residual)
# ---------------------------------------------------------------------------

def _bn_elu_kernel(x_ref, s_ref, q_ref, g_ref, b_ref, o_ref, *, inv_count):
    mean = s_ref[...] * inv_count
    var = jnp.maximum(q_ref[...] * inv_count - mean * mean, 0.0)
    scale = g_ref[...] * jax.lax.rsqrt(var + EPS)
    shift = b_ref[...] - mean * scale
    o_ref[...] = _elu(x_ref[...] * scale + shift)


def _bn_add_elu_kernel(x_ref, s_ref, q_ref, g_ref, b_ref, r_ref, o_ref, *,
                       inv_count):
    mean = s_ref[...] * inv_count
    var = jnp.maximum(q_ref[...] * inv_count - mean * mean, 0.0)
    scale = g_ref[...] * jax.lax.rsqrt(var + EPS)
    shift = b_ref[...] - mean * scale
    a = _elu(x_ref[...] * scale + shift)    # relu1(bn1(conv)) of the last LUConv
    o_ref[...] = _elu(a + r_ref[...])       # relu2(out + down)


def _run_bn_pass(kernel, x, s, q, gamma, beta, count, resid=None):
    M, C = x.shape
    F = _lane_fold(C, M)                    # lane-dense elementwise layout
    Mf = M // F
    xf = x.reshape(Mf, F * C)
    sf, qf, gf, bf = (jnp.tile(t, (1, F)) for t in (s, q, gamma, beta))
    args = [xf, sf, qf, gf, bf]
    in_specs = ([pl.BlockSpec((tm := _row_tile(Mf), F * C), lambda i: (i, 0))]
                + [pl.BlockSpec((1, F * C), lambda i: (0, 0))] * 4)
    if resid is not None:
        args.append(resid.reshape(Mf, F * C))
        in_specs.append(pl.BlockSpec((tm, F * C), lambda i: (i, 0)))
    out = pl.pallas_call(
        functools.partial(kernel, inv_count=1.0 / float(count)),
        out_shape=jax.ShapeDtypeStruct((Mf, F * C), jnp.float32),
        grid=(Mf // tm,),
        in_specs=in_specs,
        out_specs=pl.BlockSpec((tm, F * C), lambda i: (i, 0)),
        compiler_params=pltpu.CompilerParams(dimension_semantics=("parallel",)),
    )(*args)
    return out.reshape(M, C)


def bn_elu(x, s, q, gamma, beta, count):
    return _run_bn_pass(_bn_elu_kernel, x, s, q, gamma, beta, count)


def bn_add_elu(x, s, q, gamma, beta, resid, count):
    return _run_bn_pass(_bn_add_elu_kernel, x, s, q, gamma, beta, count,
                        resid=resid)


# ---------------------------------------------------------------------------
# Parameter construction (deterministic, synthetic)
# ---------------------------------------------------------------------------

def make_params(key, in_chans, n_convs):
    out_chans = 2 * in_chans
    keys = jax.random.split(key, 3 + 3 * n_convs)

    # Conv biases are intentionally omitted: a per-channel constant added
    # before batch-statistics BatchNorm is exactly cancelled by the mean
    # subtraction, so dropping it preserves the forward output exactly.

    # down_conv: PyTorch (outC, inC, 2, 2, 2) -> (8*inC, outC), bf16 MXU operand
    wd = 0.1 * jax.random.normal(keys[0], (out_chans, in_chans, 2, 2, 2), jnp.float32)
    down_w = jnp.transpose(wd, (2, 3, 4, 1, 0)).reshape(8 * in_chans, out_chans)
    down_w = down_w.astype(jnp.bfloat16)
    bn1_g = 1.0 + 0.1 * jax.random.normal(keys[1], (1, out_chans), jnp.float32)
    bn1_b = 0.1 * jax.random.normal(keys[2], (1, out_chans), jnp.float32)

    ops = []
    for i in range(n_convs):
        k0, k1, k2 = keys[3 + 3 * i: 6 + 3 * i]
        # LUConv conv: PyTorch (outC, outC, 5, 5, 5) -> (5, 25, C, C) tap layout
        wc = 0.05 * jax.random.normal(k0, (out_chans, out_chans, 5, 5, 5), jnp.float32)
        cw = jnp.transpose(wc, (2, 3, 4, 1, 0)).reshape(5, 25, out_chans, out_chans)
        cw = cw.astype(jnp.bfloat16)
        g = 1.0 + 0.1 * jax.random.normal(k1, (1, out_chans), jnp.float32)
        b = 0.1 * jax.random.normal(k2, (1, out_chans), jnp.float32)
        ops.append((cw, g, b))

    return dict(down_w=down_w, bn1_g=bn1_g, bn1_b=bn1_b, ops=ops)


# ---------------------------------------------------------------------------
# Forward pass (glue = reshape/pad/slice; all heavy compute = Pallas)
# ---------------------------------------------------------------------------

def down_transition_forward(x_ncdhw, params):
    assert len(params["ops"]) >= 1, "DownTransition is used with nConvs >= 1"

    # NCDHW (PyTorch) -> NDHWC (channels on the lane axis)
    x = jnp.transpose(x_ncdhw, (0, 2, 3, 4, 1)).astype(jnp.float32)
    N, D, H, W, Cin = x.shape
    C = 2 * Cin
    D2, H2, W2 = D // 2, H // 2, W // 2
    M = N * D2 * H2 * W2

    # --- down_conv (k=2, s=2): non-overlapping patches -> one MXU matmul.
    # (Patch prep stays in XLA: it is a single small pass over the input.)
    p = x.reshape(N, D2, 2, H2, 2, W2, 2, Cin)
    p = jnp.transpose(p, (0, 1, 3, 5, 2, 4, 6, 7)).reshape(M, 8 * Cin)
    p = p.astype(jnp.bfloat16)
    y0, s0, q0 = matmul_stats(p, params["down_w"])
    down = bn_elu(y0, s0, q0, params["bn1_g"], params["bn1_b"], M)  # (M, C) f32

    # Geometry of the padded LUConv input planes:
    #   D padded (2,2) -> Dp ; W padded (2,2) -> Wp ;
    #   H padded (2,7) -> Hpp so the largest in-plane tap shift (4*Wp+4) never
    #   reads past the plane (extra rows are zeros, read only by garbage rows).
    Dp, Hp, Wp, Hpp = D2 + 4, H2 + 4, W2 + 4, H2 + 9
    HWp = Hp * Wp

    # Row-validity mask (f32) for BN statistics at padded-plane resolution.
    hh = np.arange(HWp) // Wp
    ww = np.arange(HWp) % Wp
    mask = jnp.asarray(((hh < H2) & (ww < W2)).astype(np.float32)).reshape(HWp, 1)

    out = down   # do1 = passthrough (dropout=False)
    n_ops = len(params["ops"])
    for idx, (cw, g, b) in enumerate(params["ops"]):
        x5 = out.reshape(N, D2, H2, W2, C)
        xp = jnp.pad(x5, ((0, 0), (2, 2), (2, 7), (2, 2), (0, 0)))
        xp = xp.reshape(N, Dp, Hpp * Wp, C).astype(jnp.bfloat16)
        y_pad, s, q = lu_conv(xp, cw, mask, wp=Wp)
        yv = y_pad.reshape(N, D2, Hp, Wp, C)[:, :, :H2, :W2, :].reshape(M, C)
        if idx == n_ops - 1:
            # last LUConv: fuse BN + ELU + residual add + final ELU
            out = bn_add_elu(yv, s, q, g, b, down, M)
        else:
            out = bn_elu(yv, s, q, g, b, M)

    # back to NCDHW
    return jnp.transpose(out.reshape(N, D2, H2, W2, C), (0, 4, 1, 2, 3))


# ---------------------------------------------------------------------------

if __name__ == "__main__":
    key = jax.random.PRNGKey(0)
    kx, kp = jax.random.split(key)

    in_chans, n_convs = 4, 2
    # PyTorch NCDHW input: batch=2, channels=4, spatial=8^3
    x = jax.random.normal(kx, (2, in_chans, 8, 8, 8), jnp.float32)
    params = make_params(kp, in_chans, n_convs)

    fwd = jax.jit(down_transition_forward)
    y = fwd(x, params)
    jax.block_until_ready(y)

    assert y.shape == (2, 2 * in_chans, 4, 4, 4), y.shape
    assert bool(jnp.all(jnp.isfinite(y)))
    print("KERNEL_OK")
</pallas_src>

<mosaic_0001>
module attributes {stable_mosaic.version = 11 : i64} {
  func.func @_mm_stats_kernel(%arg0: i32, %arg1: memref<128x32xbf16, #tpu.memory_space<vmem>>, %arg2: memref<32x8xbf16, #tpu.memory_space<vmem>>, %arg3: memref<128x8xf32, #tpu.memory_space<vmem>>, %arg4: memref<1x8xf32, #tpu.memory_space<vmem>>, %arg5: memref<1x8xf32, #tpu.memory_space<vmem>>) attributes {dimension_semantics = [#tpu.dimension_semantics<arbitrary>], iteration_bounds = array<i64: 1>, scalar_prefetch = 0 : i64, scratch_operands = 0 : i64, tpu.core_type = #tpu.core_type<tc>, window_params = [{transform_indices = @transform_0, window_bounds = array<i64: 128, 32>}, {pipeline_mode = #tpu.pipeline_mode<synchronous>, transform_indices = @transform_1, window_bounds = array<i64: 32, 8>}, {transform_indices = @transform_2, window_bounds = array<i64: 128, 8>}, {pipeline_mode = #tpu.pipeline_mode<synchronous>, transform_indices = @transform_3, window_bounds = array<i64: 1, 8>}, {pipeline_mode = #tpu.pipeline_mode<synchronous>, transform_indices = @transform_4, window_bounds = array<i64: 1, 8>}]} {
    %c0 = arith.constant 0 : index
    %c0_0 = arith.constant 0 : index
    %0 = vector.load %arg1[%c0, %c0_0] : memref<128x32xbf16, #tpu.memory_space<vmem>>, vector<128x32xbf16>
    %c0_1 = arith.constant 0 : index
    %c0_2 = arith.constant 0 : index
    %1 = vector.load %arg2[%c0_1, %c0_2] : memref<32x8xbf16, #tpu.memory_space<vmem>>, vector<32x8xbf16>
    %cst = arith.constant dense<0.000000e+00> : vector<128x8xf32>
    %2 = tpu.matmul %0, %1, %cst {dimension_numbers = #tpu.dot_dimension_numbers<[1], [0], [0], [1], [0, 0, 1, 1], [], []>} : vector<128x32xbf16>, vector<32x8xbf16>, vector<128x8xf32> -> vector<128x8xf32>
    %c0_3 = arith.constant 0 : index
    %c0_4 = arith.constant 0 : index
    %3 = vector.load %arg3[%c0_3, %c0_4] : memref<128x8xf32, #tpu.memory_space<vmem>>, vector<128x8xf32>
    tpu.vector_store %arg3[%c0_3, %c0_4], %2 {strides = array<i32>} : memref<128x8xf32, #tpu.memory_space<vmem>>, vector<128x8xf32>,
    %c0_i32 = arith.constant 0 : i32
    %4 = arith.cmpi eq, %arg0, %c0_i32 : i32
    %5 = arith.extui %4 : i1 to i32
    %c0_i32_5 = arith.constant 0 : i32
    %6 = arith.cmpi ne, %5, %c0_i32_5 : i32
    scf.if %6 {
      %cst_16 = arith.constant 0.000000e+00 : f32
      %18 = vector.broadcast %cst_16 : f32 to vector<1x8xf32>
      %c0_17 = arith.constant 0 : index
      %c0_18 = arith.constant 0 : index
      %19 = vector.load %arg4[%c0_17, %c0_18] : memref<1x8xf32, #tpu.memory_space<vmem>>, vector<1x8xf32>
      tpu.vector_store %arg4[%c0_17, %c0_18], %18 {strides = array<i32>} : memref<1x8xf32, #tpu.memory_space<vmem>>, vector<1x8xf32>,
      %cst_19 = arith.constant 0.000000e+00 : f32
      %20 = vector.broadcast %cst_19 : f32 to vector<1x8xf32>
      %c0_20 = arith.constant 0 : index
      %c0_21 = arith.constant 0 : index
      %21 = vector.load %arg5[%c0_20, %c0_21] : memref<1x8xf32, #tpu.memory_space<vmem>>, vector<1x8xf32>
      tpu.vector_store %arg5[%c0_20, %c0_21], %20 {strides = array<i32>} : memref<1x8xf32, #tpu.memory_space<vmem>>, vector<1x8xf32>,
    } else {
    }
    %c0_6 = arith.constant 0 : index
    %c0_7 = arith.constant 0 : index
    %7 = vector.load %arg4[%c0_6, %c0_7] : memref<1x8xf32, #tpu.memory_space<vmem>>, vector<1x8xf32>
    %cst_8 = arith.constant dense<0.000000e+00> : vector<8xf32>
    %8 = vector.multi_reduction <add>, %2, %cst_8 [0] : vector<128x8xf32> to vector<8xf32>
    %9 = vector.shape_cast %8 : vector<8xf32> to vector<1x8xf32>
    %10 = arith.addf %7, %9 : vector<1x8xf32>
    %c0_9 = arith.constant 0 : index
    %c0_10 = arith.constant 0 : index
    %11 = vector.load %arg4[%c0_9, %c0_10] : memref<1x8xf32, #tpu.memory_space<vmem>>, vector<1x8xf32>
    tpu.vector_store %arg4[%c0_9, %c0_10], %10 {strides = array<i32>} : memref<1x8xf32, #tpu.memory_space<vmem>>, vector<1x8xf32>,
    %c0_11 = arith.constant 0 : index
    %c0_12 = arith.constant 0 : index
    %12 = vector.load %arg5[%c0_11, %c0_12] : memref<1x8xf32, #tpu.memory_space<vmem>>, vector<1x8xf32>
    %13 = arith.mulf %2, %2 : vector<128x8xf32>
    %cst_13 = arith.constant dense<0.000000e+00> : vector<8xf32>
    %14 = vector.multi_reduction <add>, %13, %cst_13 [0] : vector<128x8xf32> to vector<8xf32>
    %15 = vector.shape_cast %14 : vector<8xf32> to vector<1x8xf32>
    %16 = arith.addf %12, %15 : vector<1x8xf32>
    %c0_14 = arith.constant 0 : index
    %c0_15 = arith.constant 0 : index
    %17 = vector.load %arg5[%c0_14, %c0_15] : memref<1x8xf32, #tpu.memory_space<vmem>>, vector<1x8xf32>
    tpu.vector_store %arg5[%c0_14, %c0_15], %16 {strides = array<i32>} : memref<1x8xf32, #tpu.memory_space<vmem>>, vector<1x8xf32>,
    return
  }
  func.func @transform_0(%arg0: i32) -> (i32, i32) {
    %c0_i32 = arith.constant 0 : i32
    %c0_i32_0 = arith.constant 0 : i32
    return %arg0, %c0_i32 : i32, i32
  }
  func.func @transform_1(%arg0: i32) -> (i32, i32) {
    %c0_i32 = arith.constant 0 : i32
    %c0_i32_0 = arith.constant 0 : i32
    %c0_i32_1 = arith.constant 0 : i32
    return %c0_i32, %c0_i32_0 : i32, i32
  }
  func.func @transform_2(%arg0: i32) -> (i32, i32) {
    %c0_i32 = arith.constant 0 : i32
    %c0_i32_0 = arith.constant 0 : i32
    return %arg0, %c0_i32 : i32, i32
  }
  func.func @transform_3(%arg0: i32) -> (i32, i32) {
    %c0_i32 = arith.constant 0 : i32
    %c0_i32_0 = arith.constant 0 : i32
    %c0_i32_1 = arith.constant 0 : i32
    return %c0_i32, %c0_i32_0 : i32, i32
  }
  func.func @transform_4(%arg0: i32) -> (i32, i32) {
    %c0_i32 = arith.constant 0 : i32
    %c0_i32_0 = arith.constant 0 : i32
    %c0_i32_1 = arith.constant 0 : i32
    return %c0_i32, %c0_i32_0 : i32, i32
  }
}

module attributes {stable_mosaic.version = 11 : i64} {
  func.func @_bn_elu_kernel(%arg0: i32, %arg1: memref<8x128xf32, #tpu.memory_space<vmem>>, %arg2: memref<1x128xf32, #tpu.memory_space<vmem>>, %arg3: memref<1x128xf32, #tpu.memory_space<vmem>>, %arg4: memref<1x128xf32, #tpu.memory_space<vmem>>, %arg5: memref<1x128xf32, #tpu.memory_space<vmem>>, %arg6: memref<8x128xf32, #tpu.memory_space<vmem>>) attributes {dimension_semantics = [#tpu.dimension_semantics<parallel>], iteration_bounds = array<i64: 1>, scalar_prefetch = 0 : i64, scratch_operands = 0 : i64, tpu.core_type = #tpu.core_type<tc>, window_params = [{transform_indices = @transform_0, window_bounds = array<i64: 8, 128>}, {pipeline_mode = #tpu.pipeline_mode<synchronous>, transform_indices = @transform_1, window_bounds = array<i64: 1, 128>}, {pipeline_mode = #tpu.pipeline_mode<synchronous>, transform_indices = @transform_2, window_bounds = array<i64: 1, 128>}, {pipeline_mode = #tpu.pipeline_mode<synchronous>, transform_indices = @transform_3, window_bounds = array<i64: 1, 128>}, {pipeline_mode = #tpu.pipeline_mode<synchronous>, transform_indices = @transform_4, window_bounds = array<i64: 1, 128>}, {transform_indices = @transform_5, window_bounds = array<i64: 8, 128>}]} {
    %c0 = arith.constant 0 : index
    %c0_0 = arith.constant 0 : index
    %0 = vector.load %arg2[%c0, %c0_0] : memref<1x128xf32, #tpu.memory_space<vmem>>, vector<1x128xf32>
    %cst = arith.constant 7.812500e-03 : f32
    %1 = vector.broadcast %cst : f32 to vector<1x128xf32>
    %2 = arith.mulf %0, %1 : vector<1x128xf32>
    %c0_1 = arith.constant 0 : index
    %c0_2 = arith.constant 0 : index
    %3 = vector.load %arg3[%c0_1, %c0_2] : memref<1x128xf32, #tpu.memory_space<vmem>>, vector<1x128xf32>
    %cst_3 = arith.constant 7.812500e-03 : f32
    %4 = vector.broadcast %cst_3 : f32 to vector<1x128xf32>
    %5 = arith.mulf %3, %4 : vector<1x128xf32>
    %6 = arith.mulf %2, %2 : vector<1x128xf32>
    %7 = arith.subf %5, %6 : vector<1x128xf32>
    %cst_4 = arith.constant 0.000000e+00 : f32
    %8 = vector.broadcast %cst_4 : f32 to vector<1x128xf32>
    %9 = arith.maximumf %7, %8 : vector<1x128xf32>
    %c0_5 = arith.constant 0 : index
    %c0_6 = arith.constant 0 : index
    %10 = vector.load %arg4[%c0_5, %c0_6] : memref<1x128xf32, #tpu.memory_space<vmem>>, vector<1x128xf32>
    %cst_7 = arith.constant 9.99999974E-6 : f32
    %11 = vector.broadcast %cst_7 : f32 to vector<1x128xf32>
    %12 = arith.addf %9, %11 : vector<1x128xf32>
    %13 = math.rsqrt %12 : vector<1x128xf32>
    %14 = arith.mulf %10, %13 : vector<1x128xf32>
    %c0_8 = arith.constant 0 : index
    %c0_9 = arith.constant 0 : index
    %15 = vector.load %arg5[%c0_8, %c0_9] : memref<1x128xf32, #tpu.memory_space<vmem>>, vector<1x128xf32>
    %16 = arith.mulf %2, %14 : vector<1x128xf32>
    %17 = arith.subf %15, %16 : vector<1x128xf32>
    %c0_10 = arith.constant 0 : index
    %c0_11 = arith.constant 0 : index
    %18 = vector.load %arg1[%c0_10, %c0_11] : memref<8x128xf32, #tpu.memory_space<vmem>>, vector<8x128xf32>
    %19 = vector.broadcast %14 : vector<1x128xf32> to vector<8x128xf32>
    %20 = arith.mulf %18, %19 : vector<8x128xf32>
    %21 = vector.broadcast %17 : vector<1x128xf32> to vector<8x128xf32>
    %22 = arith.addf %20, %21 : vector<8x128xf32>
    %cst_12 = arith.constant 0.000000e+00 : f32
    %23 = vector.broadcast %cst_12 : f32 to vector<8x128xf32>
    %24 = arith.cmpf ogt, %22, %23 : vector<8x128xf32>
    %25 = math.exp %22 : vector<8x128xf32>
    %cst_13 = arith.constant 1.000000e+00 : f32
    %26 = vector.broadcast %cst_13 : f32 to vector<8x128xf32>
    %27 = arith.subf %25, %26 : vector<8x128xf32>
    %28 = arith.select %24, %22, %27 : vector<8x128xi1>, vector<8x128xf32>
    %c0_14 = arith.constant 0 : index
    %c0_15 = arith.constant 0 : index
    %29 = vector.load %arg6[%c0_14, %c0_15] : memref<8x128xf32, #tpu.memory_space<vmem>>, vector<8x128xf32>
    tpu.vector_store %arg6[%c0_14, %c0_15], %28 {strides = array<i32>} : memref<8x128xf32, #tpu.memory_space<vmem>>, vector<8x128xf32>,
    return
  }
  func.func @transform_0(%arg0: i32) -> (i32, i32) {
    %c0_i32 = arith.constant 0 : i32
    %c0_i32_0 = arith.constant 0 : i32
    return %arg0, %c0_i32 : i32, i32
  }
  func.func @transform_1(%arg0: i32) -> (i32, i32) {
    %c0_i32 = arith.constant 0 : i32
    %c0_i32_0 = arith.constant 0 : i32
    %c0_i32_1 = arith.constant 0 : i32
    return %c0_i32, %c0_i32_0 : i32, i32
  }
  func.func @transform_2(%arg0: i32) -> (i32, i32) {
    %c0_i32 = arith.constant 0 : i32
    %c0_i32_0 = arith.constant 0 : i32
    %c0_i32_1 = arith.constant 0 : i32
    return %c0_i32, %c0_i32_0 : i32, i32
  }
  func.func @transform_3(%arg0: i32) -> (i32, i32) {
    %c0_i32 = arith.constant 0 : i32
    %c0_i32_0 = arith.constant 0 : i32
    %c0_i32_1 = arith.constant 0 : i32
    return %c0_i32, %c0_i32_0 : i32, i32
  }
  func.func @transform_4(%arg0: i32) -> (i32, i32) {
    %c0_i32 = arith.constant 0 : i32
    %c0_i32_0 = arith.constant 0 : i32
    %c0_i32_1 = arith.constant 0 : i32
    return %c0_i32, %c0_i32_0 : i32, i32
  }
  func.func @transform_5(%arg0: i32) -> (i32, i32) {
    %c0_i32 = arith.constant 0 : i32
    %c0_i32_0 = arith.constant 0 : i32
    return %arg0, %c0_i32 : i32, i32
  }
}

module attributes {stable_mosaic.version = 11 : i64} {
  func.func @_lu_conv_kernel(%arg0: i32, %arg1: i32, %arg2: i32, %arg3: memref<1x1x104x8xbf16, #tpu.memory_space<vmem>>, %arg4: memref<1x25x8x8xbf16, #tpu.memory_space<vmem>>, %arg5: memref<64x1xf32, #tpu.memory_space<vmem>>, %arg6: memref<1x1x64x8xf32, #tpu.memory_space<vmem>>, %arg7: memref<1x8xf32, #tpu.memory_space<vmem>>, %arg8: memref<1x8xf32, #tpu.memory_space<vmem>>) attributes {dimension_semantics = [#tpu.dimension_semantics<arbitrary>, #tpu.dimension_semantics<arbitrary>, #tpu.dimension_semantics<arbitrary>], iteration_bounds = array<i64: 2, 4, 5>, scalar_prefetch = 0 : i64, scratch_operands = 0 : i64, tpu.core_type = #tpu.core_type<tc>, window_params = [{transform_indices = @transform_0, window_bounds = array<i64: 1, 1, 104, 8>}, {transform_indices = @transform_1, window_bounds = array<i64: 1, 25, 8, 8>}, {pipeline_mode = #tpu.pipeline_mode<synchronous>, transform_indices = @transform_2, window_bounds = array<i64: 64, 1>}, {transform_indices = @transform_3, window_bounds = array<i64: 1, 1, 64, 8>}, {pipeline_mode = #tpu.pipeline_mode<synchronous>, transform_indices = @transform_4, window_bounds = array<i64: 1, 8>}, {pipeline_mode = #tpu.pipeline_mode<synchronous>, transform_indices = @transform_5, window_bounds = array<i64: 1, 8>}]} {
    %c0_i32 = arith.constant 0 : i32
    %0 = arith.cmpi eq, %arg0, %c0_i32 : i32
    %c0_i32_0 = arith.constant 0 : i32
    %1 = arith.cmpi eq, %arg1, %c0_i32_0 : i32
    %2 = arith.andi %0, %1 : i1
    %c0_i32_1 = arith.constant 0 : i32
    %3 = arith.cmpi eq, %arg2, %c0_i32_1 : i32
    %4 = arith.andi %2, %3 : i1
    %5 = arith.extui %4 : i1 to i32
    %c0_i32_2 = arith.constant 0 : i32
    %6 = arith.cmpi ne, %5, %c0_i32_2 : i32
    scf.if %6 {
      %cst_204 = arith.constant 0.000000e+00 : f32
      %168 = vector.broadcast %cst_204 : f32 to vector<1x8xf32>
      %c0_205 = arith.constant 0 : index
      %c0_206 = arith.constant 0 : index
      %169 = vector.load %arg7[%c0_205, %c0_206] : memref<1x8xf32, #tpu.memory_space<vmem>>, vector<1x8xf32>
      tpu.vector_store %arg7[%c0_205, %c0_206], %168 {strides = array<i32>} : memref<1x8xf32, #tpu.memory_space<vmem>>, vector<1x8xf32>,
      %cst_207 = arith.constant 0.000000e+00 : f32
      %170 = vector.broadcast %cst_207 : f32 to vector<1x8xf32>
      %c0_208 = arith.constant 0 : index
      %c0_209 = arith.constant 0 : index
      %171 = vector.load %arg8[%c0_208, %c0_209] : memref<1x8xf32, #tpu.memory_space<vmem>>, vector<1x8xf32>
      tpu.vector_store %arg8[%c0_208, %c0_209], %170 {strides = array<i32>} : memref<1x8xf32, #tpu.memory_space<vmem>>, vector<1x8xf32>,
    } else {
    }
    %c0_i32_3 = arith.constant 0 : i32
    %7 = arith.cmpi eq, %arg2, %c0_i32_3 : i32
    %8 = arith.extui %7 : i1 to i32
    %c0_i32_4 = arith.constant 0 : i32
    %9 = arith.cmpi ne, %8, %c0_i32_4 : i32
    scf.if %9 {
      %cst_204 = arith.constant 0.000000e+00 : f32
      %168 = vector.broadcast %cst_204 : f32 to vector<1x1x64x8xf32>
      %c0_205 = arith.constant 0 : index
      %c0_206 = arith.constant 0 : index
      %c0_207 = arith.constant 0 : index
      %c0_208 = arith.constant 0 : index
      %169 = vector.load %arg6[%c0_205, %c0_206, %c0_207, %c0_208] : memref<1x1x64x8xf32, #tpu.memory_space<vmem>>, vector<1x1x64x8xf32>
      tpu.vector_store %arg6[%c0_205, %c0_206, %c0_207, %c0_208], %168 {strides = array<i32>} : memref<1x1x64x8xf32, #tpu.memory_space<vmem>>, vector<1x1x64x8xf32>,
    } else {
    }
    %c0 = arith.constant 0 : index
    %c0_5 = arith.constant 0 : index
    %c0_6 = arith.constant 0 : index
    %c0_7 = arith.constant 0 : index
    %10 = vector.load %arg3[%c0, %c0_5, %c0_6, %c0_7] : memref<1x1x104x8xbf16, #tpu.memory_space<vmem>>, vector<1x1x64x8xbf16>
    %11 = vector.shape_cast %10 : vector<1x1x64x8xbf16> to vector<64x8xbf16>
    %c0_8 = arith.constant 0 : index
    %c0_9 = arith.constant 0 : index
    %c0_10 = arith.constant 0 : index
    %c0_11 = arith.constant 0 : index
    %12 = vector.load %arg4[%c0_8, %c0_9, %c0_10, %c0_11] : memref<1x25x8x8xbf16, #tpu.memory_space<vmem>>, vector<1x1x8x8xbf16>
    %13 = vector.shape_cast %12 : vector<1x1x8x8xbf16> to vector<8x8xbf16>
    %cst = arith.constant dense<0.000000e+00> : vector<64x8xf32>
    %14 = tpu.matmul %11, %13, %cst {dimension_numbers = #tpu.dot_dimension_numbers<[1], [0], [0], [1], [0, 0, 1, 1], [], []>} : vector<64x8xbf16>, vector<8x8xbf16>, vector<64x8xf32> -> vector<64x8xf32>
    %c0_12 = arith.constant 0 : index
    %c0_13 = arith.constant 0 : index
    %c1 = arith.constant 1 : index
    %c0_14 = arith.constant 0 : index
    %15 = vector.load %arg3[%c0_12, %c0_13, %c1, %c0_14] : memref<1x1x104x8xbf16, #tpu.memory_space<vmem>>, vector<1x1x64x8xbf16>
    %16 = vector.shape_cast %15 : vector<1x1x64x8xbf16> to vector<64x8xbf16>
    %c0_15 = arith.constant 0 : index
    %c1_16 = arith.constant 1 : index
    %c0_17 = arith.constant 0 : index
    %c0_18 = arith.constant 0 : index
    %17 = vector.load %arg4[%c0_15, %c1_16, %c0_17, %c0_18] : memref<1x25x8x8xbf16, #tpu.memory_space<vmem>>, vector<1x1x8x8xbf16>
    %18 = vector.shape_cast %17 : vector<1x1x8x8xbf16> to vector<8x8xbf16>
    %cst_19 = arith.constant dense<0.000000e+00> : vector<64x8xf32>
    %19 = tpu.matmul %16, %18, %cst_19 {dimension_numbers = #tpu.dot_dimension_numbers<[1], [0], [0], [1], [0, 0, 1, 1], [], []>} : vector<64x8xbf16>, vector<8x8xbf16>, vector<64x8xf32> -> vector<64x8xf32>
    %20 = arith.addf %14, %19 : vector<64x8xf32>
    %c0_20 = arith.constant 0 : index
    %c0_21 = arith.constant 0 : index
    %c2 = arith.constant 2 : index
    %c0_22 = arith.constant 0 : index
    %21 = vector.load %arg3[%c0_20, %c0_21, %c2, %c0_22] : memref<1x1x104x8xbf16, #tpu.memory_space<vmem>>, vector<1x1x64x8xbf16>
    %22 = vector.shape_cast %21 : vector<1x1x64x8xbf16> to vector<64x8xbf16>
    %c0_23 = arith.constant 0 : index
    %c2_24 = arith.constant 2 : index
    %c0_25 = arith.constant 0 : index
    %c0_26 = arith.constant 0 : index
    %23 = vector.load %arg4[%c0_23, %c2_24, %c0_25, %c0_26] : memref<1x25x8x8xbf16, #tpu.memory_space<vmem>>, vector<1x1x8x8xbf16>
    %24 = vector.shape_cast %23 : vector<1x1x8x8xbf16> to vector<8x8xbf16>
    %cst_27 = arith.constant dense<0.000000e+00> : vector<64x8xf32>
    %25 = tpu.matmul %22, %24, %cst_27 {dimension_numbers = #tpu.dot_dimension_numbers<[1], [0], [0], [1], [0, 0, 1, 1], [], []>} : vector<64x8xbf16>, vector<8x8xbf16>, vector<64x8xf32> -> vector<64x8xf32>
    %26 = arith.addf %20, %25 : vector<64x8xf32>
    %c0_28 = arith.constant 0 : index
    %c0_29 = arith.constant 0 : index
    %c3 = arith.constant 3 : index
    %c0_30 = arith.constant 0 : index
    %27 = vector.load %arg3[%c0_28, %c0_29, %c3, %c0_30] : memref<1x1x104x8xbf16, #tpu.memory_space<vmem>>, vector<1x1x64x8xbf16>
    %28 = vector.shape_cast %27 : vector<1x1x64x8xbf16> to vector<64x8xbf16>
    %c0_31 = arith.constant 0 : index
    %c3_32 = arith.constant 3 : index
    %c0_33 = arith.constant 0 : index
    %c0_34 = arith.constant 0 : index
    %29 = vector.load %arg4[%c0_31, %c3_32, %c0_33, %c0_34] : memref<1x25x8x8xbf16, #tpu.memory_space<vmem>>, vector<1x1x8x8xbf16>
    %30 = vector.shape_cast %29 : vector<1x1x8x8xbf16> to vector<8x8xbf16>
    %cst_35 = arith.constant dense<0.000000e+00> : vector<64x8xf32>
    %31 = tpu.matmul %28, %30, %cst_35 {dimension_numbers = #tpu.dot_dimension_numbers<[1], [0], [0], [1], [0, 0, 1, 1], [], []>} : vector<64x8xbf16>, vector<8x8xbf16>, vector<64x8xf32> -> vector<64x8xf32>
    %32 = arith.addf %26, %31 : vector<64x8xf32>
    %c0_36 = arith.constant 0 : index
    %c0_37 = arith.constant 0 : index
    %c4 = arith.constant 4 : index
    %c0_38 = arith.constant 0 : index
    %33 = vector.load %arg3[%c0_36, %c0_37, %c4, %c0_38] : memref<1x1x104x8xbf16, #tpu.memory_space<vmem>>, vector<1x1x64x8xbf16>
    %34 = vector.shape_cast %33 : vector<1x1x64x8xbf16> to vector<64x8xbf16>
    %c0_39 = arith.constant 0 : index
    %c4_40 = arith.constant 4 : index
    %c0_41 = arith.constant 0 : index
    %c0_42 = arith.constant 0 : index
    %35 = vector.load %arg4[%c0_39, %c4_40, %c0_41, %c0_42] : memref<1x25x8x8xbf16, #tpu.memory_space<vmem>>, vector<1x1x8x8xbf16>
    %36 = vector.shape_cast %35 : vector<1x1x8x8xbf16> to vector<8x8xbf16>
    %cst_43 = arith.constant dense<0.000000e+00> : vector<64x8xf32>
    %37 = tpu.matmul %34, %36, %cst_43 {dimension_numbers = #tpu.dot_dimension_numbers<[1], [0], [0], [1], [0, 0, 1, 1], [], []>} : vector<64x8xbf16>, vector<8x8xbf16>, vector<64x8xf32> -> vector<64x8xf32>
    %38 = arith.addf %32, %37 : vector<64x8xf32>
    %c0_44 = arith.constant 0 : index
    %c0_45 = arith.constant 0 : index
    %c8 = arith.constant 8 : index
    %c0_46 = arith.constant 0 : index
    %39 = vector.load %arg3[%c0_44, %c0_45, %c8, %c0_46] : memref<1x1x104x8xbf16, #tpu.memory_space<vmem>>, vector<1x1x64x8xbf16>
    %40 = vector.shape_cast %39 : vector<1x1x64x8xbf16> to vector<64x8xbf16>
    %c0_47 = arith.constant 0 : index
    %c5 = arith.constant 5 : index
    %c0_48 = arith.constant 0 : index
    %c0_49 = arith.constant 0 : index
    %41 = vector.load %arg4[%c0_47, %c5, %c0_48, %c0_49] : memref<1x25x8x8xbf16, #tpu.memory_space<vmem>>, vector<1x1x8x8xbf16>
    %42 = vector.shape_cast %41 : vector<1x1x8x8xbf16> to vector<8x8xbf16>
    %cst_50 = arith.constant dense<0.000000e+00> : vector<64x8xf32>
    %43 = tpu.matmul %40, %42, %cst_50 {dimension_numbers = #tpu.dot_dimension_numbers<[1], [0], [0], [1], [0, 0, 1, 1], [], []>} : vector<64x8xbf16>, vector<8x8xbf16>, vector<64x8xf32> -> vector<64x8xf32>
    %44 = arith.addf %38, %43 : vector<64x8xf32>
    %c0_51 = arith.constant 0 : index
    %c0_52 = arith.constant 0 : index
    %c9 = arith.constant 9 : index
    %c0_53 = arith.constant 0 : index
    %45 = vector.load %arg3[%c0_51, %c0_52, %c9, %c0_53] : memref<1x1x104x8xbf16, #tpu.memory_space<vmem>>, vector<1x1x64x8xbf16>
    %46 = vector.shape_cast %45 : vector<1x1x64x8xbf16> to vector<64x8xbf16>
    %c0_54 = arith.constant 0 : index
    %c6 = arith.constant 6 : index
    %c0_55 = arith.constant 0 : index
    %c0_56 = arith.constant 0 : index
    %47 = vector.load %arg4[%c0_54, %c6, %c0_55, %c0_56] : memref<1x25x8x8xbf16, #tpu.memory_space<vmem>>, vector<1x1x8x8xbf16>
    %48 = vector.shape_cast %47 : vector<1x1x8x8xbf16> to vector<8x8xbf16>
    %cst_57 = arith.constant dense<0.000000e+00> : vector<64x8xf32>
    %49 = tpu.matmul %46, %48, %cst_57 {dimension_numbers = #tpu.dot_dimension_numbers<[1], [0], [0], [1], [0, 0, 1, 1], [], []>} : vector<64x8xbf16>, vector<8x8xbf16>, vector<64x8xf32> -> vector<64x8xf32>
    %50 = arith.addf %44, %49 : vector<64x8xf32>
    %c0_58 = arith.constant 0 : index
    %c0_59 = arith.constant 0 : index
    %c10 = arith.constant 10 : index
    %c0_60 = arith.constant 0 : index
    %51 = vector.load %arg3[%c0_58, %c0_59, %c10, %c0_60] : memref<1x1x104x8xbf16, #tpu.memory_space<vmem>>, vector<1x1x64x8xbf16>
    %52 = vector.shape_cast %51 : vector<1x1x64x8xbf16> to vector<64x8xbf16>
    %c0_61 = arith.constant 0 : index
    %c7 = arith.constant 7 : index
    %c0_62 = arith.constant 0 : index
    %c0_63 = arith.constant 0 : index
    %53 = vector.load %arg4[%c0_61, %c7, %c0_62, %c0_63] : memref<1x25x8x8xbf16, #tpu.memory_space<vmem>>, vector<1x1x8x8xbf16>
    %54 = vector.shape_cast %53 : vector<1x1x8x8xbf16> to vector<8x8xbf16>
    %cst_64 = arith.constant dense<0.000000e+00> : vector<64x8xf32>
    %55 = tpu.matmul %52, %54, %cst_64 {dimension_numbers = #tpu.dot_dimension_numbers<[1], [0], [0], [1], [0, 0, 1, 1], [], []>} : vector<64x8xbf16>, vector<8x8xbf16>, vector<64x8xf32> -> vector<64x8xf32>
    %56 = arith.addf %50, %55 : vector<64x8xf32>
    %c0_65 = arith.constant 0 : index
    %c0_66 = arith.constant 0 : index
    %c11 = arith.constant 11 : index
    %c0_67 = arith.constant 0 : index
    %57 = vector.load %arg3[%c0_65, %c0_66, %c11, %c0_67] : memref<1x1x104x8xbf16, #tpu.memory_space<vmem>>, vector<1x1x64x8xbf16>
    %58 = vector.shape_cast %57 : vector<1x1x64x8xbf16> to vector<64x8xbf16>
    %c0_68 = arith.constant 0 : index
    %c8_69 = arith.constant 8 : index
    %c0_70 = arith.constant 0 : index
    %c0_71 = arith.constant 0 : index
    %59 = vector.load %arg4[%c0_68, %c8_69, %c0_70, %c0_71] : memref<1x25x8x8xbf16, #tpu.memory_space<vmem>>, vector<1x1x8x8xbf16>
    %60 = vector.shape_cast %59 : vector<1x1x8x8xbf16> to vector<8x8xbf16>
    %cst_72 = arith.constant dense<0.000000e+00> : vector<64x8xf32>
    %61 = tpu.matmul %58, %60, %cst_72 {dimension_numbers = #tpu.dot_dimension_numbers<[1], [0], [0], [1], [0, 0, 1, 1], [], []>} : vector<64x8xbf16>, vector<8x8xbf16>, vector<64x8xf32> -> vector<64x8xf32>
    %62 = arith.addf %56, %61 : vector<64x8xf32>
    %c0_73 = arith.constant 0 : index
    %c0_74 = arith.constant 0 : index
    %c12 = arith.constant 12 : index
    %c0_75 = arith.constant 0 : index
    %63 = vector.load %arg3[%c0_73, %c0_74, %c12, %c0_75] : memref<1x1x104x8xbf16, #tpu.memory_space<vmem>>, vector<1x1x64x8xbf16>
    %64 = vector.shape_cast %63 : vector<1x1x64x8xbf16> to vector<64x8xbf16>
    %c0_76 = arith.constant 0 : index
    %c9_77 = arith.constant 9 : index
    %c0_78 = arith.constant 0 : index
    %c0_79 = arith.constant 0 : index
    %65 = vector.load %arg4[%c0_76, %c9_77, %c0_78, %c0_79] : memref<1x25x8x8xbf16, #tpu.memory_space<vmem>>, vector<1x1x8x8xbf16>
    %66 = vector.shape_cast %65 : vector<1x1x8x8xbf16> to vector<8x8xbf16>
    %cst_80 = arith.constant dense<0.000000e+00> : vector<64x8xf32>
    %67 = tpu.matmul %64, %66, %cst_80 {dimension_numbers = #tpu.dot_dimension_numbers<[1], [0], [0], [1], [0, 0, 1, 1], [], []>} : vector<64x8xbf16>, vector<8x8xbf16>, vector<64x8xf32> -> vector<64x8xf32>
    %68 = arith.addf %62, %67 : vector<64x8xf32>
    %c0_81 = arith.constant 0 : index
    %c0_82 = arith.constant 0 : index
    %c16 = arith.constant 16 : index
    %c0_83 = arith.constant 0 : index
    %69 = vector.load %arg3[%c0_81, %c0_82, %c16, %c0_83] : memref<1x1x104x8xbf16, #tpu.memory_space<vmem>>, vector<1x1x64x8xbf16>
    %70 = vector.shape_cast %69 : vector<1x1x64x8xbf16> to vector<64x8xbf16>
    %c0_84 = arith.constant 0 : index
    %c10_85 = arith.constant 10 : index
    %c0_86 = arith.constant 0 : index
    %c0_87 = arith.constant 0 : index
    %71 = vector.load %arg4[%c0_84, %c10_85, %c0_86, %c0_87] : memref<1x25x8x8xbf16, #tpu.memory_space<vmem>>, vector<1x1x8x8xbf16>
    %72 = vector.shape_cast %71 : vector<1x1x8x8xbf16> to vector<8x8xbf16>
    %cst_88 = arith.constant dense<0.000000e+00> : vector<64x8xf32>
    %73 = tpu.matmul %70, %72, %cst_88 {dimension_numbers = #tpu.dot_dimension_numbers<[1], [0], [0], [1], [0, 0, 1, 1], [], []>} : vector<64x8xbf16>, vector<8x8xbf16>, vector<64x8xf32> -> vector<64x8xf32>
    %74 = arith.addf %68, %73 : vector<64x8xf32>
    %c0_89 = arith.constant 0 : index
    %c0_90 = arith.constant 0 : index
    %c17 = arith.constant 17 : index
    %c0_91 = arith.constant 0 : index
    %75 = vector.load %arg3[%c0_89, %c0_90, %c17, %c0_91] : memref<1x1x104x8xbf16, #tpu.memory_space<vmem>>, vector<1x1x64x8xbf16>
    %76 = vector.shape_cast %75 : vector<1x1x64x8xbf16> to vector<64x8xbf16>
    %c0_92 = arith.constant 0 : index
    %c11_93 = arith.constant 11 : index
    %c0_94 = arith.constant 0 : index
    %c0_95 = arith.constant 0 : index
    %77 = vector.load %arg4[%c0_92, %c11_93, %c0_94, %c0_95] : memref<1x25x8x8xbf16, #tpu.memory_space<vmem>>, vector<1x1x8x8xbf16>
    %78 = vector.shape_cast %77 : vector<1x1x8x8xbf16> to vector<8x8xbf16>
    %cst_96 = arith.constant dense<0.000000e+00> : vector<64x8xf32>
    %79 = tpu.matmul %76, %78, %cst_96 {dimension_numbers = #tpu.dot_dimension_numbers<[1], [0], [0], [1], [0, 0, 1, 1], [], []>} : vector<64x8xbf16>, vector<8x8xbf16>, vector<64x8xf32> -> vector<64x8xf32>
    %80 = arith.addf %74, %79 : vector<64x8xf32>
    %c0_97 = arith.constant 0 : index
    %c0_98 = arith.constant 0 : index
    %c18 = arith.constant 18 : index
    %c0_99 = arith.constant 0 : index
    %81 = vector.load %arg3[%c0_97, %c0_98, %c18, %c0_99] : memref<1x1x104x8xbf16, #tpu.memory_space<vmem>>, vector<1x1x64x8xbf16>
    %82 = vector.shape_cast %81 : vector<1x1x64x8xbf16> to vector<64x8xbf16>
    %c0_100 = arith.constant 0 : index
    %c12_101 = arith.constant 12 : index
    %c0_102 = arith.constant 0 : index
    %c0_103 = arith.constant 0 : index
    %83 = vector.load %arg4[%c0_100, %c12_101, %c0_102, %c0_103] : memref<1x25x8x8xbf16, #tpu.memory_space<vmem>>, vector<1x1x8x8xbf16>
    %84 = vector.shape_cast %83 : vector<1x1x8x8xbf16> to vector<8x8xbf16>
    %cst_104 = arith.constant dense<0.000000e+00> : vector<64x8xf32>
    %85 = tpu.matmul %82, %84, %cst_104 {dimension_numbers = #tpu.dot_dimension_numbers<[1], [0], [0], [1], [0, 0, 1, 1], [], []>} : vector<64x8xbf16>, vector<8x8xbf16>, vector<64x8xf32> -> vector<64x8xf32>
    %86 = arith.addf %80, %85 : vector<64x8xf32>
    %c0_105 = arith.constant 0 : index
    %c0_106 = arith.constant 0 : index
    %c19 = arith.constant 19 : index
    %c0_107 = arith.constant 0 : index
    %87 = vector.load %arg3[%c0_105, %c0_106, %c19, %c0_107] : memref<1x1x104x8xbf16, #tpu.memory_space<vmem>>, vector<1x1x64x8xbf16>
    %88 = vector.shape_cast %87 : vector<1x1x64x8xbf16> to vector<64x8xbf16>
    %c0_108 = arith.constant 0 : index
    %c13 = arith.constant 13 : index
    %c0_109 = arith.constant 0 : index
    %c0_110 = arith.constant 0 : index
    %89 = vector.load %arg4[%c0_108, %c13, %c0_109, %c0_110] : memref<1x25x8x8xbf16, #tpu.memory_space<vmem>>, vector<1x1x8x8xbf16>
    %90 = vector.shape_cast %89 : vector<1x1x8x8xbf16> to vector<8x8xbf16>
    %cst_111 = arith.constant dense<0.000000e+00> : vector<64x8xf32>
    %91 = tpu.matmul %88, %90, %cst_111 {dimension_numbers = #tpu.dot_dimension_numbers<[1], [0], [0], [1], [0, 0, 1, 1], [], []>} : vector<64x8xbf16>, vector<8x8xbf16>, vector<64x8xf32> -> vector<64x8xf32>
    %92 = arith.addf %86, %91 : vector<64x8xf32>
    %c0_112 = arith.constant 0 : index
    %c0_113 = arith.constant 0 : index
    %c20 = arith.constant 20 : index
    %c0_114 = arith.constant 0 : index
    %93 = vector.load %arg3[%c0_112, %c0_113, %c20, %c0_114] : memref<1x1x104x8xbf16, #tpu.memory_space<vmem>>, vector<1x1x64x8xbf16>
    %94 = vector.shape_cast %93 : vector<1x1x64x8xbf16> to vector<64x8xbf16>
    %c0_115 = arith.constant 0 : index
    %c14 = arith.constant 14 : index
    %c0_116 = arith.constant 0 : index
    %c0_117 = arith.constant 0 : index
    %95 = vector.load %arg4[%c0_115, %c14, %c0_116, %c0_117] : memref<1x25x8x8xbf16, #tpu.memory_space<vmem>>, vector<1x1x8x8xbf16>
    %96 = vector.shape_cast %95 : vector<1x1x8x8xbf16> to vector<8x8xbf16>
    %cst_118 = arith.constant dense<0.000000e+00> : vector<64x8xf32>
    %97 = tpu.matmul %94, %96, %cst_118 {dimension_numbers = #tpu.dot_dimension_numbers<[1], [0], [0], [1], [0, 0, 1, 1], [], []>} : vector<64x8xbf16>, vector<8x8xbf16>, vector<64x8xf32> -> vector<64x8xf32>
    %98 = arith.addf %92, %97 : vector<64x8xf32>
    %c0_119 = arith.constant 0 : index
    %c0_120 = arith.constant 0 : index
    %c24 = arith.constant 24 : index
    %c0_121 = arith.constant 0 : index
    %99 = vector.load %arg3[%c0_119, %c0_120, %c24, %c0_121] : memref<1x1x104x8xbf16, #tpu.memory_space<vmem>>, vector<1x1x64x8xbf16>
    %100 = vector.shape_cast %99 : vector<1x1x64x8xbf16> to vector<64x8xbf16>
    %c0_122 = arith.constant 0 : index
    %c15 = arith.constant 15 : index
    %c0_123 = arith.constant 0 : index
    %c0_124 = arith.constant 0 : index
    %101 = vector.load %arg4[%c0_122, %c15, %c0_123, %c0_124] : memref<1x25x8x8xbf16, #tpu.memory_space<vmem>>, vector<1x1x8x8xbf16>
    %102 = vector.shape_cast %101 : vector<1x1x8x8xbf16> to vector<8x8xbf16>
    %cst_125 = arith.constant dense<0.000000e+00> : vector<64x8xf32>
    %103 = tpu.matmul %100, %102, %cst_125 {dimension_numbers = #tpu.dot_dimension_numbers<[1], [0], [0], [1], [0, 0, 1, 1], [], []>} : vector<64x8xbf16>, vector<8x8xbf16>, vector<64x8xf32> -> vector<64x8xf32>
    %104 = arith.addf %98, %103 : vector<64x8xf32>
    %c0_126 = arith.constant 0 : index
    %c0_127 = arith.constant 0 : index
    %c25 = arith.constant 25 : index
    %c0_128 = arith.constant 0 : index
    %105 = vector.load %arg3[%c0_126, %c0_127, %c25, %c0_128] : memref<1x1x104x8xbf16, #tpu.memory_space<vmem>>, vector<1x1x64x8xbf16>
    %106 = vector.shape_cast %105 : vector<1x1x64x8xbf16> to vector<64x8xbf16>
    %c0_129 = arith.constant 0 : index
    %c16_130 = arith.constant 16 : index
    %c0_131 = arith.constant 0 : index
    %c0_132 = arith.constant 0 : index
    %107 = vector.load %arg4[%c0_129, %c16_130, %c0_131, %c0_132] : memref<1x25x8x8xbf16, #tpu.memory_space<vmem>>, vector<1x1x8x8xbf16>
    %108 = vector.shape_cast %107 : vector<1x1x8x8xbf16> to vector<8x8xbf16>
    %cst_133 = arith.constant dense<0.000000e+00> : vector<64x8xf32>
    %109 = tpu.matmul %106, %108, %cst_133 {dimension_numbers = #tpu.dot_dimension_numbers<[1], [0], [0], [1], [0, 0, 1, 1], [], []>} : vector<64x8xbf16>, vector<8x8xbf16>, vector<64x8xf32> -> vector<64x8xf32>
    %110 = arith.addf %104, %109 : vector<64x8xf32>
    %c0_134 = arith.constant 0 : index
    %c0_135 = arith.constant 0 : index
    %c26 = arith.constant 26 : index
    %c0_136 = arith.constant 0 : index
    %111 = vector.load %arg3[%c0_134, %c0_135, %c26, %c0_136] : memref<1x1x104x8xbf16, #tpu.memory_space<vmem>>, vector<1x1x64x8xbf16>
    %112 = vector.shape_cast %111 : vector<1x1x64x8xbf16> to vector<64x8xbf16>
    %c0_137 = arith.constant 0 : index
    %c17_138 = arith.constant 17 : index
    %c0_139 = arith.constant 0 : index
    %c0_140 = arith.constant 0 : index
    %113 = vector.load %arg4[%c0_137, %c17_138, %c0_139, %c0_140] : memref<1x25x8x8xbf16, #tpu.memory_space<vmem>>, vector<1x1x8x8xbf16>
    %114 = vector.shape_cast %113 : vector<1x1x8x8xbf16> to vector<8x8xbf16>
    %cst_141 = arith.constant dense<0.000000e+00> : vector<64x8xf32>
    %115 = tpu.matmul %112, %114, %cst_141 {dimension_numbers = #tpu.dot_dimension_numbers<[1], [0], [0], [1], [0, 0, 1, 1], [], []>} : vector<64x8xbf16>, vector<8x8xbf16>, vector<64x8xf32> -> vector<64x8xf32>
    %116 = arith.addf %110, %115 : vector<64x8xf32>
    %c0_142 = arith.constant 0 : index
    %c0_143 = arith.constant 0 : index
    %c27 = arith.constant 27 : index
    %c0_144 = arith.constant 0 : index
    %117 = vector.load %arg3[%c0_142, %c0_143, %c27, %c0_144] : memref<1x1x104x8xbf16, #tpu.memory_space<vmem>>, vector<1x1x64x8xbf16>
    %118 = vector.shape_cast %117 : vector<1x1x64x8xbf16> to vector<64x8xbf16>
    %c0_145 = arith.constant 0 : index
    %c18_146 = arith.constant 18 : index
    %c0_147 = arith.constant 0 : index
    %c0_148 = arith.constant 0 : index
    %119 = vector.load %arg4[%c0_145, %c18_146, %c0_147, %c0_148] : memref<1x25x8x8xbf16, #tpu.memory_space<vmem>>, vector<1x1x8x8xbf16>
    %120 = vector.shape_cast %119 : vector<1x1x8x8xbf16> to vector<8x8xbf16>
    %cst_149 = arith.constant dense<0.000000e+00> : vector<64x8xf32>
    %121 = tpu.matmul %118, %120, %cst_149 {dimension_numbers = #tpu.dot_dimension_numbers<[1], [0], [0], [1], [0, 0, 1, 1], [], []>} : vector<64x8xbf16>, vector<8x8xbf16>, vector<64x8xf32> -> vector<64x8xf32>
    %122 = arith.addf %116, %121 : vector<64x8xf32>
    %c0_150 = arith.constant 0 : index
    %c0_151 = arith.constant 0 : index
    %c28 = arith.constant 28 : index
    %c0_152 = arith.constant 0 : index
    %123 = vector.load %arg3[%c0_150, %c0_151, %c28, %c0_152] : memref<1x1x104x8xbf16, #tpu.memory_space<vmem>>, vector<1x1x64x8xbf16>
    %124 = vector.shape_cast %123 : vector<1x1x64x8xbf16> to vector<64x8xbf16>
    %c0_153 = arith.constant 0 : index
    %c19_154 = arith.constant 19 : index
    %c0_155 = arith.constant 0 : index
    %c0_156 = arith.constant 0 : index
    %125 = vector.load %arg4[%c0_153, %c19_154, %c0_155, %c0_156] : memref<1x25x8x8xbf16, #tpu.memory_space<vmem>>, vector<1x1x8x8xbf16>
    %126 = vector.shape_cast %125 : vector<1x1x8x8xbf16> to vector<8x8xbf16>
    %cst_157 = arith.constant dense<0.000000e+00> : vector<64x8xf32>
    %127 = tpu.matmul %124, %126, %cst_157 {dimension_numbers = #tpu.dot_dimension_numbers<[1], [0], [0], [1], [0, 0, 1, 1], [], []>} : vector<64x8xbf16>, vector<8x8xbf16>, vector<64x8xf32> -> vector<64x8xf32>
    %128 = arith.addf %122, %127 : vector<64x8xf32>
    %c0_158 = arith.constant 0 : index
    %c0_159 = arith.constant 0 : index
    %c32 = arith.constant 32 : index
    %c0_160 = arith.constant 0 : index
    %129 = vector.load %arg3[%c0_158, %c0_159, %c32, %c0_160] : memref<1x1x104x8xbf16, #tpu.memory_space<vmem>>, vector<1x1x64x8xbf16>
    %130 = vector.shape_cast %129 : vector<1x1x64x8xbf16> to vector<64x8xbf16>
    %c0_161 = arith.constant 0 : index
    %c20_162 = arith.constant 20 : index
    %c0_163 = arith.constant 0 : index
    %c0_164 = arith.constant 0 : index
    %131 = vector.load %arg4[%c0_161, %c20_162, %c0_163, %c0_164] : memref<1x25x8x8xbf16, #tpu.memory_space<vmem>>, vector<1x1x8x8xbf16>
    %132 = vector.shape_cast %131 : vector<1x1x8x8xbf16> to vector<8x8xbf16>
    %cst_165 = arith.constant dense<0.000000e+00> : vector<64x8xf32>
    %133 = tpu.matmul %130, %132, %cst_165 {dimension_numbers = #tpu.dot_dimension_numbers<[1], [0], [0], [1], [0, 0, 1, 1], [], []>} : vector<64x8xbf16>, vector<8x8xbf16>, vector<64x8xf32> -> vector<64x8xf32>
    %134 = arith.addf %128, %133 : vector<64x8xf32>
    %c0_166 = arith.constant 0 : index
    %c0_167 = arith.constant 0 : index
    %c33 = arith.constant 33 : index
    %c0_168 = arith.constant 0 : index
    %135 = vector.load %arg3[%c0_166, %c0_167, %c33, %c0_168] : memref<1x1x104x8xbf16, #tpu.memory_space<vmem>>, vector<1x1x64x8xbf16>
    %136 = vector.shape_cast %135 : vector<1x1x64x8xbf16> to vector<64x8xbf16>
    %c0_169 = arith.constant 0 : index
    %c21 = arith.constant 21 : index
    %c0_170 = arith.constant 0 : index
    %c0_171 = arith.constant 0 : index
    %137 = vector.load %arg4[%c0_169, %c21, %c0_170, %c0_171] : memref<1x25x8x8xbf16, #tpu.memory_space<vmem>>, vector<1x1x8x8xbf16>
    %138 = vector.shape_cast %137 : vector<1x1x8x8xbf16> to vector<8x8xbf16>
    %cst_172 = arith.constant dense<0.000000e+00> : vector<64x8xf32>
    %139 = tpu.matmul %136, %138, %cst_172 {dimension_numbers = #tpu.dot_dimension_numbers<[1], [0], [0], [1], [0, 0, 1, 1], [], []>} : vector<64x8xbf16>, vector<8x8xbf16>, vector<64x8xf32> -> vector<64x8xf32>
    %140 = arith.addf %134, %139 : vector<64x8xf32>
    %c0_173 = arith.constant 0 : index
    %c0_174 = arith.constant 0 : index
    %c34 = arith.constant 34 : index
    %c0_175 = arith.constant 0 : index
    %141 = vector.load %arg3[%c0_173, %c0_174, %c34, %c0_175] : memref<1x1x104x8xbf16, #tpu.memory_space<vmem>>, vector<1x1x64x8xbf16>
    %142 = vector.shape_cast %141 : vector<1x1x64x8xbf16> to vector<64x8xbf16>
    %c0_176 = arith.constant 0 : index
    %c22 = arith.constant 22 : index
    %c0_177 = arith.constant 0 : index
    %c0_178 = arith.constant 0 : index
    %143 = vector.load %arg4[%c0_176, %c22, %c0_177, %c0_178] : memref<1x25x8x8xbf16, #tpu.memory_space<vmem>>, vector<1x1x8x8xbf16>
    %144 = vector.shape_cast %143 : vector<1x1x8x8xbf16> to vector<8x8xbf16>
    %cst_179 = arith.constant dense<0.000000e+00> : vector<64x8xf32>
    %145 = tpu.matmul %142, %144, %cst_179 {dimension_numbers = #tpu.dot_dimension_numbers<[1], [0], [0], [1], [0, 0, 1, 1], [], []>} : vector<64x8xbf16>, vector<8x8xbf16>, vector<64x8xf32> -> vector<64x8xf32>
    %146 = arith.addf %140, %145 : vector<64x8xf32>
    %c0_180 = arith.constant 0 : index
    %c0_181 = arith.constant 0 : index
    %c35 = arith.constant 35 : index
    %c0_182 = arith.constant 0 : index
    %147 = vector.load %arg3[%c0_180, %c0_181, %c35, %c0_182] : memref<1x1x104x8xbf16, #tpu.memory_space<vmem>>, vector<1x1x64x8xbf16>
    %148 = vector.shape_cast %147 : vector<1x1x64x8xbf16> to vector<64x8xbf16>
    %c0_183 = arith.constant 0 : index
    %c23 = arith.constant 23 : index
    %c0_184 = arith.constant 0 : index
    %c0_185 = arith.constant 0 : index
    %149 = vector.load %arg4[%c0_183, %c23, %c0_184, %c0_185] : memref<1x25x8x8xbf16, #tpu.memory_space<vmem>>, vector<1x1x8x8xbf16>
    %150 = vector.shape_cast %149 : vector<1x1x8x8xbf16> to vector<8x8xbf16>
    %cst_186 = arith.constant dense<0.000000e+00> : vector<64x8xf32>
    %151 = tpu.matmul %148, %150, %cst_186 {dimension_numbers = #tpu.dot_dimension_numbers<[1], [0], [0], [1], [0, 0, 1, 1], [], []>} : vector<64x8xbf16>, vector<8x8xbf16>, vector<64x8xf32> -> vector<64x8xf32>
    %152 = arith.addf %146, %151 : vector<64x8xf32>
    %c0_187 = arith.constant 0 : index
    %c0_188 = arith.constant 0 : index
    %c36 = arith.constant 36 : index
    %c0_189 = arith.constant 0 : index
    %153 = vector.load %arg3[%c0_187, %c0_188, %c36, %c0_189] : memref<1x1x104x8xbf16, #tpu.memory_space<vmem>>, vector<1x1x64x8xbf16>
    %154 = vector.shape_cast %153 : vector<1x1x64x8xbf16> to vector<64x8xbf16>
    %c0_190 = arith.constant 0 : index
    %c24_191 = arith.constant 24 : index
    %c0_192 = arith.constant 0 : index
    %c0_193 = arith.constant 0 : index
    %155 = vector.load %arg4[%c0_190, %c24_191, %c0_192, %c0_193] : memref<1x25x8x8xbf16, #tpu.memory_space<vmem>>, vector<1x1x8x8xbf16>
    %156 = vector.shape_cast %155 : vector<1x1x8x8xbf16> to vector<8x8xbf16>
    %cst_194 = arith.constant dense<0.000000e+00> : vector<64x8xf32>
    %157 = tpu.matmul %154, %156, %cst_194 {dimension_numbers = #tpu.dot_dimension_numbers<[1], [0], [0], [1], [0, 0, 1, 1], [], []>} : vector<64x8xbf16>, vector<8x8xbf16>, vector<64x8xf32> -> vector<64x8xf32>
    %158 = arith.addf %152, %157 : vector<64x8xf32>
    %c0_195 = arith.constant 0 : index
    %c0_196 = arith.constant 0 : index
    %c0_197 = arith.constant 0 : index
    %c0_198 = arith.constant 0 : index
    %159 = vector.load %arg6[%c0_195, %c0_196, %c0_197, %c0_198] : memref<1x1x64x8xf32, #tpu.memory_space<vmem>>, vector<1x1x64x8xf32>
    %160 = vector.shape_cast %159 : vector<1x1x64x8xf32> to vector<64x8xf32>
    %161 = arith.addf %160, %158 : vector<64x8xf32>
    %c0_199 = arith.constant 0 : index
    %c0_200 = arith.constant 0 : index
    %c0_201 = arith.constant 0 : index
    %c0_202 = arith.constant 0 : index
    %162 = vector.load %arg6[%c0_199, %c0_200, %c0_201, %c0_202] : memref<1x1x64x8xf32, #tpu.memory_space<vmem>>, vector<1x1x64x8xf32>
    %163 = vector.shape_cast %162 : vector<1x1x64x8xf32> to vector<64x8xf32>
    %164 = vector.shape_cast %161 : vector<64x8xf32> to vector<1x1x64x8xf32>
    tpu.vector_store %arg6[%c0_199, %c0_200, %c0_201, %c0_202], %164 {strides = array<i32>} : memref<1x1x64x8xf32, #tpu.memory_space<vmem>>, vector<1x1x64x8xf32>,
    %c4_i32 = arith.constant 4 : i32
    %165 = arith.cmpi eq, %arg2, %c4_i32 : i32
    %166 = arith.extui %165 : i1 to i32
    %c0_i32_203 = arith.constant 0 : i32
    %167 = arith.cmpi ne, %166, %c0_i32_203 : i32
    scf.if %167 {
      %c0_204 = arith.constant 0 : index
      %c0_205 = arith.constant 0 : index
      %c0_206 = arith.constant 0 : index
      %c0_207 = arith.constant 0 : index
      %168 = vector.load %arg6[%c0_204, %c0_205, %c0_206, %c0_207] : memref<1x1x64x8xf32, #tpu.memory_space<vmem>>, vector<1x1x64x8xf32>
      %169 = vector.shape_cast %168 : vector<1x1x64x8xf32> to vector<64x8xf32>
      %c0_208 = arith.constant 0 : index
      %c0_209 = arith.constant 0 : index
      %170 = vector.load %arg5[%c0_208, %c0_209] : memref<64x1xf32, #tpu.memory_space<vmem>>, vector<64x1xf32>
      %171 = vector.broadcast %170 : vector<64x1xf32> to vector<64x8xf32>
      %172 = arith.mulf %169, %171 : vector<64x8xf32>
      %c0_210 = arith.constant 0 : index
      %c0_211 = arith.constant 0 : index
      %173 = vector.load %arg7[%c0_210, %c0_211] : memref<1x8xf32, #tpu.memory_space<vmem>>, vector<1x8xf32>
      %cst_212 = arith.constant dense<0.000000e+00> : vector<8xf32>
      %174 = vector.multi_reduction <add>, %172, %cst_212 [0] : vector<64x8xf32> to vector<8xf32>
      %175 = vector.shape_cast %174 : vector<8xf32> to vector<1x8xf32>
      %176 = arith.addf %173, %175 : vector<1x8xf32>
      %c0_213 = arith.constant 0 : index
      %c0_214 = arith.constant 0 : index
      %177 = vector.load %arg7[%c0_213, %c0_214] : memref<1x8xf32, #tpu.memory_space<vmem>>, vector<1x8xf32>
      tpu.vector_store %arg7[%c0_213, %c0_214], %176 {strides = array<i32>} : memref<1x8xf32, #tpu.memory_space<vmem>>, vector<1x8xf32>,
      %c0_215 = arith.constant 0 : index
      %c0_216 = arith.constant 0 : index
      %178 = vector.load %arg8[%c0_215, %c0_216] : memref<1x8xf32, #tpu.memory_space<vmem>>, vector<1x8xf32>
      %179 = arith.mulf %172, %169 : vector<64x8xf32>
      %cst_217 = arith.constant dense<0.000000e+00> : vector<8xf32>
      %180 = vector.multi_reduction <add>, %179, %cst_217 [0] : vector<64x8xf32> to vector<8xf32>
      %181 = vector.shape_cast %180 : vector<8xf32> to vector<1x8xf32>
      %182 = arith.addf %178, %181 : vector<1x8xf32>
      %c0_218 = arith.constant 0 : index
      %c0_219 = arith.constant 0 : index
      %183 = vector.load %arg8[%c0_218, %c0_219] : memref<1x8xf32, #tpu.memory_space<vmem>>, vector<1x8xf32>
      tpu.vector_store %arg8[%c0_218, %c0_219], %182 {strides = array<i32>} : memref<1x8xf32, #tpu.memory_space<vmem>>, vector<1x8xf32>,
    } else {
    }
    return
  }
  func.func @transform_0(%arg0: i32, %arg1: i32, %arg2: i32) -> (i32, i32, i32, i32) {
    %0 = arith.addi %arg1, %arg2 : i32
    %c0_i32 = arith.constant 0 : i32
    %c0_i32_0 = arith.constant 0 : i32
    %c0_i32_1 = arith.constant 0 : i32
    return %arg0, %0, %c0_i32, %c0_i32_0 : i32, i32, i32, i32
  }
  func.func @transform_1(%arg0: i32, %arg1: i32, %arg2: i32) -> (i32, i32, i32, i32) {
    %c0_i32 = arith.constant 0 : i32
    %c0_i32_0 = arith.constant 0 : i32
    %c0_i32_1 = arith.constant 0 : i32
    %c0_i32_2 = arith.constant 0 : i32
    return %arg2, %c0_i32, %c0_i32_0, %c0_i32_1 : i32, i32, i32, i32
  }
  func.func @transform_2(%arg0: i32, %arg1: i32, %arg2: i32) -> (i32, i32) {
    %c0_i32 = arith.constant 0 : i32
    %c0_i32_0 = arith.constant 0 : i32
    %c0_i32_1 = arith.constant 0 : i32
    return %c0_i32, %c0_i32_0 : i32, i32
  }
  func.func @transform_3(%arg0: i32, %arg1: i32, %arg2: i32) -> (i32, i32, i32, i32) {
    %c0_i32 = arith.constant 0 : i32
    %c0_i32_0 = arith.constant 0 : i32
    %c0_i32_1 = arith.constant 0 : i32
    return %arg0, %arg1, %c0_i32, %c0_i32_0 : i32, i32, i32, i32
  }
  func.func @transform_4(%arg0: i32, %arg1: i32, %arg2: i32) -> (i32, i32) {
    %c0_i32 = arith.constant 0 : i32
    %c0_i32_0 = arith.constant 0 : i32
    %c0_i32_1 = arith.constant 0 : i32
    return %c0_i32, %c0_i32_0 : i32, i32
  }
  func.func @transform_5(%arg0: i32, %arg1: i32, %arg2: i32) -> (i32, i32) {
    %c0_i32 = arith.constant 0 : i32
    %c0_i32_0 = arith.constant 0 : i32
    %c0_i32_1 = arith.constant 0 : i32
    return %c0_i32, %c0_i32_0 : i32, i32
  }
}

module attributes {stable_mosaic.version = 11 : i64} {
  func.func @_bn_add_elu_kernel(%arg0: i32, %arg1: memref<8x128xf32, #tpu.memory_space<vmem>>, %arg2: memref<1x128xf32, #tpu.memory_space<vmem>>, %arg3: memref<1x128xf32, #tpu.memory_space<vmem>>, %arg4: memref<1x128xf32, #tpu.memory_space<vmem>>, %arg5: memref<1x128xf32, #tpu.memory_space<vmem>>, %arg6: memref<8x128xf32, #tpu.memory_space<vmem>>, %arg7: memref<8x128xf32, #tpu.memory_space<vmem>>) attributes {dimension_semantics = [#tpu.dimension_semantics<parallel>], iteration_bounds = array<i64: 1>, scalar_prefetch = 0 : i64, scratch_operands = 0 : i64, tpu.core_type = #tpu.core_type<tc>, window_params = [{transform_indices = @transform_0, window_bounds = array<i64: 8, 128>}, {pipeline_mode = #tpu.pipeline_mode<synchronous>, transform_indices = @transform_1, window_bounds = array<i64: 1, 128>}, {pipeline_mode = #tpu.pipeline_mode<synchronous>, transform_indices = @transform_2, window_bounds = array<i64: 1, 128>}, {pipeline_mode = #tpu.pipeline_mode<synchronous>, transform_indices = @transform_3, window_bounds = array<i64: 1, 128>}, {pipeline_mode = #tpu.pipeline_mode<synchronous>, transform_indices = @transform_4, window_bounds = array<i64: 1, 128>}, {transform_indices = @transform_5, window_bounds = array<i64: 8, 128>}, {transform_indices = @transform_6, window_bounds = array<i64: 8, 128>}]} {
    %c0 = arith.constant 0 : index
    %c0_0 = arith.constant 0 : index
    %0 = vector.load %arg2[%c0, %c0_0] : memref<1x128xf32, #tpu.memory_space<vmem>>, vector<1x128xf32>
    %cst = arith.constant 7.812500e-03 : f32
    %1 = vector.broadcast %cst : f32 to vector<1x128xf32>
    %2 = arith.mulf %0, %1 : vector<1x128xf32>
    %c0_1 = arith.constant 0 : index
    %c0_2 = arith.constant 0 : index
    %3 = vector.load %arg3[%c0_1, %c0_2] : memref<1x128xf32, #tpu.memory_space<vmem>>, vector<1x128xf32>
    %cst_3 = arith.constant 7.812500e-03 : f32
    %4 = vector.broadcast %cst_3 : f32 to vector<1x128xf32>
    %5 = arith.mulf %3, %4 : vector<1x128xf32>
    %6 = arith.mulf %2, %2 : vector<1x128xf32>
    %7 = arith.subf %5, %6 : vector<1x128xf32>
    %cst_4 = arith.constant 0.000000e+00 : f32
    %8 = vector.broadcast %cst_4 : f32 to vector<1x128xf32>
    %9 = arith.maximumf %7, %8 : vector<1x128xf32>
    %c0_5 = arith.constant 0 : index
    %c0_6 = arith.constant 0 : index
    %10 = vector.load %arg4[%c0_5, %c0_6] : memref<1x128xf32, #tpu.memory_space<vmem>>, vector<1x128xf32>
    %cst_7 = arith.constant 9.99999974E-6 : f32
    %11 = vector.broadcast %cst_7 : f32 to vector<1x128xf32>
    %12 = arith.addf %9, %11 : vector<1x128xf32>
    %13 = math.rsqrt %12 : vector<1x128xf32>
    %14 = arith.mulf %10, %13 : vector<1x128xf32>
    %c0_8 = arith.constant 0 : index
    %c0_9 = arith.constant 0 : index
    %15 = vector.load %arg5[%c0_8, %c0_9] : memref<1x128xf32, #tpu.memory_space<vmem>>, vector<1x128xf32>
    %16 = arith.mulf %2, %14 : vector<1x128xf32>
    %17 = arith.subf %15, %16 : vector<1x128xf32>
    %c0_10 = arith.constant 0 : index
    %c0_11 = arith.constant 0 : index
    %18 = vector.load %arg1[%c0_10, %c0_11] : memref<8x128xf32, #tpu.memory_space<vmem>>, vector<8x128xf32>
    %19 = vector.broadcast %14 : vector<1x128xf32> to vector<8x128xf32>
    %20 = arith.mulf %18, %19 : vector<8x128xf32>
    %21 = vector.broadcast %17 : vector<1x128xf32> to vector<8x128xf32>
    %22 = arith.addf %20, %21 : vector<8x128xf32>
    %cst_12 = arith.constant 0.000000e+00 : f32
    %23 = vector.broadcast %cst_12 : f32 to vector<8x128xf32>
    %24 = arith.cmpf ogt, %22, %23 : vector<8x128xf32>
    %25 = math.exp %22 : vector<8x128xf32>
    %cst_13 = arith.constant 1.000000e+00 : f32
    %26 = vector.broadcast %cst_13 : f32 to vector<8x128xf32>
    %27 = arith.subf %25, %26 : vector<8x128xf32>
    %28 = arith.select %24, %22, %27 : vector<8x128xi1>, vector<8x128xf32>
    %c0_14 = arith.constant 0 : index
    %c0_15 = arith.constant 0 : index
    %29 = vector.load %arg6[%c0_14, %c0_15] : memref<8x128xf32, #tpu.memory_space<vmem>>, vector<8x128xf32>
    %30 = arith.addf %28, %29 : vector<8x128xf32>
    %cst_16 = arith.constant 0.000000e+00 : f32
    %31 = vector.broadcast %cst_16 : f32 to vector<8x128xf32>
    %32 = arith.cmpf ogt, %30, %31 : vector<8x128xf32>
    %33 = math.exp %30 : vector<8x128xf32>
    %cst_17 = arith.constant 1.000000e+00 : f32
    %34 = vector.broadcast %cst_17 : f32 to vector<8x128xf32>
    %35 = arith.subf %33, %34 : vector<8x128xf32>
    %36 = arith.select %32, %30, %35 : vector<8x128xi1>, vector<8x128xf32>
    %c0_18 = arith.constant 0 : index
    %c0_19 = arith.constant 0 : index
    %37 = vector.load %arg7[%c0_18, %c0_19] : memref<8x128xf32, #tpu.memory_space<vmem>>, vector<8x128xf32>
    tpu.vector_store %arg7[%c0_18, %c0_19], %36 {strides = array<i32>} : memref<8x128xf32, #tpu.memory_space<vmem>>, vector<8x128xf32>,
    return
  }
  func.func @transform_0(%arg0: i32) -> (i32, i32) {
    %c0_i32 = arith.constant 0 : i32
    %c0_i32_0 = arith.constant 0 : i32
    return %arg0, %c0_i32 : i32, i32
  }
  func.func @transform_1(%arg0: i32) -> (i32, i32) {
    %c0_i32 = arith.constant 0 : i32
    %c0_i32_0 = arith.constant 0 : i32
    %c0_i32_1 = arith.constant 0 : i32
    return %c0_i32, %c0_i32_0 : i32, i32
  }
  func.func @transform_2(%arg0: i32) -> (i32, i32) {
    %c0_i32 = arith.constant 0 : i32
    %c0_i32_0 = arith.constant 0 : i32
    %c0_i32_1 = arith.constant 0 : i32
    return %c0_i32, %c0_i32_0 : i32, i32
  }
  func.func @transform_3(%arg0: i32) -> (i32, i32) {
    %c0_i32 = arith.constant 0 : i32
    %c0_i32_0 = arith.constant 0 : i32
    %c0_i32_1 = arith.constant 0 : i32
    return %c0_i32, %c0_i32_0 : i32, i32
  }
  func.func @transform_4(%arg0: i32) -> (i32, i32) {
    %c0_i32 = arith.constant 0 : i32
    %c0_i32_0 = arith.constant 0 : i32
    %c0_i32_1 = arith.constant 0 : i32
    return %c0_i32, %c0_i32_0 : i32, i32
  }
  func.func @transform_5(%arg0: i32) -> (i32, i32) {
    %c0_i32 = arith.constant 0 : i32
    %c0_i32_0 = arith.constant 0 : i32
    return %arg0, %c0_i32 : i32, i32
  }
  func.func @transform_6(%arg0: i32) -> (i32, i32) {
    %c0_i32 = arith.constant 0 : i32
    %c0_i32_0 = arith.constant 0 : i32
    return %arg0, %c0_i32 : i32, i32
  }
}

</mosaic_0001>

<llo_original>
// kernel: down_transition_forward.6
$region0: #{down_transition_forward.6}
  #allocation0 [shape = 'u32[]', space=smem, size = 0x4, offset = 0x4, fixed_abs, tag = 'smem constant byte address 0x4 - core index']
  #allocation1 [shape = 'u32[144,128]{1,0:T(1,128)}', space=vmem, size = 0x12000, scoped, tag = 'internal scratch']
  %s0 = inlined_call_operand.vmem [shape: bf16[128,32], index: 0, kind: input, shape index: {}]
  %s1 = inlined_call_operand.vmem [shape: bf16[32,8], index: 1, kind: input, shape index: {}]
  %s2 = inlined_call_operand.vmem [shape: f32[128,8], index: 2, kind: output, shape index: {0}]
  %s3 = inlined_call_operand.vmem [shape: f32[1,8], index: 3, kind: output, shape index: {1}]
  %s4 = inlined_call_operand.vmem [shape: f32[1,8], index: 4, kind: output, shape index: {2}]
  %5 = xla_tuple %s2, %s3, %s4
  %s6 = sld [smem:[#allocation0]]
  $region38: #{down_transition_forward.6} parent=0
    _
  %s8 = ssub.s32 1, %s6
  %s9 = scalar_select 0, %s8, %s6
  // Predicated region
  $region2: #{down_transition_forward.6} parent=0 // pred_check
    _
  $region3: #{down_transition_forward.6} parent=0 // pred_check_branch
    %11 = sbr.rel (0) target = $region5
  $region4: #{down_transition_forward.6} parent=0 // pred_region
    _
  $region5: #{down_transition_forward.6} parent=0 // pred_fallthru
    _
  // Predicated region
  $region6: #{down_transition_forward.6} parent=0 // pred_check
    _
  $region7: #{down_transition_forward.6} parent=0 // pred_check_branch
    %13 = sbr.rel (0) target = $region9
  $region8: #{down_transition_forward.6} parent=0 // pred_region
    _
  $region9: #{down_transition_forward.6} parent=0 // pred_fallthru
    _
  %v15 = vld [vmem:[%s0] sm:$0xf]
  %v16 = vld [vmem:[%s0 + $0x4] sm:$0xf]
  %v17 = vld [vmem:[%s0 + $0x8] sm:$0xf]
  %v18 = vld [vmem:[%s0 + $0xc] sm:$0xf]
  %v19 = vld [vmem:[%s0 + $0x10] sm:$0xf]
  %v20 = vld [vmem:[%s0 + $0x14] sm:$0xf]
  %v21 = vld [vmem:[%s0 + $0x18] sm:$0xf]
  %v22 = vld [vmem:[%s0 + $0x1c] sm:$0xf]
  %v23 = vld [vmem:[%s0 + $0x20] sm:$0xf]
  %v24 = vld [vmem:[%s0 + $0x24] sm:$0xf]
  %v25 = vld [vmem:[%s0 + $0x28] sm:$0xf]
  %v26 = vld [vmem:[%s0 + $0x2c] sm:$0xf]
  %v27 = vld [vmem:[%s0 + $0x30] sm:$0xf]
  %v28 = vld [vmem:[%s0 + $0x34] sm:$0xf]
  %v29 = vld [vmem:[%s0 + $0x38] sm:$0xf]
  %v30 = vld [vmem:[%s0 + $0x3c] sm:$0xf]
  %v31 = vld [vmem:[%s1] sm:$0xf]
  %v32 = vld [vmem:[%s1 + $0x4] sm:$0xf]
  %v33 = vld [vmem:[%s1 + $0x8] sm:$0xf]
  %v34 = vld [vmem:[%s1 + $0xc] sm:$0xf]
  %v51 = vunpack.c.l.b16 %v15
  %v52 = vunpack.c.l.b16 %v16
  %v53 = vunpack.c.l.b16 %v17
  %v54 = vunpack.c.l.b16 %v18
  %v55 = vunpack.c.l.b16 %v19
  %v56 = vunpack.c.l.b16 %v20
  %v57 = vunpack.c.l.b16 %v21
  %v58 = vunpack.c.l.b16 %v22
  %v59 = vunpack.c.l.b16 %v23
  %v60 = vunpack.c.l.b16 %v24
  %v61 = vunpack.c.l.b16 %v25
  %v62 = vunpack.c.l.b16 %v26
  %v63 = vunpack.c.l.b16 %v27
  %v64 = vunpack.c.l.b16 %v28
  %v65 = vunpack.c.l.b16 %v29
  %v66 = vunpack.c.l.b16 %v30
  %v67 = vpack.c.b16 %v52, %v51
  %v68 = vpack.c.b16 %v54, %v53
  %v69 = vpack.c.b16 %v56, %v55
  %v70 = vpack.c.b16 %v58, %v57
  %v71 = vpack.c.b16 %v60, %v59
  %v72 = vpack.c.b16 %v62, %v61
  %v73 = vpack.c.b16 %v64, %v63
  %v74 = vpack.c.b16 %v66, %v65
  %v79 = vunpack.c.l.b16 %v31
  %v80 = vunpack.c.l.b16 %v32
  %v81 = vunpack.c.l.b16 %v33
  %v82 = vunpack.c.l.b16 %v34
  %v83 = vpack.c.b16 %v80, %v79
  %v84 = vpack.c.b16 %v82, %v81
  %vm87 = vcmask 261120
  %v89 = vsel %vm87, %v67, 0
  %v92 = vsel %vm87, %v68, 0
  %v95 = vsel %vm87, %v69, 0
  %v98 = vsel %vm87, %v70, 0
  %v101 = vsel %vm87, %v71, 0
  %v104 = vsel %vm87, %v72, 0
  %v107 = vsel %vm87, %v73, 0
  %v110 = vsel %vm87, %v74, 0
  %112 = vmatprep.subr.bf16.mxu0 0
  %113 = vmatpush1.bf16.msra.mxu0 %v83
  %114 = vmatprep.subr.bf16.mxu0 0
  %115 = vmatpush1.bf16.msra.mxu0 %v84
  %116 = vmatprep.subr.bf16.mxu0 0
  %117 = vmatpush1.bf16.msra.mxu0 0
  %118 = vmatprep.subr.bf16.mxu0 0
  %119 = vmatpush1.bf16.msra.mxu0 0
  %120 = vmatprep.subr.bf16.mxu0 0
  %121 = vmatpush1.bf16.msra.mxu0 0
  %122 = vmatprep.subr.bf16.mxu0 0
  %123 = vmatpush1.bf16.msra.mxu0 0
  %124 = vmatprep.subr.bf16.mxu0 0
  %125 = vmatpush1.bf16.msra.mxu0 0
  %126 = vmatprep.subr.bf16.mxu0 0
  %127 = vmatpush1.bf16.msra.mxu0 0
  %128 = vmatprep.subr.bf16.mxu0 0
  %129 = vmatpush1.bf16.msra.mxu0 0
  %130 = vmatprep.subr.bf16.mxu0 0
  %131 = vmatpush1.bf16.msra.mxu0 0
  %132 = vmatprep.subr.bf16.mxu0 0
  %133 = vmatpush1.bf16.msra.mxu0 0
  %134 = vmatprep.subr.bf16.mxu0 0
  %135 = vmatpush1.bf16.msra.mxu0 0
  %136 = vmatprep.subr.bf16.mxu0 0
  %137 = vmatpush1.bf16.msra.mxu0 0
  %138 = vmatprep.subr.bf16.mxu0 0
  %139 = vmatpush1.bf16.msra.mxu0 0
  %140 = vmatprep.subr.bf16.mxu0 0
  %141 = vmatpush1.bf16.msra.mxu0 0
  %142 = vmatprep.subr.bf16.mxu0 0
  %143 = vmatpush1.bf16.msra.mxu0 0
  %144 = vmatprep.mubr.bf16.mxu0 0
  %145 = vmatmul.mubr.bf16.gmra.mrb[0].mxu0 %v89
  %v146 = vpop.f32.mrb[0].mxu0
  %v147 = vadd.f32 0.0, %v146
  %v148 = vpop.f32.mrb[0].mxu0
  %v149 = vpop.f32.mrb[0].mxu0
  %v150 = vadd.f32 0.0, %v149
  %v151 = vpop.f32.mrb[0].mxu0
  %152 = vmatprep.mubr.bf16.mxu0 0
  %153 = vmatmul.mubr.bf16.gmra.mrb[0].mxu0 %v92
  %v154 = vpop.f32.mrb[0].mxu0
  %v155 = vadd.f32 0.0, %v154
  %v156 = vpop.f32.mrb[0].mxu0
  %v157 = vpop.f32.mrb[0].mxu0
  %v158 = vadd.f32 0.0, %v157
  %v159 = vpop.f32.mrb[0].mxu0
  %160 = vmatprep.mubr.bf16.mxu0 0
  %161 = vmatmul.mubr.bf16.gmra.mrb[0].mxu0 %v95
  %v162 = vpop.f32.mrb[0].mxu0
  %v163 = vadd.f32 0.0, %v162
  %v164 = vpop.f32.mrb[0].mxu0
  %v165 = vpop.f32.mrb[0].mxu0
  %v166 = vadd.f32 0.0, %v165
  %v167 = vpop.f32.mrb[0].mxu0
  %168 = vmatprep.mubr.bf16.mxu0 0
  %169 = vmatmul.mubr.bf16.gmra.mrb[0].mxu0 %v98
  %v170 = vpop.f32.mrb[0].mxu0
  %v171 = vadd.f32 0.0, %v170
  %v172 = vpop.f32.mrb[0].mxu0
  %v173 = vpop.f32.mrb[0].mxu0
  %v174 = vadd.f32 0.0, %v173
  %v175 = vpop.f32.mrb[0].mxu0
  %176 = vmatprep.mubr.bf16.mxu0 0
  %177 = vmatmul.mubr.bf16.gmra.mrb[0].mxu0 %v101
  %v178 = vpop.f32.mrb[0].mxu0
  %v179 = vadd.f32 0.0, %v178
  %v180 = vpop.f32.mrb[0].mxu0
  %v181 = vpop.f32.mrb[0].mxu0
  %v182 = vadd.f32 0.0, %v181
  %v183 = vpop.f32.mrb[0].mxu0
  %184 = vmatprep.mubr.bf16.mxu0 0
  %185 = vmatmul.mubr.bf16.gmra.mrb[0].mxu0 %v104
  %v186 = vpop.f32.mrb[0].mxu0
  %v187 = vadd.f32 0.0, %v186
  %v188 = vpop.f32.mrb[0].mxu0
  %v189 = vpop.f32.mrb[0].mxu0
  %v190 = vadd.f32 0.0, %v189
  %v191 = vpop.f32.mrb[0].mxu0
  %192 = vmatprep.mubr.bf16.mxu0 0
  %193 = vmatmul.mubr.bf16.gmra.mrb[0].mxu0 %v107
  %v194 = vpop.f32.mrb[0].mxu0
  %v195 = vadd.f32 0.0, %v194
  %v196 = vpop.f32.mrb[0].mxu0
  %v197 = vpop.f32.mrb[0].mxu0
  %v198 = vadd.f32 0.0, %v197
  %v199 = vpop.f32.mrb[0].mxu0
  %200 = vmatprep.mubr.bf16.mxu0 0
  %201 = vmatmul.mubr.bf16.gmra.mrb[0].mxu0 %v110
  %v202 = vpop.f32.mrb[0].mxu0
  %v203 = vadd.f32 0.0, %v202
  %v204 = vpop.f32.mrb[0].mxu0
  %v205 = vpop.f32.mrb[0].mxu0
  %v206 = vadd.f32 0.0, %v205
  %v207 = vpop.f32.mrb[0].mxu0
  %208 = vdwg.mxu0
  %vm209 = vcmask 64512
  %210 = vst.msk [vmem:[%s2] sm:$0xff] %vm209, %v147
  %211 = vst.msk [vmem:[%s2 + $0x8] sm:$0xff] %vm209, %v150
  %212 = vst.msk [vmem:[%s2 + $0x10] sm:$0xff] %vm209, %v155
  %213 = vst.msk [vmem:[%s2 + $0x18] sm:$0xff] %vm209, %v158
  %214 = vst.msk [vmem:[%s2 + $0x20] sm:$0xff] %vm209, %v163
  %215 = vst.msk [vmem:[%s2 + $0x28] sm:$0xff] %vm209, %v166
  %216 = vst.msk [vmem:[%s2 + $0x30] sm:$0xff] %vm209, %v171
  %217 = vst.msk [vmem:[%s2 + $0x38] sm:$0xff] %vm209, %v174
  %218 = vst.msk [vmem:[%s2 + $0x40] sm:$0xff] %vm209, %v179
  %219 = vst.msk [vmem:[%s2 + $0x48] sm:$0xff] %vm209, %v182
  %220 = vst.msk [vmem:[%s2 + $0x50] sm:$0xff] %vm209, %v187
  %221 = vst.msk [vmem:[%s2 + $0x58] sm:$0xff] %vm209, %v190
  %222 = vst.msk [vmem:[%s2 + $0x60] sm:$0xff] %vm209, %v195
  %223 = vst.msk [vmem:[%s2 + $0x68] sm:$0xff] %vm209, %v198
  %224 = vst.msk [vmem:[%s2 + $0x70] sm:$0xff] %vm209, %v203
  %225 = vst.msk [vmem:[%s2 + $0x78] sm:$0xff] %vm209, %v206
  %p226 = scmp.eq.s32.totalorder 0, 0
  // Predicated region
  $region10: #{down_transition_forward.6} parent=0 // pred_check
    %p227 = pneg %p226
  $region11: #{down_transition_forward.6} parent=0 // pred_check_branch
    %229 = sbr.rel (%p227) target = $region13
  $region12: #{down_transition_forward.6} parent=0 // pred_region
    %vm230 = vcmask 57344
    %231 = vst.msk [vmem:[%s3] sm:$0x1] %vm230, 0.0
    %232 = vst.msk [vmem:[%s4] sm:$0x1] %vm230, 0.0
  $region13: #{down_transition_forward.6} parent=0 // pred_fallthru
    _
  %v233 = vld [vmem:[%s3] sm:$0x1]
  %v234 = vsel %vm209, %v147, 0.0
  %v235 = vsel %vm209, %v150, 0.0
  %v236 = vadd.f32 %v234, %v235
  %v237 = vsel %vm209, %v155, 0.0
  %v238 = vadd.f32 %v236, %v237
  %v239 = vsel %vm209, %v158, 0.0
  %v240 = vadd.f32 %v238, %v239
  %v241 = vsel %vm209, %v163, 0.0
  %v242 = vadd.f32 %v240, %v241
  %v243 = vsel %vm209, %v166, 0.0
  %v244 = vadd.f32 %v242, %v243
  %v245 = vsel %vm209, %v171, 0.0
  %v246 = vadd.f32 %v244, %v245
  %v247 = vsel %vm209, %v174, 0.0
  %v248 = vadd.f32 %v246, %v247
  %v249 = vsel %vm209, %v179, 0.0
  %v250 = vadd.f32 %v248, %v249
  %v251 = vsel %vm209, %v182, 0.0
  %v252 = vadd.f32 %v250, %v251
  %v253 = vsel %vm209, %v187, 0.0
  %v254 = vadd.f32 %v252, %v253
  %v255 = vsel %vm209, %v190, 0.0
  %v256 = vadd.f32 %v254, %v255
  %v257 = vsel %vm209, %v195, 0.0
  %v258 = vadd.f32 %v256, %v257
  %v259 = vsel %vm209, %v198, 0.0
  %v260 = vadd.f32 %v258, %v259
  %v261 = vsel %vm209, %v203, 0.0
  %v262 = vadd.f32 %v260, %v261
  %v263 = vsel %vm209, %v206, 0.0
  %v264 = vadd.f32 %v262, %v263
  %v265 = vrot.slane %v264, 4
  %v266 = vadd.f32 %v264, %v265
  %v267 = vrot.slane %v266, 2
  %v268 = vadd.f32 %v266, %v267
  %v269 = vrot.slane %v268, 1
  %v270 = vadd.f32 %v268, %v269
  %v271 = vadd.f32 %v233, %v270
  %vm272 = vcmask 57344
  %273 = vst.msk [vmem:[%s3] sm:$0x1] %vm272, %v271
  %v274 = vld [vmem:[%s4] sm:$0x1]
  %v275 = vmul.f32 %v147, %v147
  %v276 = vmul.f32 %v150, %v150
  %v277 = vmul.f32 %v155, %v155
  %v278 = vmul.f32 %v158, %v158
  %v279 = vmul.f32 %v163, %v163
  %v280 = vmul.f32 %v166, %v166
  %v281 = vmul.f32 %v171, %v171
  %v282 = vmul.f32 %v174, %v174
  %v283 = vmul.f32 %v179, %v179
  %v284 = vmul.f32 %v182, %v182
  %v285 = vmul.f32 %v187, %v187
  %v286 = vmul.f32 %v190, %v190
  %v287 = vmul.f32 %v195, %v195
  %v288 = vmul.f32 %v198, %v198
  %v289 = vmul.f32 %v203, %v203
  %v290 = vmul.f32 %v206, %v206
  %v291 = vsel %vm209, %v275, 0.0
  %v292 = vsel %vm209, %v276, 0.0
  %v293 = vadd.f32 %v291, %v292
  %v294 = vsel %vm209, %v277, 0.0
  %v295 = vadd.f32 %v293, %v294
  %v296 = vsel %vm209, %v278, 0.0
  %v297 = vadd.f32 %v295, %v296
  %v298 = vsel %vm209, %v279, 0.0
  %v299 = vadd.f32 %v297, %v298
  %v300 = vsel %vm209, %v280, 0.0
  %v301 = vadd.f32 %v299, %v300
  %v302 = vsel %vm209, %v281, 0.0
  %v303 = vadd.f32 %v301, %v302
  %v304 = vsel %vm209, %v282, 0.0
  %v305 = vadd.f32 %v303, %v304
  %v306 = vsel %vm209, %v283, 0.0
  %v307 = vadd.f32 %v305, %v306
  %v308 = vsel %vm209, %v284, 0.0
  %v309 = vadd.f32 %v307, %v308
  %v310 = vsel %vm209, %v285, 0.0
  %v311 = vadd.f32 %v309, %v310
  %v312 = vsel %vm209, %v286, 0.0
  %v313 = vadd.f32 %v311, %v312
  %v314 = vsel %vm209, %v287, 0.0
  %v315 = vadd.f32 %v313, %v314
  %v316 = vsel %vm209, %v288, 0.0
  %v317 = vadd.f32 %v315, %v316
  %v318 = vsel %vm209, %v289, 0.0
  %v319 = vadd.f32 %v317, %v318
  %v320 = vsel %vm209, %v290, 0.0
  %v321 = vadd.f32 %v319, %v320
  %v322 = vrot.slane %v321, 4
  %v323 = vadd.f32 %v321, %v322
  %v324 = vrot.slane %v323, 2
  %v325 = vadd.f32 %v323, %v324
  %v326 = vrot.slane %v325, 1
  %v327 = vadd.f32 %v325, %v326
  %v328 = vadd.f32 %v274, %v327
  %329 = vst.msk [vmem:[%s4] sm:$0x1] %vm272, %v328
  // Predicated region
  $region14: #{down_transition_forward.6} parent=0 // pred_check
    _
  $region15: #{down_transition_forward.6} parent=0 // pred_check_branch
    %331 = sbr.rel (0) target = $region17
  $region16: #{down_transition_forward.6} parent=0 // pred_region
    _
  $region17: #{down_transition_forward.6} parent=0 // pred_fallthru
    _
  // Predicated region
  $region18: #{down_transition_forward.6} parent=0 // pred_check
    _
  $region19: #{down_transition_forward.6} parent=0 // pred_check_branch
    %333 = sbr.rel (0) target = $region21
  $region20: #{down_transition_forward.6} parent=0 // pred_region
    _
  $region21: #{down_transition_forward.6} parent=0 // pred_fallthru
    _
  // Predicated region
  $region22: #{down_transition_forward.6} parent=0 // pred_check
    _
  $region23: #{down_transition_forward.6} parent=0 // pred_check_branch
    %335 = sbr.rel (0) target = $region25
  $region24: #{down_transition_forward.6} parent=0 // pred_region
    _
  $region25: #{down_transition_forward.6} parent=0 // pred_fallthru
    _
  // Predicated region
  $region26: #{down_transition_forward.6} parent=0 // pred_check
    _
  $region27: #{down_transition_forward.6} parent=0 // pred_check_branch
    %337 = sbr.rel (0) target = $region29
  $region28: #{down_transition_forward.6} parent=0 // pred_region
    _
  $region29: #{down_transition_forward.6} parent=0 // pred_fallthru
    _
  // Predicated region
  $region30: #{down_transition_forward.6} parent=0 // pred_check
    _
  $region31: #{down_transition_forward.6} parent=0 // pred_check_branch
    %339 = sbr.rel (0) target = $region33
  $region32: #{down_transition_forward.6} parent=0 // pred_region
    _
  $region33: #{down_transition_forward.6} parent=0 // pred_fallthru
    _
  // Predicated region
  $region34: #{down_transition_forward.6} parent=0 // pred_check
    _
  $region35: #{down_transition_forward.6} parent=0 // pred_check_branch
    %341 = sbr.rel (0) target = $region37
  $region36: #{down_transition_forward.6} parent=0 // pred_region
    _
  $region37: #{down_transition_forward.6} parent=0 // pred_fallthru
    _

// kernel: down_transition_forward.7
$region0: #{down_transition_forward.7}
  #allocation0 [shape = 'u32[]', space=smem, size = 0x4, offset = 0x4, fixed_abs, tag = 'smem constant byte address 0x4 - core index']
  #allocation1 [shape = 'u32[144,128]{1,0:T(1,128)}', space=vmem, size = 0x12000, scoped, tag = 'internal scratch']
  %s0 = inlined_call_operand.vmem [shape: f32[8,128], index: 0, kind: input, shape index: {}]
  %s1 = inlined_call_operand.vmem [shape: f32[1,128], index: 1, kind: input, shape index: {}]
  %s2 = inlined_call_operand.vmem [shape: f32[1,128], index: 2, kind: input, shape index: {}]
  %s3 = inlined_call_operand.vmem [shape: f32[1,128], index: 3, kind: input, shape index: {}]
  %s4 = inlined_call_operand.vmem [shape: f32[1,128], index: 4, kind: input, shape index: {}]
  %s5 = inlined_call_operand.vmem [shape: f32[8,128], index: 5, kind: output, shape index: {}]
  %s6 = sld [smem:[#allocation0]]
  $region30: #{down_transition_forward.7} parent=0
    _
  %s8 = ssub.s32 1, %s6
  %s9 = scalar_select 0, %s8, %s6
  // Predicated region
  $region2: #{down_transition_forward.7} parent=0 // pred_check
    _
  $region3: #{down_transition_forward.7} parent=0 // pred_check_branch
    %11 = sbr.rel (0) target = $region5
  $region4: #{down_transition_forward.7} parent=0 // pred_region
    _
  $region5: #{down_transition_forward.7} parent=0 // pred_fallthru
    _
  // Predicated region
  $region6: #{down_transition_forward.7} parent=0 // pred_check
    _
  $region7: #{down_transition_forward.7} parent=0 // pred_check_branch
    %13 = sbr.rel (0) target = $region9
  $region8: #{down_transition_forward.7} parent=0 // pred_region
    _
  $region9: #{down_transition_forward.7} parent=0 // pred_fallthru
    _
  // Predicated region
  $region10: #{down_transition_forward.7} parent=0 // pred_check
    _
  $region11: #{down_transition_forward.7} parent=0 // pred_check_branch
    %15 = sbr.rel (0) target = $region13
  $region12: #{down_transition_forward.7} parent=0 // pred_region
    _
  $region13: #{down_transition_forward.7} parent=0 // pred_fallthru
    _
  // Predicated region
  $region14: #{down_transition_forward.7} parent=0 // pred_check
    _
  $region15: #{down_transition_forward.7} parent=0 // pred_check_branch
    %17 = sbr.rel (0) target = $region17
  $region16: #{down_transition_forward.7} parent=0 // pred_region
    _
  $region17: #{down_transition_forward.7} parent=0 // pred_fallthru
    _
  // Predicated region
  $region18: #{down_transition_forward.7} parent=0 // pred_check
    _
  $region19: #{down_transition_forward.7} parent=0 // pred_check_branch
    %19 = sbr.rel (0) target = $region21
  $region20: #{down_transition_forward.7} parent=0 // pred_region
    _
  $region21: #{down_transition_forward.7} parent=0 // pred_fallthru
    _
  %v20 = vld [vmem:[%s1] sm:$0x1]
  %v21 = vmul.f32 %v20, 0.0078125
  %v22 = vld [vmem:[%s2] sm:$0x1]
  %v23 = vmul.f32 %v22, 0.0078125
  %v24 = vmul.f32 %v21, %v21
  %v25 = vsub.f32 %v23, %v24
  %v26 = vmax.f32 %v25, 0.0
  %v27 = vld [vmem:[%s3] sm:$0x1]
  %v28 = vadd.f32 %v26, 1e-05
  %v29 = vrsqrt.pop %v28
  %v30 = vmul.f32 %v27, %v29
  %v31 = vld [vmem:[%s4] sm:$0x1]
  %v32 = vmul.f32 %v21, %v30
  %v33 = vsub.f32 %v31, %v32
  %v34 = vld [vmem:[%s0] sm:$0xff]
  %v36 = vlaneseq
  %v37 = vshrl.u32 %v36, 7
  %v38 = vsub.s32 0, %v37
  %v39 = vrot.slane %v30, %v38
  %v41 = vmul.f32 %v34, %v39
  %v43 = vlaneseq
  %v44 = vshrl.u32 %v43, 7
  %v45 = vsub.s32 0, %v44
  %v46 = vrot.slane %v33, %v45
  %v48 = vadd.f32 %v41, %v46
  %vm49 = vcmp.gt.f32.partialorder %v48, 0.0
  %v50 = vmul.f32 %v48, 1.442695
  %v51 = vpow.pop %v50
  %v52 = vsub.f32 %v51, 1.0
  %v53 = vsel %vm49, %v48, %v52
  %54 = vst [vmem:[%s5] sm:$0xff] %v53
  // Predicated region
  $region22: #{down_transition_forward.7} parent=0 // pred_check
    _
  $region23: #{down_transition_forward.7} parent=0 // pred_check_branch
    %56 = sbr.rel (0) target = $region25
  $region24: #{down_transition_forward.7} parent=0 // pred_region
    _
  $region25: #{down_transition_forward.7} parent=0 // pred_fallthru
    _
  // Predicated region
  $region26: #{down_transition_forward.7} parent=0 // pred_check
    _
  $region27: #{down_transition_forward.7} parent=0 // pred_check_branch
    %58 = sbr.rel (0) target = $region29
  $region28: #{down_transition_forward.7} parent=0 // pred_region
    _
  $region29: #{down_transition_forward.7} parent=0 // pred_fallthru
    _

// kernel: down_transition_forward.11
$region0: #{down_transition_forward.11}
  #allocation0 [shape = 'u32[]', space=smem, size = 0x4, offset = 0x4, fixed_abs, tag = 'smem constant byte address 0x4 - core index']
  #allocation1 [shape = 'u32[144,128]{1,0:T(1,128)}', space=vmem, size = 0x12000, scoped, tag = 'internal scratch']
  %s0 = inlined_call_operand.vmem [shape: f32[8,128], index: 0, kind: input, shape index: {}]
  %s1 = inlined_call_operand.vmem [shape: f32[1,128], index: 1, kind: input, shape index: {}]
  %s2 = inlined_call_operand.vmem [shape: f32[1,128], index: 2, kind: input, shape index: {}]
  %s3 = inlined_call_operand.vmem [shape: f32[1,128], index: 3, kind: input, shape index: {}]
  %s4 = inlined_call_operand.vmem [shape: f32[1,128], index: 4, kind: input, shape index: {}]
  %s5 = inlined_call_operand.vmem [shape: f32[8,128], index: 5, kind: input, shape index: {}]
  %s6 = inlined_call_operand.vmem [shape: f32[8,128], index: 6, kind: output, shape index: {}]
  %s7 = sld [smem:[#allocation0]]
  $region34: #{down_transition_forward.11} parent=0
    _
  %s9 = ssub.s32 1, %s7
  %s10 = scalar_select 0, %s9, %s7
  // Predicated region
  $region2: #{down_transition_forward.11} parent=0 // pred_check
    _
  $region3: #{down_transition_forward.11} parent=0 // pred_check_branch
    %12 = sbr.rel (0) target = $region5
  $region4: #{down_transition_forward.11} parent=0 // pred_region
    _
  $region5: #{down_transition_forward.11} parent=0 // pred_fallthru
    _
  // Predicated region
  $region6: #{down_transition_forward.11} parent=0 // pred_check
    _
  $region7: #{down_transition_forward.11} parent=0 // pred_check_branch
    %14 = sbr.rel (0) target = $region9
  $region8: #{down_transition_forward.11} parent=0 // pred_region
    _
  $region9: #{down_transition_forward.11} parent=0 // pred_fallthru
    _
  // Predicated region
  $region10: #{down_transition_forward.11} parent=0 // pred_check
    _
  $region11: #{down_transition_forward.11} parent=0 // pred_check_branch
    %16 = sbr.rel (0) target = $region13
  $region12: #{down_transition_forward.11} parent=0 // pred_region
    _
  $region13: #{down_transition_forward.11} parent=0 // pred_fallthru
    _
  // Predicated region
  $region14: #{down_transition_forward.11} parent=0 // pred_check
    _
  $region15: #{down_transition_forward.11} parent=0 // pred_check_branch
    %18 = sbr.rel (0) target = $region17
  $region16: #{down_transition_forward.11} parent=0 // pred_region
    _
  $region17: #{down_transition_forward.11} parent=0 // pred_fallthru
    _
  // Predicated region
  $region18: #{down_transition_forward.11} parent=0 // pred_check
    _
  $region19: #{down_transition_forward.11} parent=0 // pred_check_branch
    %20 = sbr.rel (0) target = $region21
  $region20: #{down_transition_forward.11} parent=0 // pred_region
    _
  $region21: #{down_transition_forward.11} parent=0 // pred_fallthru
    _
  // Predicated region
  $region22: #{down_transition_forward.11} parent=0 // pred_check
    _
  $region23: #{down_transition_forward.11} parent=0 // pred_check_branch
    %22 = sbr.rel (0) target = $region25
  $region24: #{down_transition_forward.11} parent=0 // pred_region
    _
  $region25: #{down_transition_forward.11} parent=0 // pred_fallthru
    _
  %v23 = vld [vmem:[%s1] sm:$0x1]
  %v24 = vmul.f32 %v23, 0.0078125
  %v25 = vld [vmem:[%s2] sm:$0x1]
  %v26 = vmul.f32 %v25, 0.0078125
  %v27 = vmul.f32 %v24, %v24
  %v28 = vsub.f32 %v26, %v27
  %v29 = vmax.f32 %v28, 0.0
  %v30 = vld [vmem:[%s3] sm:$0x1]
  %v31 = vadd.f32 %v29, 1e-05
  %v32 = vrsqrt.pop %v31
  %v33 = vmul.f32 %v30, %v32
  %v34 = vld [vmem:[%s4] sm:$0x1]
  %v35 = vmul.f32 %v24, %v33
  %v36 = vsub.f32 %v34, %v35
  %v37 = vld [vmem:[%s0] sm:$0xff]
  %v39 = vlaneseq
  %v40 = vshrl.u32 %v39, 7
  %v41 = vsub.s32 0, %v40
  %v42 = vrot.slane %v33, %v41
  %v44 = vmul.f32 %v37, %v42
  %v46 = vlaneseq
  %v47 = vshrl.u32 %v46, 7
  %v48 = vsub.s32 0, %v47
  %v49 = vrot.slane %v36, %v48
  %v51 = vadd.f32 %v44, %v49
  %vm52 = vcmp.gt.f32.partialorder %v51, 0.0
  %v53 = vmul.f32 %v51, 1.442695
  %v54 = vpow.pop %v53
  %v55 = vsub.f32 %v54, 1.0
  %v56 = vsel %vm52, %v51, %v55
  %v57 = vld [vmem:[%s5] sm:$0xff]
  %v58 = vadd.f32 %v56, %v57
  %vm59 = vcmp.gt.f32.partialorder %v58, 0.0
  %v60 = vmul.f32 %v58, 1.442695
  %v61 = vpow.pop %v60
  %v62 = vsub.f32 %v61, 1.0
  %v63 = vsel %vm59, %v58, %v62
  %64 = vst [vmem:[%s6] sm:$0xff] %v63
  // Predicated region
  $region26: #{down_transition_forward.11} parent=0 // pred_check
    _
  $region27: #{down_transition_forward.11} parent=0 // pred_check_branch
    %66 = sbr.rel (0) target = $region29
  $region28: #{down_transition_forward.11} parent=0 // pred_region
    _
  $region29: #{down_transition_forward.11} parent=0 // pred_fallthru
    _
  // Predicated region
  $region30: #{down_transition_forward.11} parent=0 // pred_check
    _
  $region31: #{down_transition_forward.11} parent=0 // pred_check_branch
    %68 = sbr.rel (0) target = $region33
  $region32: #{down_transition_forward.11} parent=0 // pred_region
    _
  $region33: #{down_transition_forward.11} parent=0 // pred_fallthru
    _

// kernel: down_transition_forward.8
$region0: #{down_transition_forward.8}
  #allocation0 [shape = 'u32[]', space=smem, size = 0x4, offset = 0x4, fixed_abs, tag = 'smem constant byte address 0x4 - core index']
  #allocation1 [shape = 'u32[144,128]{1,0:T(1,128)}', space=vmem, size = 0x12000, scoped, tag = 'internal scratch']
  %s0 = inlined_call_operand.vmem [shape: bf16[2,8,104,8], index: 0, kind: input, shape index: {}]
  %s1 = inlined_call_operand.vmem [shape: bf16[5,25,8,8], index: 1, kind: input, shape index: {}]
  %s2 = inlined_call_operand.vmem [shape: f32[64,1], index: 2, kind: input, shape index: {}]
  %s3 = inlined_call_operand.vmem [shape: f32[2,4,64,8], index: 3, kind: output, shape index: {0}]
  %s4 = inlined_call_operand.vmem [shape: f32[1,8], index: 4, kind: output, shape index: {1}]
  %s5 = inlined_call_operand.vmem [shape: f32[1,8], index: 5, kind: output, shape index: {2}]
  %6 = xla_tuple %s3, %s4, %s5
  %s7 = sld [smem:[#allocation0]]
  $region73: #{down_transition_forward.8} parent=0
    _
  %s9 = ssub.s32 1, %s7
  %s10 = scalar_select 0, %s9, %s7
  loop: start=0, step=1, limit=42
  $region2: #{down_transition_forward.8} parent=0 // loop_pre_header
    _
  $region3: #{down_transition_forward.8} parent=0 // loop_header
    %s12 = sphi 0, %s16
    %p13 = scmp.ge.s32.totalorder %s12, 42
    %s19 = sphi 0, %s38
    %s20 = sphi 0, %s34
    %s21 = sphi 0, %s30
    %s22 = sphi 0, %s19
    %s23 = sphi 0, %s20
    %s24 = sphi 0, %s21
    %s25 = sphi 0, %s22
    %s26 = sphi 0, %s23
    %s27 = sphi 0, %s24
    %s45 = sphi 0, %s47
    %s48 = sphi 0, %s45
    %s49 = sphi 0, %s48
    %s65 = sphi 0, %s49
    %s71 = sphi 0, %s73
    %s74 = sphi 0, %s71
    %s75 = sphi 0, %s74
    %s91 = sphi 0, %s75
    %s95 = sphi 0, %s95
    %s97 = sphi 0, %s95
    %s98 = sphi 0, %s97
    %s112 = sphi 0, %s98
    %s120 = sphi 0, %s122
    %s123 = sphi 0, %s120
    %s124 = sphi 0, %s123
    %s140 = sphi 0, %s124
    %s144 = sphi 0, %s144
    %s146 = sphi 0, %s144
    %s147 = sphi 0, %s146
    %s161 = sphi 0, %s147
    %s165 = sphi 0, %s165
    %s167 = sphi 0, %s165
    %s168 = sphi 0, %s167
    %s182 = sphi 0, %s168
  $region4: #{down_transition_forward.8} parent=0 // loop_header_branch
    %15 = sbr.rel (%p13) target = $region8
  $region5: #{down_transition_forward.8} parent=0 // loop_body
    %s17 = ssub.s32 %s12, 1
    %s18 = ssub.s32 %s12, 2
    %s28 = sadd.s32 1, %s21
    %p29 = scmp.ge.s32.totalorder %s28, 5
    %s30 = scalar_select %p29, 0, %s28
    %s31 = sadd.s32 1, %s20
    %s32 = scalar_select %p29, %s31, %s20
    %p33 = scmp.ge.s32.totalorder %s32, 4
    %s34 = scalar_select %p33, 0, %s32
    %s35 = sadd.s32 1, %s19
    %s36 = scalar_select %p33, %s35, %s19
    %p37 = scmp.ge.s32.totalorder %s36, 2
    %s38 = scalar_select %p37, 0, %s36
    %s39 = sadd.s32 %s20, %s21
    %s40 = sadd.s32 %s34, %s30
    %s41 = ssub.s32 %s19, %s38
    %s42 = ssub.s32 %s39, %s40
    %s43 = sor.u32 %s41, %s42
    %p44 = scmp.eq.s32.totalorder %s43, 0
    %s46 = sadd.s32 %s45, 1
    %s47 = scalar_select %p44, %s45, %s46
    %p50 = pneg %p44
    %p51 = scmp.eq.s32.totalorder %s12, 39
    %p52 = por %p50, %p51
    %p53 = scmp.ne.s32.totalorder %s45, %s48
    %p54 = scmp.eq.s32.totalorder %s12, 0
    %p55 = por %p53, %p54
    %p56 = scmp.ne.s32.totalorder %s45, %s48
    %p57 = scmp.eq.s32.totalorder %s17, 39
    %p58 = por %p56, %p57
    %p59 = scmp.ne.s32.totalorder %s48, %s49
    %p60 = scmp.eq.s32.totalorder %s17, 0
    %p61 = por %p59, %p60
    %p62 = scmp.ne.s32.totalorder %s48, %s49
    %p63 = scmp.eq.s32.totalorder %s18, 39
    %p64 = por %p62, %p63
    %p66 = scmp.ne.s32.totalorder %s49, %s65
    %p67 = scmp.eq.s32.totalorder %s18, 0
    %p68 = por %p66, %p67
    %s69 = ssub.s32 %s21, %s30
    %p70 = scmp.eq.s32.totalorder %s69, 0
    %s72 = sadd.s32 %s71, 1
    %s73 = scalar_select %p70, %s71, %s72
    %p76 = pneg %p70
    %p77 = scmp.eq.s32.totalorder %s12, 39
    %p78 = por %p76, %p77
    %p79 = scmp.ne.s32.totalorder %s71, %s74
    %p80 = scmp.eq.s32.totalorder %s12, 0
    %p81 = por %p79, %p80
    %p82 = scmp.ne.s32.totalorder %s71, %s74
    %p83 = scmp.eq.s32.totalorder %s17, 39
    %p84 = por %p82, %p83
    %p85 = scmp.ne.s32.totalorder %s74, %s75
    %p86 = scmp.eq.s32.totalorder %s17, 0
    %p87 = por %p85, %p86
    %p88 = scmp.ne.s32.totalorder %s74, %s75
    %p89 = scmp.eq.s32.totalorder %s18, 39
    %p90 = por %p88, %p89
    %p92 = scmp.ne.s32.totalorder %s75, %s91
    %p93 = scmp.eq.s32.totalorder %s18, 0
    %p94 = por %p92, %p93
    %s96 = sadd.s32 %s95, 1
    %p99 = scmp.eq.s32.totalorder %s12, 39
    %p100 = scmp.ne.s32.totalorder %s95, %s97
    %p101 = scmp.eq.s32.totalorder %s12, 0
    %p102 = por %p100, %p101
    %p103 = scmp.ne.s32.totalorder %s95, %s97
    %p104 = scmp.eq.s32.totalorder %s17, 39
    %p105 = por %p103, %p104
    %p106 = scmp.ne.s32.totalorder %s97, %s98
    %p107 = scmp.eq.s32.totalorder %s17, 0
    %p108 = por %p106, %p107
    %p109 = scmp.ne.s32.totalorder %s97, %s98
    %p110 = scmp.eq.s32.totalorder %s18, 39
    %p111 = por %p109, %p110
    %p113 = scmp.ne.s32.totalorder %s98, %s112
    %p114 = scmp.eq.s32.totalorder %s18, 0
    %p115 = por %p113, %p114
    %s116 = ssub.s32 %s19, %s38
    %s117 = ssub.s32 %s20, %s34
    %s118 = sor.u32 %s116, %s117
    %p119 = scmp.eq.s32.totalorder %s118, 0
    %s121 = sadd.s32 %s120, 1
    %s122 = scalar_select %p119, %s120, %s121
    %p125 = pneg %p119
    %p126 = scmp.eq.s32.totalorder %s12, 39
    %p127 = por %p125, %p126
    %p128 = scmp.ne.s32.totalorder %s120, %s123
    %p129 = scmp.eq.s32.totalorder %s12, 0
    %p130 = por %p128, %p129
    %p131 = scmp.ne.s32.totalorder %s120, %s123
    %p132 = scmp.eq.s32.totalorder %s17, 39
    %p133 = por %p131, %p132
    %p134 = scmp.ne.s32.totalorder %s123, %s124
    %p135 = scmp.eq.s32.totalorder %s17, 0
    %p136 = por %p134, %p135
    %p137 = scmp.ne.s32.totalorder %s123, %s124
    %p138 = scmp.eq.s32.totalorder %s18, 39
    %p139 = por %p137, %p138
    %p141 = scmp.ne.s32.totalorder %s124, %s140
    %p142 = scmp.eq.s32.totalorder %s18, 0
    %p143 = por %p141, %p142
    %s145 = sadd.s32 %s144, 1
    %p148 = scmp.eq.s32.totalorder %s12, 39
    %p149 = scmp.ne.s32.totalorder %s144, %s146
    %p150 = scmp.eq.s32.totalorder %s12, 0
    %p151 = por %p149, %p150
    %p152 = scmp.ne.s32.totalorder %s144, %s146
    %p153 = scmp.eq.s32.totalorder %s17, 39
    %p154 = por %p152, %p153
    %p155 = scmp.ne.s32.totalorder %s146, %s147
    %p156 = scmp.eq.s32.totalorder %s17, 0
    %p157 = por %p155, %p156
    %p158 = scmp.ne.s32.totalorder %s146, %s147
    %p159 = scmp.eq.s32.totalorder %s18, 39
    %p160 = por %p158, %p159
    %p162 = scmp.ne.s32.totalorder %s147, %s161
    %p163 = scmp.eq.s32.totalorder %s18, 0
    %p164 = por %p162, %p163
    %s166 = sadd.s32 %s165, 1
    %p169 = scmp.eq.s32.totalorder %s12, 39
    %p170 = scmp.ne.s32.totalorder %s165, %s167
    %p171 = scmp.eq.s32.totalorder %s12, 0
    %p172 = por %p170, %p171
    %p173 = scmp.ne.s32.totalorder %s165, %s167
    %p174 = scmp.eq.s32.totalorder %s17, 39
    %p175 = por %p173, %p174
    %p176 = scmp.ne.s32.totalorder %s167, %s168
    %p177 = scmp.eq.s32.totalorder %s17, 0
    %p178 = por %p176, %p177
    %p179 = scmp.ne.s32.totalorder %s167, %s168
    %p180 = scmp.eq.s32.totalorder %s18, 39
    %p181 = por %p179, %p180
    %p183 = scmp.ne.s32.totalorder %s168, %s182
    %p184 = scmp.eq.s32.totalorder %s18, 0
    %p185 = por %p183, %p184
    %p186 = scmp.le.s32.totalorder 1, %s12
    %p187 = scmp.lt.s32.totalorder %s12, 41
    %p188 = pnand %p186, %p187
    %p189 = pneg %p188
    // Predicated region
    $region9: #{down_transition_forward.8} parent=5 // pred_check
      _
    $region10: #{down_transition_forward.8} parent=5 // pred_check_branch
      %191 = sbr.rel (%p188) target = $region12
    $region11: #{down_transition_forward.8} parent=5 // pred_region
      %s192 = ssub.s32 %s12, 1
      // Predicated region
      $region13: #{down_transition_forward.8} parent=11 // pred_check
        %p193 = pneg %p108
      $region14: #{down_transition_forward.8} parent=11 // pred_check_branch
        %195 = sbr.rel (%p193) target = $region16
      $region15: #{down_transition_forward.8} parent=11 // pred_region
        _
      $region16: #{down_transition_forward.8} parent=11 // pred_fallthru
        _
    $region12: #{down_transition_forward.8} parent=5 // pred_fallthru
      _
    %p196 = scmp.lt.s32.totalorder %s12, 40
    // Predicated region
    $region17: #{down_transition_forward.8} parent=5 // pred_check
      %p197 = pneg %p196
    $region18: #{down_transition_forward.8} parent=5 // pred_check_branch
      %199 = sbr.rel (%p197) target = $region20
    $region19: #{down_transition_forward.8} parent=5 // pred_region
      // Predicated region
      $region21: #{down_transition_forward.8} parent=19 // pred_check
        %p200 = pneg %p55
      $region22: #{down_transition_forward.8} parent=19 // pred_check_branch
        %202 = sbr.rel (%p200) target = $region24
      $region23: #{down_transition_forward.8} parent=19 // pred_region
        %s203 = sadd.s32 %s20, %s21
        %p204 = scmp.lt.s32.totalorder %s19, 1
        %s205 = scalar_select %p204, %s19, 1
        %p206 = scmp.lt.s32.totalorder %s203, 7
        %s207 = scalar_select %p206, %s203, 7
        %s208 = smul.addr %s207, 13
        %s209 = smul.addr %s205, 104
        %s210 = sadd.s32 %s208, %s209
        %s211 = smul.addr %s210, 4
        %s212 = scalar_lea.vmem %s0, %s211
        %s213 = sadd.s32 %s20, %s21
      $region24: #{down_transition_forward.8} parent=19 // pred_fallthru
        _
      // Predicated region
      $region25: #{down_transition_forward.8} parent=19 // pred_check
        %p214 = pneg %p81
      $region26: #{down_transition_forward.8} parent=19 // pred_check_branch
        %216 = sbr.rel (%p214) target = $region28
      $region27: #{down_transition_forward.8} parent=19 // pred_region
        %p217 = scmp.lt.s32.totalorder %s21, 4
        %s218 = scalar_select %p217, %s21, 4
        %s219 = smul.addr %s218, 25
        %s220 = smul.addr %s219, 4
        %s221 = scalar_lea.vmem %s1, %s220
      $region28: #{down_transition_forward.8} parent=19 // pred_fallthru
        _
    $region20: #{down_transition_forward.8} parent=5 // pred_fallthru
      _
    %p222 = scmp.le.s32.totalorder 1, %s12
    %p223 = scmp.lt.s32.totalorder %s12, 41
    %p224 = pnand %p222, %p223
    %p225 = pneg %p224
    // Predicated region
    $region29: #{down_transition_forward.8} parent=5 // pred_check
      _
    $region30: #{down_transition_forward.8} parent=5 // pred_check_branch
      %227 = sbr.rel (%p224) target = $region32
    $region31: #{down_transition_forward.8} parent=5 // pred_region
      %s228 = ssub.s32 %s12, 1
      %s229 = sadd.s32 %s23, %s24
      %p230 = scmp.lt.s32.totalorder %s22, 1
      %s231 = scalar_select %p230, %s22, 1
      %p232 = scmp.lt.s32.totalorder %s229, 7
      %s233 = scalar_select %p232, %s229, 7
      %s234 = smul.addr %s233, 13
      %s235 = smul.addr %s231, 104
      %s236 = sadd.s32 %s234, %s235
      %s237 = smul.addr %s236, 4
      %s238 = scalar_lea.vmem %s0, %s237
      %p239 = pneg %p61
      %p240 = pneg %p58
      %p241 = scmp.lt.s32.totalorder %s24, 4
      %s242 = scalar_select %p241, %s24, 4
      %s243 = smul.addr %s242, 25
      %s244 = smul.addr %s243, 4
      %s245 = scalar_lea.vmem %s1, %s244
      %p246 = pneg %p87
      %p247 = pneg %p84
      %p248 = pneg %p108
      %p249 = pneg %p105
      %p250 = pneg %p136
      %p251 = pneg %p133
      %p252 = scmp.lt.s32.totalorder %s22, 1
      %s253 = scalar_select %p252, %s22, 1
      %p254 = scmp.lt.s32.totalorder %s23, 3
      %s255 = scalar_select %p254, %s23, 3
      %s256 = smul.addr %s255, 8
      %s257 = smul.addr %s253, 32
      %s258 = sadd.s32 %s256, %s257
      %s259 = smul.addr %s258, 8
      %s260 = scalar_lea.vmem %s3, %s259
      %p261 = pneg %p157
      %p262 = pneg %p154
      %p263 = pneg %p178
      %p264 = pneg %p175
      %s265 = sadd.s32 %s23, %s24
      %p266 = scmp.lt.s32.totalorder %s22, 1
      %s267 = scalar_select %p266, %s22, 1
      %p268 = scmp.lt.s32.totalorder %s265, 7
      %s269 = scalar_select %p268, %s265, 7
      %s270 = smul.addr %s269, 13
      %s271 = smul.addr %s267, 104
      %s272 = sadd.s32 %s270, %s271
      %s273 = smul.addr %s272, 4
      %s274 = scalar_lea.vmem %s0, %s273
      %s275 = sadd.s32 %s23, %s24
      %p276 = scmp.lt.s32.totalorder %s24, 4
      %s277 = scalar_select %p276, %s24, 4
      %s278 = smul.addr %s277, 25
      %s279 = smul.addr %s278, 4
      %s280 = scalar_lea.vmem %s1, %s279
      %p281 = scmp.lt.s32.totalorder %s22, 1
      %s282 = scalar_select %p281, %s22, 1
      %p283 = scmp.lt.s32.totalorder %s23, 3
      %s284 = scalar_select %p283, %s23, 3
      %s285 = smul.addr %s284, 8
      %s286 = smul.addr %s282, 32
      %s287 = sadd.s32 %s285, %s286
      %s288 = smul.addr %s287, 8
      %s289 = scalar_lea.vmem %s3, %s288
      %p291 = scmp.eq.s32.totalorder %s22, 0
      %p292 = scmp.eq.s32.totalorder %s23, 0
      %p293 = pnand %p291, %p292
      %p294 = pneg %p293
      %p295 = scmp.eq.s32.totalorder %s24, 0
      %p296 = pnand %p294, %p295
      %p297 = pneg %p296
      // Predicated region
      $region33: #{down_transition_forward.8} parent=31 // pred_check
        _
      $region34: #{down_transition_forward.8} parent=31 // pred_check_branch
        %299 = sbr.rel (%p296) target = $region36
      $region35: #{down_transition_forward.8} parent=31 // pred_region
        %vm300 = vcmask 57344
        %301 = vst.msk [vmem:[%s4] sm:$0x1] %vm300, 0.0
        %302 = vst.msk [vmem:[%s5] sm:$0x1] %vm300, 0.0
      $region36: #{down_transition_forward.8} parent=31 // pred_fallthru
        _
      // Predicated region
      $region37: #{down_transition_forward.8} parent=31 // pred_check
        %p303 = pneg %p295
      $region38: #{down_transition_forward.8} parent=31 // pred_check_branch
        %305 = sbr.rel (%p303) target = $region40
      $region39: #{down_transition_forward.8} parent=31 // pred_region
        %vm306 = vcmask 64512
        %307 = vst.msk [vmem:[%s289] sm:$0xff] %vm306, 0.0
        %308 = vst.msk [vmem:[%s289 + $0x8] sm:$0xff] %vm306, 0.0
        %309 = vst.msk [vmem:[%s289 + $0x10] sm:$0xff] %vm306, 0.0
        %310 = vst.msk [vmem:[%s289 + $0x18] sm:$0xff] %vm306, 0.0
        %311 = vst.msk [vmem:[%s289 + $0x20] sm:$0xff] %vm306, 0.0
        %312 = vst.msk [vmem:[%s289 + $0x28] sm:$0xff] %vm306, 0.0
        %313 = vst.msk [vmem:[%s289 + $0x30] sm:$0xff] %vm306, 0.0
        %314 = vst.msk [vmem:[%s289 + $0x38] sm:$0xff] %vm306, 0.0
      $region40: #{down_transition_forward.8} parent=31 // pred_fallthru
        _
      %v315 = vld [vmem:[%s274] sm:$0xf]
      %v316 = vld [vmem:[%s274 + $0x4] sm:$0xf]
      %v317 = vld [vmem:[%s274 + $0x8] sm:$0xf]
      %v318 = vld [vmem:[%s274 + $0xc] sm:$0xf]
      %v319 = vld [vmem:[%s274 + $0x10] sm:$0xf]
      %v320 = vld [vmem:[%s274 + $0x14] sm:$0xf]
      %v321 = vld [vmem:[%s274 + $0x18] sm:$0xf]
      %v322 = vld [vmem:[%s274 + $0x1c] sm:$0xf]
      %v323 = vld [vmem:[%s280] sm:$0xf]
      %v324 = vld [vmem:[%s274 + $0x20] sm:$0x1]
      %s325 = scalar_lea.vmem %s280, 4
      %v326 = vld [vmem:[%s325] sm:$0xf]
      %v336 = vunpack.c.l.b16 %v315
      %v337 = vunpack.c.l.b16 %v316
      %v338 = vunpack.c.l.b16 %v317
      %v339 = vunpack.c.l.b16 %v318
      %v340 = vunpack.c.l.b16 %v319
      %v341 = vunpack.c.l.b16 %v320
      %v342 = vunpack.c.l.b16 %v321
      %v343 = vunpack.c.l.b16 %v322
      %v344 = vunpack.c.l.b16 %v324
      %v345 = vpack.c.b16 %v337, %v336
      %v346 = vpack.c.b16 %v339, %v338
      %v347 = vpack.c.b16 %v341, %v340
      %v348 = vpack.c.b16 %v343, %v342
      %v349 = vpack.c.b16 %v344, %v344
      %vm350 = vsmask.f32 7424
      %v352 = vshrl.u32 %v345, 16
      %v354 = vshll.u32 %v345, 16
      %v356 = vrot.slane %v354, 1
      %v357 = vor.u32 %v352, %v356
      %v359 = vshll.u32 %v346, 16
      %v361 = vrot.slane %v359, 1
      %v362 = vsel %vm350, %v357, %v361
      %v363 = vshrl.u32 %v346, 16
      %v365 = vor.u32 %v363, %v361
      %v367 = vshll.u32 %v347, 16
      %v369 = vrot.slane %v367, 1
      %v370 = vsel %vm350, %v365, %v369
      %v371 = vshrl.u32 %v347, 16
      %v373 = vor.u32 %v371, %v369
      %v375 = vshll.u32 %v348, 16
      %v377 = vrot.slane %v375, 1
      %v378 = vsel %vm350, %v373, %v377
      %v379 = vshrl.u32 %v348, 16
      %v381 = vor.u32 %v379, %v377
      %v383 = vshll.u32 %v349, 16
      %v385 = vrot.slane %v383, 1
      %v386 = vsel %vm350, %v381, %v385
      %vm387 = vcmask 64512
      %v389 = vsel %vm387, %v362, 0
      %v392 = vsel %vm387, %v370, 0
      %v395 = vsel %vm387, %v378, 0
      %v398 = vsel %vm387, %v386, 0
      %vm400 = vcmask 1043456
      %v402 = vsel %vm400, %v326, 0
      %404 = vmatprep.subr.bf16.mxu0 0
      %405 = vmatpush1.bf16.msra.mxu0 %v402
      %406 = vmatprep.subr.bf16.mxu0 0
      %407 = vmatpush1.bf16.msra.mxu0 0
      %408 = vmatprep.subr.bf16.mxu0 0
      %409 = vmatpush1.bf16.msra.mxu0 0
      %410 = vmatprep.subr.bf16.mxu0 0
      %411 = vmatpush1.bf16.msra.mxu0 0
      %412 = vmatprep.subr.bf16.mxu0 0
      %413 = vmatpush1.bf16.msra.mxu0 0
      %414 = vmatprep.subr.bf16.mxu0 0
      %415 = vmatpush1.bf16.msra.mxu0 0
      %416 = vmatprep.subr.bf16.mxu0 0
      %417 = vmatpush1.bf16.msra.mxu0 0
      %418 = vmatprep.subr.bf16.mxu0 0
      %419 = vmatpush1.bf16.msra.mxu0 0
      %420 = vmatprep.subr.bf16.mxu0 0
      %421 = vmatpush1.bf16.msra.mxu0 0
      %422 = vmatprep.subr.bf16.mxu0 0
      %423 = vmatpush1.bf16.msra.mxu0 0
      %424 = vmatprep.subr.bf16.mxu0 0
      %425 = vmatpush1.bf16.msra.mxu0 0
      %426 = vmatprep.subr.bf16.mxu0 0
      %427 = vmatpush1.bf16.msra.mxu0 0
      %428 = vmatprep.subr.bf16.mxu0 0
      %429 = vmatpush1.bf16.msra.mxu0 0
      %430 = vmatprep.subr.bf16.mxu0 0
      %431 = vmatpush1.bf16.msra.mxu0 0
      %432 = vmatprep.subr.bf16.mxu0 0
      %433 = vmatpush1.bf16.msra.mxu0 0
      %434 = vmatprep.subr.bf16.mxu0 0
      %435 = vmatpush1.bf16.msra.mxu0 0
      %436 = vmatprep.mubr.bf16.mxu0 0
      %437 = vmatmul.mubr.bf16.gmra.mrb[0].mxu0 %v389
      %v438 = vpop.f32.mrb[0].mxu0
      %v439 = vadd.f32 0.0, %v438
      %v440 = vpop.f32.mrb[0].mxu0
      %v441 = vpop.f32.mrb[0].mxu0
      %v442 = vadd.f32 0.0, %v441
      %v443 = vpop.f32.mrb[0].mxu0
      %444 = vmatprep.mubr.bf16.mxu0 0
      %445 = vmatmul.mubr.bf16.gmra.mrb[0].mxu0 %v392
      %v446 = vpop.f32.mrb[0].mxu0
      %v447 = vadd.f32 0.0, %v446
      %v448 = vpop.f32.mrb[0].mxu0
      %v449 = vpop.f32.mrb[0].mxu0
      %v450 = vadd.f32 0.0, %v449
      %v451 = vpop.f32.mrb[0].mxu0
      %452 = vmatprep.mubr.bf16.mxu0 0
      %453 = vmatmul.mubr.bf16.gmra.mrb[0].mxu0 %v395
      %v454 = vpop.f32.mrb[0].mxu0
      %v455 = vadd.f32 0.0, %v454
      %v456 = vpop.f32.mrb[0].mxu0
      %v457 = vpop.f32.mrb[0].mxu0
      %v458 = vadd.f32 0.0, %v457
      %v459 = vpop.f32.mrb[0].mxu0
      %460 = vmatprep.mubr.bf16.mxu0 0
      %461 = vmatmul.mubr.bf16.gmra.mrb[0].mxu0 %v398
      %v462 = vpop.f32.mrb[0].mxu0
      %v463 = vadd.f32 0.0, %v462
      %v464 = vpop.f32.mrb[0].mxu0
      %v465 = vpop.f32.mrb[0].mxu0
      %v466 = vadd.f32 0.0, %v465
      %v467 = vpop.f32.mrb[0].mxu0
      %468 = vdwg.mxu0
      %v469 = vsel %vm387, %v345, 0
      %v471 = vsel %vm387, %v346, 0
      %v473 = vsel %vm387, %v347, 0
      %v475 = vsel %vm387, %v348, 0
      %v478 = vsel %vm400, %v323, 0
      %480 = vmatprep.subr.bf16.mxu0 0
      %481 = vmatpush1.bf16.msra.mxu0 %v478
      %482 = vmatprep.subr.bf16.mxu0 0
      %483 = vmatpush1.bf16.msra.mxu0 0
      %484 = vmatprep.subr.bf16.mxu0 0
      %485 = vmatpush1.bf16.msra.mxu0 0
      %486 = vmatprep.subr.bf16.mxu0 0
      %487 = vmatpush1.bf16.msra.mxu0 0
      %488 = vmatprep.subr.bf16.mxu0 0
      %489 = vmatpush1.bf16.msra.mxu0 0
      %490 = vmatprep.subr.bf16.mxu0 0
      %491 = vmatpush1.bf16.msra.mxu0 0
      %492 = vmatprep.subr.bf16.mxu0 0
      %493 = vmatpush1.bf16.msra.mxu0 0
      %494 = vmatprep.subr.bf16.mxu0 0
      %495 = vmatpush1.bf16.msra.mxu0 0
      %496 = vmatprep.subr.bf16.mxu0 0
      %497 = vmatpush1.bf16.msra.mxu0 0
      %498 = vmatprep.subr.bf16.mxu0 0
      %499 = vmatpush1.bf16.msra.mxu0 0
      %500 = vmatprep.subr.bf16.mxu0 0
      %501 = vmatpush1.bf16.msra.mxu0 0
      %502 = vmatprep.subr.bf16.mxu0 0
      %503 = vmatpush1.bf16.msra.mxu0 0
      %504 = vmatprep.subr.bf16.mxu0 0
      %505 = vmatpush1.bf16.msra.mxu0 0
      %506 = vmatprep.subr.bf16.mxu0 0
      %507 = vmatpush1.bf16.msra.mxu0 0
      %508 = vmatprep.subr.bf16.mxu0 0
      %509 = vmatpush1.bf16.msra.mxu0 0
      %510 = vmatprep.subr.bf16.mxu0 0
      %511 = vmatpush1.bf16.msra.mxu0 0
      %512 = vmatprep.mubr.bf16.mxu0 0
      %513 = vmatmul.mubr.bf16.gmra.mrb[0].mxu0 %v469
      %v514 = vpop.f32.mrb[0].mxu0
      %v515 = vadd.f32 %v439, %v514
      %v516 = vpop.f32.mrb[0].mxu0
      %v517 = vpop.f32.mrb[0].mxu0
      %v518 = vadd.f32 %v442, %v517
      %v519 = vpop.f32.mrb[0].mxu0
      %520 = vmatprep.mubr.bf16.mxu0 0
      %521 = vmatmul.mubr.bf16.gmra.mrb[0].mxu0 %v471
      %v522 = vpop.f32.mrb[0].mxu0
      %v523 = vadd.f32 %v447, %v522
      %v524 = vpop.f32.mrb[0].mxu0
      %v525 = vpop.f32.mrb[0].mxu0
      %v526 = vadd.f32 %v450, %v525
      %v527 = vpop.f32.mrb[0].mxu0
      %528 = vmatprep.mubr.bf16.mxu0 0
      %529 = vmatmul.mubr.bf16.gmra.mrb[0].mxu0 %v473
      %v530 = vpop.f32.mrb[0].mxu0
      %v531 = vadd.f32 %v455, %v530
      %v532 = vpop.f32.mrb[0].mxu0
      %v533 = vpop.f32.mrb[0].mxu0
      %v534 = vadd.f32 %v458, %v533
      %v535 = vpop.f32.mrb[0].mxu0
      %536 = vmatprep.mubr.bf16.mxu0 0
      %537 = vmatmul.mubr.bf16.gmra.mrb[0].mxu0 %v475
      %v538 = vpop.f32.mrb[0].mxu0
      %v539 = vadd.f32 %v463, %v538
      %v540 = vpop.f32.mrb[0].mxu0
      %v541 = vpop.f32.mrb[0].mxu0
      %v542 = vadd.f32 %v466, %v541
      %v543 = vpop.f32.mrb[0].mxu0
      %544 = vdwg.mxu0
      %v545 = vld [vmem:[%s274] sm:$0xe]
      %s546 = scalar_lea.vmem %s280, 8
      %v547 = vld [vmem:[%s546] sm:$0xf]
      %v549 = vunpack.c.l.b16 %v545
      %v550 = vpack.c.b16 %v337, %v549
      %vm551 = vcmask 1046528
      %v552 = vrot.slane %v550, 1
      %v553 = vrot.slane %v346, 1
      %v554 = vsel %vm551, %v552, %v553
      %v555 = vrot.slane %v347, 1
      %v556 = vsel %vm551, %v553, %v555
      %v557 = vrot.slane %v348, 1
      %v558 = vsel %vm551, %v555, %v557
      %v559 = vrot.slane %v349, 1
      %v560 = vsel %vm551, %v557, %v559
      %v562 = vsel %vm387, %v554, 0
      %v565 = vsel %vm387, %v556, 0
      %v568 = vsel %vm387, %v558, 0
      %v571 = vsel %vm387, %v560, 0
      %v574 = vsel %vm400, %v547, 0
      %576 = vmatprep.subr.bf16.mxu0 0
      %577 = vmatpush1.bf16.msra.mxu0 %v574
      %578 = vmatprep.subr.bf16.mxu0 0
      %579 = vmatpush1.bf16.msra.mxu0 0
      %580 = vmatprep.subr.bf16.mxu0 0
      %581 = vmatpush1.bf16.msra.mxu0 0
      %582 = vmatprep.subr.bf16.mxu0 0
      %583 = vmatpush1.bf16.msra.mxu0 0
      %584 = vmatprep.subr.bf16.mxu0 0
      %585 = vmatpush1.bf16.msra.mxu0 0
      %586 = vmatprep.subr.bf16.mxu0 0
      %587 = vmatpush1.bf16.msra.mxu0 0
      %588 = vmatprep.subr.bf16.mxu0 0
      %589 = vmatpush1.bf16.msra.mxu0 0
      %590 = vmatprep.subr.bf16.mxu0 0
      %591 = vmatpush1.bf16.msra.mxu0 0
      %592 = vmatprep.subr.bf16.mxu0 0
      %593 = vmatpush1.bf16.msra.mxu0 0
      %594 = vmatprep.subr.bf16.mxu0 0
      %595 = vmatpush1.bf16.msra.mxu0 0
      %596 = vmatprep.subr.bf16.mxu0 0
      %597 = vmatpush1.bf16.msra.mxu0 0
      %598 = vmatprep.subr.bf16.mxu0 0
      %599 = vmatpush1.bf16.msra.mxu0 0
      %600 = vmatprep.subr.bf16.mxu0 0
      %601 = vmatpush1.bf16.msra.mxu0 0
      %602 = vmatprep.subr.bf16.mxu0 0
      %603 = vmatpush1.bf16.msra.mxu0 0
      %604 = vmatprep.subr.bf16.mxu0 0
      %605 = vmatpush1.bf16.msra.mxu0 0
      %606 = vmatprep.subr.bf16.mxu0 0
      %607 = vmatpush1.bf16.msra.mxu0 0
      %608 = vmatprep.mubr.bf16.mxu0 0
      %609 = vmatmul.mubr.bf16.gmra.mrb[0].mxu0 %v562
      %v610 = vpop.f32.mrb[0].mxu0
      %v611 = vadd.f32 0.0, %v610
      %v612 = vpop.f32.mrb[0].mxu0
      %v613 = vpop.f32.mrb[0].mxu0
      %v614 = vadd.f32 0.0, %v613
      %v615 = vpop.f32.mrb[0].mxu0
      %616 = vmatprep.mubr.bf16.mxu0 0
      %617 = vmatmul.mubr.bf16.gmra.mrb[0].mxu0 %v565
      %v618 = vpop.f32.mrb[0].mxu0
      %v619 = vadd.f32 0.0, %v618
      %v620 = vpop.f32.mrb[0].mxu0
      %v621 = vpop.f32.mrb[0].mxu0
      %v622 = vadd.f32 0.0, %v621
      %v623 = vpop.f32.mrb[0].mxu0
      %624 = vmatprep.mubr.bf16.mxu0 0
      %625 = vmatmul.mubr.bf16.gmra.mrb[0].mxu0 %v568
      %v626 = vpop.f32.mrb[0].mxu0
      %v627 = vadd.f32 0.0, %v626
      %v628 = vpop.f32.mrb[0].mxu0
      %v629 = vpop.f32.mrb[0].mxu0
      %v630 = vadd.f32 0.0, %v629
      %v631 = vpop.f32.mrb[0].mxu0
      %632 = vmatprep.mubr.bf16.mxu0 0
      %633 = vmatmul.mubr.bf16.gmra.mrb[0].mxu0 %v571
      %v634 = vpop.f32.mrb[0].mxu0
      %v635 = vadd.f32 0.0, %v634
      %v636 = vpop.f32.mrb[0].mxu0
      %v637 = vpop.f32.mrb[0].mxu0
      %v638 = vadd.f32 0.0, %v637
      %v639 = vpop.f32.mrb[0].mxu0
      %640 = vdwg.mxu0
      %v641 = vadd.f32 %v515, %v611
      %v642 = vadd.f32 %v518, %v614
      %v643 = vadd.f32 %v523, %v619
      %v644 = vadd.f32 %v526, %v622
      %v645 = vadd.f32 %v531, %v627
      %v646 = vadd.f32 %v534, %v630
      %v647 = vadd.f32 %v539, %v635
      %v648 = vadd.f32 %v542, %v638
      %v649 = vld [vmem:[%s274 + $0x20] sm:$0x3]
      %s650 = scalar_lea.vmem %s280, 12
      %v651 = vld [vmem:[%s650] sm:$0xf]
      %v653 = vunpack.c.l.b16 %v649
      %v654 = vpack.c.b16 %v653, %v653
      %vm655 = vsmask.f32 6400
      %v657 = vshrl.u32 %v550, 16
      %v659 = vrot.slane %v657, 1
      %v660 = vshll.u32 %v550, 16
      %v662 = vrot.slane %v660, 2
      %v663 = vor.u32 %v659, %v662
      %v664 = vrot.slane %v363, 1
      %v665 = vrot.slane %v359, 2
      %v666 = vor.u32 %v664, %v665
      %v667 = vsel %vm655, %v663, %v666
      %v668 = vrot.slane %v371, 1
      %v669 = vrot.slane %v367, 2
      %v670 = vor.u32 %v668, %v669
      %v671 = vsel %vm655, %v666, %v670
      %v672 = vrot.slane %v379, 1
      %v673 = vrot.slane %v375, 2
      %v674 = vor.u32 %v672, %v673
      %v675 = vsel %vm655, %v670, %v674
      %v677 = vshrl.u32 %v654, 16
      %v679 = vrot.slane %v677, 1
      %v680 = vshll.u32 %v654, 16
      %v682 = vrot.slane %v680, 2
      %v683 = vor.u32 %v679, %v682
      %v684 = vsel %vm655, %v674, %v683
      %v686 = vsel %vm387, %v667, 0
      %v689 = vsel %vm387, %v671, 0
      %v692 = vsel %vm387, %v675, 0
      %v695 = vsel %vm387, %v684, 0
      %v698 = vsel %vm400, %v651, 0
      %700 = vmatprep.subr.bf16.mxu0 0
      %701 = vmatpush1.bf16.msra.mxu0 %v698
      %702 = vmatprep.subr.bf16.mxu0 0
      %703 = vmatpush1.bf16.msra.mxu0 0
      %704 = vmatprep.subr.bf16.mxu0 0
      %705 = vmatpush1.bf16.msra.mxu0 0
      %706 = vmatprep.subr.bf16.mxu0 0
      %707 = vmatpush1.bf16.msra.mxu0 0
      %708 = vmatprep.subr.bf16.mxu0 0
      %709 = vmatpush1.bf16.msra.mxu0 0
      %710 = vmatprep.subr.bf16.mxu0 0
      %711 = vmatpush1.bf16.msra.mxu0 0
      %712 = vmatprep.subr.bf16.mxu0 0
      %713 = vmatpush1.bf16.msra.mxu0 0
      %714 = vmatprep.subr.bf16.mxu0 0
      %715 = vmatpush1.bf16.msra.mxu0 0
      %716 = vmatprep.subr.bf16.mxu0 0
      %717 = vmatpush1.bf16.msra.mxu0 0
      %718 = vmatprep.subr.bf16.mxu0 0
      %719 = vmatpush1.bf16.msra.mxu0 0
      %720 = vmatprep.subr.bf16.mxu0 0
      %721 = vmatpush1.bf16.msra.mxu0 0
      %722 = vmatprep.subr.bf16.mxu0 0
      %723 = vmatpush1.bf16.msra.mxu0 0
      %724 = vmatprep.subr.bf16.mxu0 0
      %725 = vmatpush1.bf16.msra.mxu0 0
      %726 = vmatprep.subr.bf16.mxu0 0
      %727 = vmatpush1.bf16.msra.mxu0 0
      %728 = vmatprep.subr.bf16.mxu0 0
      %729 = vmatpush1.bf16.msra.mxu0 0
      %730 = vmatprep.subr.bf16.mxu0 0
      %731 = vmatpush1.bf16.msra.mxu0 0
      %732 = vmatprep.mubr.bf16.mxu0 0
      %733 = vmatmul.mubr.bf16.gmra.mrb[0].mxu0 %v686
      %v734 = vpop.f32.mrb[0].mxu0
      %v735 = vadd.f32 0.0, %v734
      %v736 = vpop.f32.mrb[0].mxu0
      %v737 = vpop.f32.mrb[0].mxu0
      %v738 = vadd.f32 0.0, %v737
      %v739 = vpop.f32.mrb[0].mxu0
      %740 = vmatprep.mubr.bf16.mxu0 0
      %741 = vmatmul.mubr.bf16.gmra.mrb[0].mxu0 %v689
      %v742 = vpop.f32.mrb[0].mxu0
      %v743 = vadd.f32 0.0, %v742
      %v744 = vpop.f32.mrb[0].mxu0
      %v745 = vpop.f32.mrb[0].mxu0
      %v746 = vadd.f32 0.0, %v745
      %v747 = vpop.f32.mrb[0].mxu0
      %748 = vmatprep.mubr.bf16.mxu0 0
      %749 = vmatmul.mubr.bf16.gmra.mrb[0].mxu0 %v692
      %v750 = vpop.f32.mrb[0].mxu0
      %v751 = vadd.f32 0.0, %v750
      %v752 = vpop.f32.mrb[0].mxu0
      %v753 = vpop.f32.mrb[0].mxu0
      %v754 = vadd.f32 0.0, %v753
      %v755 = vpop.f32.mrb[0].mxu0
      %756 = vmatprep.mubr.bf16.mxu0 0
      %757 = vmatmul.mubr.bf16.gmra.mrb[0].mxu0 %v695
      %v758 = vpop.f32.mrb[0].mxu0
      %v759 = vadd.f32 0.0, %v758
      %v760 = vpop.f32.mrb[0].mxu0
      %v761 = vpop.f32.mrb[0].mxu0
      %v762 = vadd.f32 0.0, %v761
      %v763 = vpop.f32.mrb[0].mxu0
      %764 = vdwg.mxu0
      %v765 = vadd.f32 %v641, %v735
      %v766 = vadd.f32 %v642, %v738
      %v767 = vadd.f32 %v643, %v743
      %v768 = vadd.f32 %v644, %v746
      %v769 = vadd.f32 %v645, %v751
      %v770 = vadd.f32 %v646, %v754
      %v771 = vadd.f32 %v647, %v759
      %v772 = vadd.f32 %v648, %v762
      %v773 = vld [vmem:[%s274] sm:$0xc]
      %s774 = scalar_lea.vmem %s280, 16
      %v775 = vld [vmem:[%s774] sm:$0xf]
      %v777 = vunpack.c.l.b16 %v773
      %v778 = vpack.c.b16 %v337, %v777
      %vm779 = vcmask 1045504
      %v780 = vrot.slane %v778, 2
      %v781 = vrot.slane %v346, 2
      %v782 = vsel %vm779, %v780, %v781
      %v783 = vrot.slane %v347, 2
      %v784 = vsel %vm779, %v781, %v783
      %v785 = vrot.slane %v348, 2
      %v786 = vsel %vm779, %v783, %v785
      %v787 = vrot.slane %v654, 2
      %v788 = vsel %vm779, %v785, %v787
      %v790 = vsel %vm387, %v782, 0
      %v793 = vsel %vm387, %v784, 0
      %v796 = vsel %vm387, %v786, 0
      %v799 = vsel %vm387, %v788, 0
      %v802 = vsel %vm400, %v775, 0
      %804 = vmatprep.subr.bf16.mxu0 0
      %805 = vmatpush1.bf16.msra.mxu0 %v802
      %806 = vmatprep.subr.bf16.mxu0 0
      %807 = vmatpush1.bf16.msra.mxu0 0
      %808 = vmatprep.subr.bf16.mxu0 0
      %809 = vmatpush1.bf16.msra.mxu0 0
      %810 = vmatprep.subr.bf16.mxu0 0
      %811 = vmatpush1.bf16.msra.mxu0 0
      %812 = vmatprep.subr.bf16.mxu0 0
      %813 = vmatpush1.bf16.msra.mxu0 0
      %814 = vmatprep.subr.bf16.mxu0 0
      %815 = vmatpush1.bf16.msra.mxu0 0
      %816 = vmatprep.subr.bf16.mxu0 0
      %817 = vmatpush1.bf16.msra.mxu0 0
      %818 = vmatprep.subr.bf16.mxu0 0
      %819 = vmatpush1.bf16.msra.mxu0 0
      %820 = vmatprep.subr.bf16.mxu0 0
      %821 = vmatpush1.bf16.msra.mxu0 0
      %822 = vmatprep.subr.bf16.mxu0 0
      %823 = vmatpush1.bf16.msra.mxu0 0
      %824 = vmatprep.subr.bf16.mxu0 0
      %825 = vmatpush1.bf16.msra.mxu0 0
      %826 = vmatprep.subr.bf16.mxu0 0
      %827 = vmatpush1.bf16.msra.mxu0 0
      %828 = vmatprep.subr.bf16.mxu0 0
      %829 = vmatpush1.bf16.msra.mxu0 0
      %830 = vmatprep.subr.bf16.mxu0 0
      %831 = vmatpush1.bf16.msra.mxu0 0
      %832 = vmatprep.subr.bf16.mxu0 0
      %833 = vmatpush1.bf16.msra.mxu0 0
      %834 = vmatprep.subr.bf16.mxu0 0
      %835 = vmatpush1.bf16.msra.mxu0 0
      %836 = vmatprep.mubr.bf16.mxu0 0
      %837 = vmatmul.mubr.bf16.gmra.mrb[0].mxu0 %v790
      %v838 = vpop.f32.mrb[0].mxu0
      %v839 = vadd.f32 0.0, %v838
      %v840 = vpop.f32.mrb[0].mxu0
      %v841 = vpop.f32.mrb[0].mxu0
      %v842 = vadd.f32 0.0, %v841
      %v843 = vpop.f32.mrb[0].mxu0
      %844 = vmatprep.mubr.bf16.mxu0 0
      %845 = vmatmul.mubr.bf16.gmra.mrb[0].mxu0 %v793
      %v846 = vpop.f32.mrb[0].mxu0
      %v847 = vadd.f32 0.0, %v846
      %v848 = vpop.f32.mrb[0].mxu0
      %v849 = vpop.f32.mrb[0].mxu0
      %v850 = vadd.f32 0.0, %v849
      %v851 = vpop.f32.mrb[0].mxu0
      %852 = vmatprep.mubr.bf16.mxu0 0
      %853 = vmatmul.mubr.bf16.gmra.mrb[0].mxu0 %v796
      %v854 = vpop.f32.mrb[0].mxu0
      %v855 = vadd.f32 0.0, %v854
      %v856 = vpop.f32.mrb[0].mxu0
      %v857 = vpop.f32.mrb[0].mxu0
      %v858 = vadd.f32 0.0, %v857
      %v859 = vpop.f32.mrb[0].mxu0
      %860 = vmatprep.mubr.bf16.mxu0 0
      %861 = vmatmul.mubr.bf16.gmra.mrb[0].mxu0 %v799
      %v862 = vpop.f32.mrb[0].mxu0
      %v863 = vadd.f32 0.0, %v862
      %v864 = vpop.f32.mrb[0].mxu0
      %v865 = vpop.f32.mrb[0].mxu0
      %v866 = vadd.f32 0.0, %v865
      %v867 = vpop.f32.mrb[0].mxu0
      %868 = vdwg.mxu0
      %v869 = vadd.f32 %v765, %v839
      %v870 = vadd.f32 %v766, %v842
      %v871 = vadd.f32 %v767, %v847
      %v872 = vadd.f32 %v768, %v850
      %v873 = vadd.f32 %v769, %v855
      %v874 = vadd.f32 %v770, %v858
      %v875 = vadd.f32 %v771, %v863
      %v876 = vadd.f32 %v772, %v866
      %v877 = vld [vmem:[%s274 + $0x20] sm:$0xf]
      %s878 = scalar_lea.vmem %s280, 20
      %v879 = vld [vmem:[%s878] sm:$0xf]
      %v881 = vunpack.c.l.b16 %v877
      %v882 = vpack.c.b16 %v338, %v337
      %v883 = vpack.c.b16 %v340, %v339
      %v884 = vpack.c.b16 %v342, %v341
      %v885 = vpack.c.b16 %v881, %v343
      %v887 = vsel %vm387, %v882, 0
      %v890 = vsel %vm387, %v883, 0
      %v893 = vsel %vm387, %v884, 0
      %v896 = vsel %vm387, %v885, 0
      %v899 = vsel %vm400, %v879, 0
      %901 = vmatprep.subr.bf16.mxu0 0
      %902 = vmatpush1.bf16.msra.mxu0 %v899
      %903 = vmatprep.subr.bf16.mxu0 0
      %904 = vmatpush1.bf16.msra.mxu0 0
      %905 = vmatprep.subr.bf16.mxu0 0
      %906 = vmatpush1.bf16.msra.mxu0 0
      %907 = vmatprep.subr.bf16.mxu0 0
      %908 = vmatpush1.bf16.msra.mxu0 0
      %909 = vmatprep.subr.bf16.mxu0 0
      %910 = vmatpush1.bf16.msra.mxu0 0
      %911 = vmatprep.subr.bf16.mxu0 0
      %912 = vmatpush1.bf16.msra.mxu0 0
      %913 = vmatprep.subr.bf16.mxu0 0
      %914 = vmatpush1.bf16.msra.mxu0 0
      %915 = vmatprep.subr.bf16.mxu0 0
      %916 = vmatpush1.bf16.msra.mxu0 0
      %917 = vmatprep.subr.bf16.mxu0 0
      %918 = vmatpush1.bf16.msra.mxu0 0
      %919 = vmatprep.subr.bf16.mxu0 0
      %920 = vmatpush1.bf16.msra.mxu0 0
      %921 = vmatprep.subr.bf16.mxu0 0
      %922 = vmatpush1.bf16.msra.mxu0 0
      %923 = vmatprep.subr.bf16.mxu0 0
      %924 = vmatpush1.bf16.msra.mxu0 0
      %925 = vmatprep.subr.bf16.mxu0 0
      %926 = vmatpush1.bf16.msra.mxu0 0
      %927 = vmatprep.subr.bf16.mxu0 0
      %928 = vmatpush1.bf16.msra.mxu0 0
      %929 = vmatprep.subr.bf16.mxu0 0
      %930 = vmatpush1.bf16.msra.mxu0 0
      %931 = vmatprep.subr.bf16.mxu0 0
      %932 = vmatpush1.bf16.msra.mxu0 0
      %933 = vmatprep.mubr.bf16.mxu0 0
      %934 = vmatmul.mubr.bf16.gmra.mrb[0].mxu0 %v887
      %v935 = vpop.f32.mrb[0].mxu0
      %v936 = vadd.f32 0.0, %v935
      %v937 = vpop.f32.mrb[0].mxu0
      %v938 = vpop.f32.mrb[0].mxu0
      %v939 = vadd.f32 0.0, %v938
      %v940 = vpop.f32.mrb[0].mxu0
      %941 = vmatprep.mubr.bf16.mxu0 0
      %942 = vmatmul.mubr.bf16.gmra.mrb[0].mxu0 %v890
      %v943 = vpop.f32.mrb[0].mxu0
      %v944 = vadd.f32 0.0, %v943
      %v945 = vpop.f32.mrb[0].mxu0
      %v946 = vpop.f32.mrb[0].mxu0
      %v947 = vadd.f32 0.0, %v946
      %v948 = vpop.f32.mrb[0].mxu0
      %949 = vmatprep.mubr.bf16.mxu0 0
      %950 = vmatmul.mubr.bf16.gmra.mrb[0].mxu0 %v893
      %v951 = vpop.f32.mrb[0].mxu0
      %v952 = vadd.f32 0.0, %v951
      %v953 = vpop.f32.mrb[0].mxu0
      %v954 = vpop.f32.mrb[0].mxu0
      %v955 = vadd.f32 0.0, %v954
      %v956 = vpop.f32.mrb[0].mxu0
      %957 = vmatprep.mubr.bf16.mxu0 0
      %958 = vmatmul.mubr.bf16.gmra.mrb[0].mxu0 %v896
      %v959 = vpop.f32.mrb[0].mxu0
      %v960 = vadd.f32 0.0, %v959
      %v961 = vpop.f32.mrb[0].mxu0
      %v962 = vpop.f32.mrb[0].mxu0
      %v963 = vadd.f32 0.0, %v962
      %v964 = vpop.f32.mrb[0].mxu0
      %965 = vdwg.mxu0
      %v966 = vadd.f32 %v869, %v936
      %v967 = vadd.f32 %v870, %v939
      %v968 = vadd.f32 %v871, %v944
      %v969 = vadd.f32 %v872, %v947
      %v970 = vadd.f32 %v873, %v952
      %v971 = vadd.f32 %v874, %v955
      %v972 = vadd.f32 %v875, %v960
      %v973 = vadd.f32 %v876, %v963
      %v974 = vld [vmem:[%s274 + $0x4] sm:$0xf]
      %v975 = vld [vmem:[%s274 + $0x8] sm:$0xf]
      %v976 = vld [vmem:[%s274 + $0xc] sm:$0xf]
      %v977 = vld [vmem:[%s274 + $0x10] sm:$0xf]
      %v978 = vld [vmem:[%s274 + $0x14] sm:$0xf]
      %v979 = vld [vmem:[%s274 + $0x18] sm:$0xf]
      %v980 = vld [vmem:[%s274 + $0x1c] sm:$0xf]
      %v981 = vld [vmem:[%s274 + $0x20] sm:$0xf]
      %v982 = vld [vmem:[%s274 + $0x24] sm:$0x1]
      %s983 = scalar_lea.vmem %s280, 24
      %v984 = vld [vmem:[%s983] sm:$0xf]
      %v994 = vunpack.c.l.b16 %v974
      %v995 = vunpack.c.l.b16 %v975
      %v996 = vunpack.c.l.b16 %v976
      %v997 = vunpack.c.l.b16 %v977
      %v998 = vunpack.c.l.b16 %v978
      %v999 = vunpack.c.l.b16 %v979
      %v1000 = vunpack.c.l.b16 %v980
      %v1001 = vunpack.c.l.b16 %v981
      %v1002 = vunpack.c.l.b16 %v982
      %v1003 = vpack.c.b16 %v995, %v994
      %v1004 = vpack.c.b16 %v997, %v996
      %v1005 = vpack.c.b16 %v999, %v998
      %v1006 = vpack.c.b16 %v1001, %v1000
      %v1007 = vpack.c.b16 %v1002, %v1002
      %v1009 = vshrl.u32 %v1003, 16
      %v1011 = vshll.u32 %v1003, 16
      %v1013 = vrot.slane %v1011, 1
      %v1014 = vor.u32 %v1009, %v1013
      %v1016 = vshll.u32 %v1004, 16
      %v1018 = vrot.slane %v1016, 1
      %v1019 = vsel %vm350, %v1014, %v1018
      %v1020 = vshrl.u32 %v1004, 16
      %v1022 = vor.u32 %v1020, %v1018
      %v1024 = vshll.u32 %v1005, 16
      %v1026 = vrot.slane %v1024, 1
      %v1027 = vsel %vm350, %v1022, %v1026
      %v1028 = vshrl.u32 %v1005, 16
      %v1030 = vor.u32 %v1028, %v1026
      %v1032 = vshll.u32 %v1006, 16
      %v1034 = vrot.slane %v1032, 1
      %v1035 = vsel %vm350, %v1030, %v1034
      %v1036 = vshrl.u32 %v1006, 16
      %v1038 = vor.u32 %v1036, %v1034
      %v1040 = vshll.u32 %v1007, 16
      %v1042 = vrot.slane %v1040, 1
      %v1043 = vsel %vm350, %v1038, %v1042
      %v1045 = vsel %vm387, %v1019, 0
      %v1048 = vsel %vm387, %v1027, 0
      %v1051 = vsel %vm387, %v1035, 0
      %v1054 = vsel %vm387, %v1043, 0
      %v1057 = vsel %vm400, %v984, 0
      %1059 = vmatprep.subr.bf16.mxu0 0
      %1060 = vmatpush1.bf16.msra.mxu0 %v1057
      %1061 = vmatprep.subr.bf16.mxu0 0
      %1062 = vmatpush1.bf16.msra.mxu0 0
      %1063 = vmatprep.subr.bf16.mxu0 0
      %1064 = vmatpush1.bf16.msra.mxu0 0
      %1065 = vmatprep.subr.bf16.mxu0 0
      %1066 = vmatpush1.bf16.msra.mxu0 0
      %1067 = vmatprep.subr.bf16.mxu0 0
      %1068 = vmatpush1.bf16.msra.mxu0 0
      %1069 = vmatprep.subr.bf16.mxu0 0
      %1070 = vmatpush1.bf16.msra.mxu0 0
      %1071 = vmatprep.subr.bf16.mxu0 0
      %1072 = vmatpush1.bf16.msra.mxu0 0
      %1073 = vmatprep.subr.bf16.mxu0 0
      %1074 = vmatpush1.bf16.msra.mxu0 0
      %1075 = vmatprep.subr.bf16.mxu0 0
      %1076 = vmatpush1.bf16.msra.mxu0 0
      %1077 = vmatprep.subr.bf16.mxu0 0
      %1078 = vmatpush1.bf16.msra.mxu0 0
      %1079 = vmatprep.subr.bf16.mxu0 0
      %1080 = vmatpush1.bf16.msra.mxu0 0
      %1081 = vmatprep.subr.bf16.mxu0 0
      %1082 = vmatpush1.bf16.msra.mxu0 0
      %1083 = vmatprep.subr.bf16.mxu0 0
      %1084 = vmatpush1.bf16.msra.mxu0 0
      %1085 = vmatprep.subr.bf16.mxu0 0
      %1086 = vmatpush1.bf16.msra.mxu0 0
      %1087 = vmatprep.subr.bf16.mxu0 0
      %1088 = vmatpush1.bf16.msra.mxu0 0
      %1089 = vmatprep.subr.bf16.mxu0 0
      %1090 = vmatpush1.bf16.msra.mxu0 0
      %1091 = vmatprep.mubr.bf16.mxu0 0
      %1092 = vmatmul.mubr.bf16.gmra.mrb[0].mxu0 %v1045
      %v1093 = vpop.f32.mrb[0].mxu0
      %v1094 = vadd.f32 0.0, %v1093
      %v1095 = vpop.f32.mrb[0].mxu0
      %v1096 = vpop.f32.mrb[0].mxu0
      %v1097 = vadd.f32 0.0, %v1096
      %v1098 = vpop.f32.mrb[0].mxu0
      %1099 = vmatprep.mubr.bf16.mxu0 0
      %1100 = vmatmul.mubr.bf16.gmra.mrb[0].mxu0 %v1048
      %v1101 = vpop.f32.mrb[0].mxu0
      %v1102 = vadd.f32 0.0, %v1101
      %v1103 = vpop.f32.mrb[0].mxu0
      %v1104 = vpop.f32.mrb[0].mxu0
      %v1105 = vadd.f32 0.0, %v1104
      %v1106 = vpop.f32.mrb[0].mxu0
      %1107 = vmatprep.mubr.bf16.mxu0 0
      %1108 = vmatmul.mubr.bf16.gmra.mrb[0].mxu0 %v1051
      %v1109 = vpop.f32.mrb[0].mxu0
      %v1110 = vadd.f32 0.0, %v1109
      %v1111 = vpop.f32.mrb[0].mxu0
      %v1112 = vpop.f32.mrb[0].mxu0
      %v1113 = vadd.f32 0.0, %v1112
      %v1114 = vpop.f32.mrb[0].mxu0
      %1115 = vmatprep.mubr.bf16.mxu0 0
      %1116 = vmatmul.mubr.bf16.gmra.mrb[0].mxu0 %v1054
      %v1117 = vpop.f32.mrb[0].mxu0
      %v1118 = vadd.f32 0.0, %v1117
      %v1119 = vpop.f32.mrb[0].mxu0
      %v1120 = vpop.f32.mrb[0].mxu0
      %v1121 = vadd.f32 0.0, %v1120
      %v1122 = vpop.f32.mrb[0].mxu0
      %1123 = vdwg.mxu0
      %v1124 = vadd.f32 %v966, %v1094
      %v1125 = vadd.f32 %v967, %v1097
      %v1126 = vadd.f32 %v968, %v1102
      %v1127 = vadd.f32 %v969, %v1105
      %v1128 = vadd.f32 %v970, %v1110
      %v1129 = vadd.f32 %v971, %v1113
      %v1130 = vadd.f32 %v972, %v1118
      %v1131 = vadd.f32 %v973, %v1121
      %v1132 = vld [vmem:[%s274 + $0x4] sm:$0xe]
      %s1133 = scalar_lea.vmem %s280, 28
      %v1134 = vld [vmem:[%s1133] sm:$0xf]
      %v1136 = vunpack.c.l.b16 %v1132
      %v1137 = vpack.c.b16 %v995, %v1136
      %v1138 = vrot.slane %v1137, 1
      %v1139 = vrot.slane %v1004, 1
      %v1140 = vsel %vm551, %v1138, %v1139
      %v1141 = vrot.slane %v1005, 1
      %v1142 = vsel %vm551, %v1139, %v1141
      %v1143 = vrot.slane %v1006, 1
      %v1144 = vsel %vm551, %v1141, %v1143
      %v1145 = vrot.slane %v1007, 1
      %v1146 = vsel %vm551, %v1143, %v1145
      %v1148 = vsel %vm387, %v1140, 0
      %v1151 = vsel %vm387, %v1142, 0
      %v1154 = vsel %vm387, %v1144, 0
      %v1157 = vsel %vm387, %v1146, 0
      %v1160 = vsel %vm400, %v1134, 0
      %1162 = vmatprep.subr.bf16.mxu0 0
      %1163 = vmatpush1.bf16.msra.mxu0 %v1160
      %1164 = vmatprep.subr.bf16.mxu0 0
      %1165 = vmatpush1.bf16.msra.mxu0 0
      %1166 = vmatprep.subr.bf16.mxu0 0
      %1167 = vmatpush1.bf16.msra.mxu0 0
      %1168 = vmatprep.subr.bf16.mxu0 0
      %1169 = vmatpush1.bf16.msra.mxu0 0
      %1170 = vmatprep.subr.bf16.mxu0 0
      %1171 = vmatpush1.bf16.msra.mxu0 0
      %1172 = vmatprep.subr.bf16.mxu0 0
      %1173 = vmatpush1.bf16.msra.mxu0 0
      %1174 = vmatprep.subr.bf16.mxu0 0
      %1175 = vmatpush1.bf16.msra.mxu0 0
      %1176 = vmatprep.subr.bf16.mxu0 0
      %1177 = vmatpush1.bf16.msra.mxu0 0
      %1178 = vmatprep.subr.bf16.mxu0 0
      %1179 = vmatpush1.bf16.msra.mxu0 0
      %1180 = vmatprep.subr.bf16.mxu0 0
      %1181 = vmatpush1.bf16.msra.mxu0 0
      %1182 = vmatprep.subr.bf16.mxu0 0
      %1183 = vmatpush1.bf16.msra.mxu0 0
      %1184 = vmatprep.subr.bf16.mxu0 0
      %1185 = vmatpush1.bf16.msra.mxu0 0
      %1186 = vmatprep.subr.bf16.mxu0 0
      %1187 = vmatpush1.bf16.msra.mxu0 0
      %1188 = vmatprep.subr.bf16.mxu0 0
      %1189 = vmatpush1.bf16.msra.mxu0 0
      %1190 = vmatprep.subr.bf16.mxu0 0
      %1191 = vmatpush1.bf16.msra.mxu0 0
      %1192 = vmatprep.subr.bf16.mxu0 0
      %1193 = vmatpush1.bf16.msra.mxu0 0
      %1194 = vmatprep.mubr.bf16.mxu0 0
      %1195 = vmatmul.mubr.bf16.gmra.mrb[0].mxu0 %v1148
      %v1196 = vpop.f32.mrb[0].mxu0
      %v1197 = vadd.f32 0.0, %v1196
      %v1198 = vpop.f32.mrb[0].mxu0
      %v1199 = vpop.f32.mrb[0].mxu0
      %v1200 = vadd.f32 0.0, %v1199
      %v1201 = vpop.f32.mrb[0].mxu0
      %1202 = vmatprep.mubr.bf16.mxu0 0
      %1203 = vmatmul.mubr.bf16.gmra.mrb[0].mxu0 %v1151
      %v1204 = vpop.f32.mrb[0].mxu0
      %v1205 = vadd.f32 0.0, %v1204
      %v1206 = vpop.f32.mrb[0].mxu0
      %v1207 = vpop.f32.mrb[0].mxu0
      %v1208 = vadd.f32 0.0, %v1207
      %v1209 = vpop.f32.mrb[0].mxu0
      %1210 = vmatprep.mubr.bf16.mxu0 0
      %1211 = vmatmul.mubr.bf16.gmra.mrb[0].mxu0 %v1154
      %v1212 = vpop.f32.mrb[0].mxu0
      %v1213 = vadd.f32 0.0, %v1212
      %v1214 = vpop.f32.mrb[0].mxu0
      %v1215 = vpop.f32.mrb[0].mxu0
      %v1216 = vadd.f32 0.0, %v1215
      %v1217 = vpop.f32.mrb[0].mxu0
      %1218 = vmatprep.mubr.bf16.mxu0 0
      %1219 = vmatmul.mubr.bf16.gmra.mrb[0].mxu0 %v1157
      %v1220 = vpop.f32.mrb[0].mxu0
      %v1221 = vadd.f32 0.0, %v1220
      %v1222 = vpop.f32.mrb[0].mxu0
      %v1223 = vpop.f32.mrb[0].mxu0
      %v1224 = vadd.f32 0.0, %v1223
      %v1225 = vpop.f32.mrb[0].mxu0
      %1226 = vdwg.mxu0
      %v1227 = vadd.f32 %v1124, %v1197
      %v1228 = vadd.f32 %v1125, %v1200
      %v1229 = vadd.f32 %v1126, %v1205
      %v1230 = vadd.f32 %v1127, %v1208
      %v1231 = vadd.f32 %v1128, %v1213
      %v1232 = vadd.f32 %v1129, %v1216
      %v1233 = vadd.f32 %v1130, %v1221
      %v1234 = vadd.f32 %v1131, %v1224
      %v1235 = vld [vmem:[%s274 + $0x24] sm:$0x3]
      %s1236 = scalar_lea.vmem %s280, 32
      %v1237 = vld [vmem:[%s1236] sm:$0xf]
      %v1239 = vunpack.c.l.b16 %v1235
      %v1240 = vpack.c.b16 %v1239, %v1239
      %v1242 = vshrl.u32 %v1137, 16
      %v1244 = vrot.slane %v1242, 1
      %v1245 = vshll.u32 %v1137, 16
      %v1247 = vrot.slane %v1245, 2
      %v1248 = vor.u32 %v1244, %v1247
      %v1249 = vrot.slane %v1020, 1
      %v1250 = vrot.slane %v1016, 2
      %v1251 = vor.u32 %v1249, %v1250
      %v1252 = vsel %vm655, %v1248, %v1251
      %v1253 = vrot.slane %v1028, 1
      %v1254 = vrot.slane %v1024, 2
      %v1255 = vor.u32 %v1253, %v1254
      %v1256 = vsel %vm655, %v1251, %v1255
      %v1257 = vrot.slane %v1036, 1
      %v1258 = vrot.slane %v1032, 2
      %v1259 = vor.u32 %v1257, %v1258
      %v1260 = vsel %vm655, %v1255, %v1259
      %v1262 = vshrl.u32 %v1240, 16
      %v1264 = vrot.slane %v1262, 1
      %v1265 = vshll.u32 %v1240, 16
      %v1267 = vrot.slane %v1265, 2
      %v1268 = vor.u32 %v1264, %v1267
      %v1269 = vsel %vm655, %v1259, %v1268
      %v1271 = vsel %vm387, %v1252, 0
      %v1274 = vsel %vm387, %v1256, 0
      %v1277 = vsel %vm387, %v1260, 0
      %v1280 = vsel %vm387, %v1269, 0
      %v1283 = vsel %vm400, %v1237, 0
      %1285 = vmatprep.subr.bf16.mxu0 0
      %1286 = vmatpush1.bf16.msra.mxu0 %v1283
      %1287 = vmatprep.subr.bf16.mxu0 0
      %1288 = vmatpush1.bf16.msra.mxu0 0
      %1289 = vmatprep.subr.bf16.mxu0 0
      %1290 = vmatpush1.bf16.msra.mxu0 0
      %1291 = vmatprep.subr.bf16.mxu0 0
      %1292 = vmatpush1.bf16.msra.mxu0 0
      %1293 = vmatprep.subr.bf16.mxu0 0
      %1294 = vmatpush1.bf16.msra.mxu0 0
      %1295 = vmatprep.subr.bf16.mxu0 0
      %1296 = vmatpush1.bf16.msra.mxu0 0
      %1297 = vmatprep.subr.bf16.mxu0 0
      %1298 = vmatpush1.bf16.msra.mxu0 0
      %1299 = vmatprep.subr.bf16.mxu0 0
      %1300 = vmatpush1.bf16.msra.mxu0 0
      %1301 = vmatprep.subr.bf16.mxu0 0
      %1302 = vmatpush1.bf16.msra.mxu0 0
      %1303 = vmatprep.subr.bf16.mxu0 0
      %1304 = vmatpush1.bf16.msra.mxu0 0
      %1305 = vmatprep.subr.bf16.mxu0 0
      %1306 = vmatpush1.bf16.msra.mxu0 0
      %1307 = vmatprep.subr.bf16.mxu0 0
      %1308 = vmatpush1.bf16.msra.mxu0 0
      %1309 = vmatprep.subr.bf16.mxu0 0
      %1310 = vmatpush1.bf16.msra.mxu0 0
      %1311 = vmatprep.subr.bf16.mxu0 0
      %1312 = vmatpush1.bf16.msra.mxu0 0
      %1313 = vmatprep.subr.bf16.mxu0 0
      %1314 = vmatpush1.bf16.msra.mxu0 0
      %1315 = vmatprep.subr.bf16.mxu0 0
      %1316 = vmatpush1.bf16.msra.mxu0 0
      %1317 = vmatprep.mubr.bf16.mxu0 0
      %1318 = vmatmul.mubr.bf16.gmra.mrb[0].mxu0 %v1271
      %v1319 = vpop.f32.mrb[0].mxu0
      %v1320 = vadd.f32 0.0, %v1319
      %v1321 = vpop.f32.mrb[0].mxu0
      %v1322 = vpop.f32.mrb[0].mxu0
      %v1323 = vadd.f32 0.0, %v1322
      %v1324 = vpop.f32.mrb[0].mxu0
      %1325 = vmatprep.mubr.bf16.mxu0 0
      %1326 = vmatmul.mubr.bf16.gmra.mrb[0].mxu0 %v1274
      %v1327 = vpop.f32.mrb[0].mxu0
      %v1328 = vadd.f32 0.0, %v1327
      %v1329 = vpop.f32.mrb[0].mxu0
      %v1330 = vpop.f32.mrb[0].mxu0
      %v1331 = vadd.f32 0.0, %v1330
      %v1332 = vpop.f32.mrb[0].mxu0
      %1333 = vmatprep.mubr.bf16.mxu0 0
      %1334 = vmatmul.mubr.bf16.gmra.mrb[0].mxu0 %v1277
      %v1335 = vpop.f32.mrb[0].mxu0
      %v1336 = vadd.f32 0.0, %v1335
      %v1337 = vpop.f32.mrb[0].mxu0
      %v1338 = vpop.f32.mrb[0].mxu0
      %v1339 = vadd.f32 0.0, %v1338
      %v1340 = vpop.f32.mrb[0].mxu0
      %1341 = vmatprep.mubr.bf16.mxu0 0
      %1342 = vmatmul.mubr.bf16.gmra.mrb[0].mxu0 %v1280
      %v1343 = vpop.f32.mrb[0].mxu0
      %v1344 = vadd.f32 0.0, %v1343
      %v1345 = vpop.f32.mrb[0].mxu0
      %v1346 = vpop.f32.mrb[0].mxu0
      %v1347 = vadd.f32 0.0, %v1346
      %v1348 = vpop.f32.mrb[0].mxu0
      %1349 = vdwg.mxu0
      %v1350 = vadd.f32 %v1227, %v1320
      %v1351 = vadd.f32 %v1228, %v1323
      %v1352 = vadd.f32 %v1229, %v1328
      %v1353 = vadd.f32 %v1230, %v1331
      %v1354 = vadd.f32 %v1231, %v1336
      %v1355 = vadd.f32 %v1232, %v1339
      %v1356 = vadd.f32 %v1233, %v1344
      %v1357 = vadd.f32 %v1234, %v1347
      %v1358 = vld [vmem:[%s274 + $0x4] sm:$0xc]
      %s1359 = scalar_lea.vmem %s280, 36
      %v1360 = vld [vmem:[%s1359] sm:$0xf]
      %v1362 = vunpack.c.l.b16 %v1358
      %v1363 = vpack.c.b16 %v995, %v1362
      %v1364 = vrot.slane %v1363, 2
      %v1365 = vrot.slane %v1004, 2
      %v1366 = vsel %vm779, %v1364, %v1365
      %v1367 = vrot.slane %v1005, 2
      %v1368 = vsel %vm779, %v1365, %v1367
      %v1369 = vrot.slane %v1006, 2
      %v1370 = vsel %vm779, %v1367, %v1369
      %v1371 = vrot.slane %v1240, 2
      %v1372 = vsel %vm779, %v1369, %v1371
      %v1374 = vsel %vm387, %v1366, 0
      %v1377 = vsel %vm387, %v1368, 0
      %v1380 = vsel %vm387, %v1370, 0
      %v1383 = vsel %vm387, %v1372, 0
      %v1386 = vsel %vm400, %v1360, 0
      %1388 = vmatprep.subr.bf16.mxu0 0
      %1389 = vmatpush1.bf16.msra.mxu0 %v1386
      %1390 = vmatprep.subr.bf16.mxu0 0
      %1391 = vmatpush1.bf16.msra.mxu0 0
      %1392 = vmatprep.subr.bf16.mxu0 0
      %1393 = vmatpush1.bf16.msra.mxu0 0
      %1394 = vmatprep.subr.bf16.mxu0 0
      %1395 = vmatpush1.bf16.msra.mxu0 0
      %1396 = vmatprep.subr.bf16.mxu0 0
      %1397 = vmatpush1.bf16.msra.mxu0 0
      %1398 = vmatprep.subr.bf16.mxu0 0
      %1399 = vmatpush1.bf16.msra.mxu0 0
      %1400 = vmatprep.subr.bf16.mxu0 0
      %1401 = vmatpush1.bf16.msra.mxu0 0
      %1402 = vmatprep.subr.bf16.mxu0 0
      %1403 = vmatpush1.bf16.msra.mxu0 0
      %1404 = vmatprep.subr.bf16.mxu0 0
      %1405 = vmatpush1.bf16.msra.mxu0 0
      %1406 = vmatprep.subr.bf16.mxu0 0
      %1407 = vmatpush1.bf16.msra.mxu0 0
      %1408 = vmatprep.subr.bf16.mxu0 0
      %1409 = vmatpush1.bf16.msra.mxu0 0
      %1410 = vmatprep.subr.bf16.mxu0 0
      %1411 = vmatpush1.bf16.msra.mxu0 0
      %1412 = vmatprep.subr.bf16.mxu0 0
      %1413 = vmatpush1.bf16.msra.mxu0 0
      %1414 = vmatprep.subr.bf16.mxu0 0
      %1415 = vmatpush1.bf16.msra.mxu0 0
      %1416 = vmatprep.subr.bf16.mxu0 0
      %1417 = vmatpush1.bf16.msra.mxu0 0
      %1418 = vmatprep.subr.bf16.mxu0 0
      %1419 = vmatpush1.bf16.msra.mxu0 0
      %1420 = vmatprep.mubr.bf16.mxu0 0
      %1421 = vmatmul.mubr.bf16.gmra.mrb[0].mxu0 %v1374
      %v1422 = vpop.f32.mrb[0].mxu0
      %v1423 = vadd.f32 0.0, %v1422
      %v1424 = vpop.f32.mrb[0].mxu0
      %v1425 = vpop.f32.mrb[0].mxu0
      %v1426 = vadd.f32 0.0, %v1425
      %v1427 = vpop.f32.mrb[0].mxu0
      %1428 = vmatprep.mubr.bf16.mxu0 0
      %1429 = vmatmul.mubr.bf16.gmra.mrb[0].mxu0 %v1377
      %v1430 = vpop.f32.mrb[0].mxu0
      %v1431 = vadd.f32 0.0, %v1430
      %v1432 = vpop.f32.mrb[0].mxu0
      %v1433 = vpop.f32.mrb[0].mxu0
      %v1434 = vadd.f32 0.0, %v1433
      %v1435 = vpop.f32.mrb[0].mxu0
      %1436 = vmatprep.mubr.bf16.mxu0 0
      %1437 = vmatmul.mubr.bf16.gmra.mrb[0].mxu0 %v1380
      %v1438 = vpop.f32.mrb[0].mxu0
      %v1439 = vadd.f32 0.0, %v1438
      %v1440 = vpop.f32.mrb[0].mxu0
      %v1441 = vpop.f32.mrb[0].mxu0
      %v1442 = vadd.f32 0.0, %v1441
      %v1443 = vpop.f32.mrb[0].mxu0
      %1444 = vmatprep.mubr.bf16.mxu0 0
      %1445 = vmatmul.mubr.bf16.gmra.mrb[0].mxu0 %v1383
      %v1446 = vpop.f32.mrb[0].mxu0
      %v1447 = vadd.f32 0.0, %v1446
      %v1448 = vpop.f32.mrb[0].mxu0
      %v1449 = vpop.f32.mrb[0].mxu0
      %v1450 = vadd.f32 0.0, %v1449
      %v1451 = vpop.f32.mrb[0].mxu0
      %1452 = vdwg.mxu0
      %v1453 = vadd.f32 %v1350, %v1423
      %v1454 = vadd.f32 %v1351, %v1426
      %v1455 = vadd.f32 %v1352, %v1431
      %v1456 = vadd.f32 %v1353, %v1434
      %v1457 = vadd.f32 %v1354, %v1439
      %v1458 = vadd.f32 %v1355, %v1442
      %v1459 = vadd.f32 %v1356, %v1447
      %v1460 = vadd.f32 %v1357, %v1450
      %v1461 = vld [vmem:[%s274 + $0x24] sm:$0xf]
      %s1462 = scalar_lea.vmem %s280, 40
      %v1463 = vld [vmem:[%s1462] sm:$0xf]
      %v1465 = vunpack.c.l.b16 %v1461
      %v1466 = vpack.c.b16 %v996, %v995
      %v1467 = vpack.c.b16 %v998, %v997
      %v1468 = vpack.c.b16 %v1000, %v999
      %v1469 = vpack.c.b16 %v1465, %v1001
      %v1471 = vsel %vm387, %v1466, 0
      %v1474 = vsel %vm387, %v1467, 0
      %v1477 = vsel %vm387, %v1468, 0
      %v1480 = vsel %vm387, %v1469, 0
      %v1483 = vsel %vm400, %v1463, 0
      %1485 = vmatprep.subr.bf16.mxu0 0
      %1486 = vmatpush1.bf16.msra.mxu0 %v1483
      %1487 = vmatprep.subr.bf16.mxu0 0
      %1488 = vmatpush1.bf16.msra.mxu0 0
      %1489 = vmatprep.subr.bf16.mxu0 0
      %1490 = vmatpush1.bf16.msra.mxu0 0
      %1491 = vmatprep.subr.bf16.mxu0 0
      %1492 = vmatpush1.bf16.msra.mxu0 0
      %1493 = vmatprep.subr.bf16.mxu0 0
      %1494 = vmatpush1.bf16.msra.mxu0 0
      %1495 = vmatprep.subr.bf16.mxu0 0
      %1496 = vmatpush1.bf16.msra.mxu0 0
      %1497 = vmatprep.subr.bf16.mxu0 0
      %1498 = vmatpush1.bf16.msra.mxu0 0
      %1499 = vmatprep.subr.bf16.mxu0 0
      %1500 = vmatpush1.bf16.msra.mxu0 0
      %1501 = vmatprep.subr.bf16.mxu0 0
      %1502 = vmatpush1.bf16.msra.mxu0 0
      %1503 = vmatprep.subr.bf16.mxu0 0
      %1504 = vmatpush1.bf16.msra.mxu0 0
      %1505 = vmatprep.subr.bf16.mxu0 0
      %1506 = vmatpush1.bf16.msra.mxu0 0
      %1507 = vmatprep.subr.bf16.mxu0 0
      %1508 = vmatpush1.bf16.msra.mxu0 0
      %1509 = vmatprep.subr.bf16.mxu0 0
      %1510 = vmatpush1.bf16.msra.mxu0 0
      %1511 = vmatprep.subr.bf16.mxu0 0
      %1512 = vmatpush1.bf16.msra.mxu0 0
      %1513 = vmatprep.subr.bf16.mxu0 0
      %1514 = vmatpush1.bf16.msra.mxu0 0
      %1515 = vmatprep.subr.bf16.mxu0 0
      %1516 = vmatpush1.bf16.msra.mxu0 0
      %1517 = vmatprep.mubr.bf16.mxu0 0
      %1518 = vmatmul.mubr.bf16.gmra.mrb[0].mxu0 %v1471
      %v1519 = vpop.f32.mrb[0].mxu0
      %v1520 = vadd.f32 0.0, %v1519
      %v1521 = vpop.f32.mrb[0].mxu0
      %v1522 = vpop.f32.mrb[0].mxu0
      %v1523 = vadd.f32 0.0, %v1522
      %v1524 = vpop.f32.mrb[0].mxu0
      %1525 = vmatprep.mubr.bf16.mxu0 0
      %1526 = vmatmul.mubr.bf16.gmra.mrb[0].mxu0 %v1474
      %v1527 = vpop.f32.mrb[0].mxu0
      %v1528 = vadd.f32 0.0, %v1527
      %v1529 = vpop.f32.mrb[0].mxu0
      %v1530 = vpop.f32.mrb[0].mxu0
      %v1531 = vadd.f32 0.0, %v1530
      %v1532 = vpop.f32.mrb[0].mxu0
      %1533 = vmatprep.mubr.bf16.mxu0 0
      %1534 = vmatmul.mubr.bf16.gmra.mrb[0].mxu0 %v1477
      %v1535 = vpop.f32.mrb[0].mxu0
      %v1536 = vadd.f32 0.0, %v1535
      %v1537 = vpop.f32.mrb[0].mxu0
      %v1538 = vpop.f32.mrb[0].mxu0
      %v1539 = vadd.f32 0.0, %v1538
      %v1540 = vpop.f32.mrb[0].mxu0
      %1541 = vmatprep.mubr.bf16.mxu0 0
      %1542 = vmatmul.mubr.bf16.gmra.mrb[0].mxu0 %v1480
      %v1543 = vpop.f32.mrb[0].mxu0
      %v1544 = vadd.f32 0.0, %v1543
      %v1545 = vpop.f32.mrb[0].mxu0
      %v1546 = vpop.f32.mrb[0].mxu0
      %v1547 = vadd.f32 0.0, %v1546
      %v1548 = vpop.f32.mrb[0].mxu0
      %1549 = vdwg.mxu0
      %v1550 = vadd.f32 %v1453, %v1520
      %v1551 = vadd.f32 %v1454, %v1523
      %v1552 = vadd.f32 %v1455, %v1528
      %v1553 = vadd.f32 %v1456, %v1531
      %v1554 = vadd.f32 %v1457, %v1536
      %v1555 = vadd.f32 %v1458, %v1539
      %v1556 = vadd.f32 %v1459, %v1544
      %v1557 = vadd.f32 %v1460, %v1547
      %v1558 = vld [vmem:[%s274 + $0x8] sm:$0xf]
      %v1559 = vld [vmem:[%s274 + $0xc] sm:$0xf]
      %v1560 = vld [vmem:[%s274 + $0x10] sm:$0xf]
      %v1561 = vld [vmem:[%s274 + $0x14] sm:$0xf]
      %v1562 = vld [vmem:[%s274 + $0x18] sm:$0xf]
      %v1563 = vld [vmem:[%s274 + $0x1c] sm:$0xf]
      %v1564 = vld [vmem:[%s274 + $0x20] sm:$0xf]
      %v1565 = vld [vmem:[%s274 + $0x24] sm:$0xf]
      %v1566 = vld [vmem:[%s274 + $0x28] sm:$0x1]
      %s1567 = scalar_lea.vmem %s280, 44
      %v1568 = vld [vmem:[%s1567] sm:$0xf]
      %v1578 = vunpack.c.l.b16 %v1558
      %v1579 = vunpack.c.l.b16 %v1559
      %v1580 = vunpack.c.l.b16 %v1560
      %v1581 = vunpack.c.l.b16 %v1561
      %v1582 = vunpack.c.l.b16 %v1562
      %v1583 = vunpack.c.l.b16 %v1563
      %v1584 = vunpack.c.l.b16 %v1564
      %v1585 = vunpack.c.l.b16 %v1565
      %v1586 = vunpack.c.l.b16 %v1566
      %v1587 = vpack.c.b16 %v1579, %v1578
      %v1588 = vpack.c.b16 %v1581, %v1580
      %v1589 = vpack.c.b16 %v1583, %v1582
      %v1590 = vpack.c.b16 %v1585, %v1584
      %v1591 = vpack.c.b16 %v1586, %v1586
      %v1593 = vshrl.u32 %v1587, 16
      %v1595 = vshll.u32 %v1587, 16
      %v1597 = vrot.slane %v1595, 1
      %v1598 = vor.u32 %v1593, %v1597
      %v1600 = vshll.u32 %v1588, 16
      %v1602 = vrot.slane %v1600, 1
      %v1603 = vsel %vm350, %v1598, %v1602
      %v1604 = vshrl.u32 %v1588, 16
      %v1606 = vor.u32 %v1604, %v1602
      %v1608 = vshll.u32 %v1589, 16
      %v1610 = vrot.slane %v1608, 1
      %v1611 = vsel %vm350, %v1606, %v1610
      %v1612 = vshrl.u32 %v1589, 16
      %v1614 = vor.u32 %v1612, %v1610
      %v1616 = vshll.u32 %v1590, 16
      %v1618 = vrot.slane %v1616, 1
      %v1619 = vsel %vm350, %v1614, %v1618
      %v1620 = vshrl.u32 %v1590, 16
      %v1622 = vor.u32 %v1620, %v1618
      %v1624 = vshll.u32 %v1591, 16
      %v1626 = vrot.slane %v1624, 1
      %v1627 = vsel %vm350, %v1622, %v1626
      %v1629 = vsel %vm387, %v1603, 0
      %v1632 = vsel %vm387, %v1611, 0
      %v1635 = vsel %vm387, %v1619, 0
      %v1638 = vsel %vm387, %v1627, 0
      %v1641 = vsel %vm400, %v1568, 0
      %1643 = vmatprep.subr.bf16.mxu0 0
      %1644 = vmatpush1.bf16.msra.mxu0 %v1641
      %1645 = vmatprep.subr.bf16.mxu0 0
      %1646 = vmatpush1.bf16.msra.mxu0 0
      %1647 = vmatprep.subr.bf16.mxu0 0
      %1648 = vmatpush1.bf16.msra.mxu0 0
      %1649 = vmatprep.subr.bf16.mxu0 0
      %1650 = vmatpush1.bf16.msra.mxu0 0
      %1651 = vmatprep.subr.bf16.mxu0 0
      %1652 = vmatpush1.bf16.msra.mxu0 0
      %1653 = vmatprep.subr.bf16.mxu0 0
      %1654 = vmatpush1.bf16.msra.mxu0 0
      %1655 = vmatprep.subr.bf16.mxu0 0
      %1656 = vmatpush1.bf16.msra.mxu0 0
      %1657 = vmatprep.subr.bf16.mxu0 0
      %1658 = vmatpush1.bf16.msra.mxu0 0
      %1659 = vmatprep.subr.bf16.mxu0 0
      %1660 = vmatpush1.bf16.msra.mxu0 0
      %1661 = vmatprep.subr.bf16.mxu0 0
      %1662 = vmatpush1.bf16.msra.mxu0 0
      %1663 = vmatprep.subr.bf16.mxu0 0
      %1664 = vmatpush1.bf16.msra.mxu0 0
      %1665 = vmatprep.subr.bf16.mxu0 0
      %1666 = vmatpush1.bf16.msra.mxu0 0
      %1667 = vmatprep.subr.bf16.mxu0 0
      %1668 = vmatpush1.bf16.msra.mxu0 0
      %1669 = vmatprep.subr.bf16.mxu0 0
      %1670 = vmatpush1.bf16.msra.mxu0 0
      %1671 = vmatprep.subr.bf16.mxu0 0
      %1672 = vmatpush1.bf16.msra.mxu0 0
      %1673 = vmatprep.subr.bf16.mxu0 0
      %1674 = vmatpush1.bf16.msra.mxu0 0
      %1675 = vmatprep.mubr.bf16.mxu0 0
      %1676 = vmatmul.mubr.bf16.gmra.mrb[0].mxu0 %v1629
      %v1677 = vpop.f32.mrb[0].mxu0
      %v1678 = vadd.f32 0.0, %v1677
      %v1679 = vpop.f32.mrb[0].mxu0
      %v1680 = vpop.f32.mrb[0].mxu0
      %v1681 = vadd.f32 0.0, %v1680
      %v1682 = vpop.f32.mrb[0].mxu0
      %1683 = vmatprep.mubr.bf16.mxu0 0
      %1684 = vmatmul.mubr.bf16.gmra.mrb[0].mxu0 %v1632
      %v1685 = vpop.f32.mrb[0].mxu0
      %v1686 = vadd.f32 0.0, %v1685
      %v1687 = vpop.f32.mrb[0].mxu0
      %v1688 = vpop.f32.mrb[0].mxu0
      %v1689 = vadd.f32 0.0, %v1688
      %v1690 = vpop.f32.mrb[0].mxu0
      %1691 = vmatprep.mubr.bf16.mxu0 0
      %1692 = vmatmul.mubr.bf16.gmra.mrb[0].mxu0 %v1635
      %v1693 = vpop.f32.mrb[0].mxu0
      %v1694 = vadd.f32 0.0, %v1693
      %v1695 = vpop.f32.mrb[0].mxu0
      %v1696 = vpop.f32.mrb[0].mxu0
      %v1697 = vadd.f32 0.0, %v1696
      %v1698 = vpop.f32.mrb[0].mxu0
      %1699 = vmatprep.mubr.bf16.mxu0 0
      %1700 = vmatmul.mubr.bf16.gmra.mrb[0].mxu0 %v1638
      %v1701 = vpop.f32.mrb[0].mxu0
      %v1702 = vadd.f32 0.0, %v1701
      %v1703 = vpop.f32.mrb[0].mxu0
      %v1704 = vpop.f32.mrb[0].mxu0
      %v1705 = vadd.f32 0.0, %v1704
      %v1706 = vpop.f32.mrb[0].mxu0
      %1707 = vdwg.mxu0
      %v1708 = vadd.f32 %v1550, %v1678
      %v1709 = vadd.f32 %v1551, %v1681
      %v1710 = vadd.f32 %v1552, %v1686
      %v1711 = vadd.f32 %v1553, %v1689
      %v1712 = vadd.f32 %v1554, %v1694
      %v1713 = vadd.f32 %v1555, %v1697
      %v1714 = vadd.f32 %v1556, %v1702
      %v1715 = vadd.f32 %v1557, %v1705
      %v1716 = vld [vmem:[%s274 + $0x8] sm:$0xe]
      %s1717 = scalar_lea.vmem %s280, 48
      %v1718 = vld [vmem:[%s1717] sm:$0xf]
      %v1720 = vunpack.c.l.b16 %v1716
      %v1721 = vpack.c.b16 %v1579, %v1720
      %v1722 = vrot.slane %v1721, 1
      %v1723 = vrot.slane %v1588, 1
      %v1724 = vsel %vm551, %v1722, %v1723
      %v1725 = vrot.slane %v1589, 1
      %v1726 = vsel %vm551, %v1723, %v1725
      %v1727 = vrot.slane %v1590, 1
      %v1728 = vsel %vm551, %v1725, %v1727
      %v1729 = vrot.slane %v1591, 1
      %v1730 = vsel %vm551, %v1727, %v1729
      %v1732 = vsel %vm387, %v1724, 0
      %v1735 = vsel %vm387, %v1726, 0
      %v1738 = vsel %vm387, %v1728, 0
      %v1741 = vsel %vm387, %v1730, 0
      %v1744 = vsel %vm400, %v1718, 0
      %1746 = vmatprep.subr.bf16.mxu0 0
      %1747 = vmatpush1.bf16.msra.mxu0 %v1744
      %1748 = vmatprep.subr.bf16.mxu0 0
      %1749 = vmatpush1.bf16.msra.mxu0 0
      %1750 = vmatprep.subr.bf16.mxu0 0
      %1751 = vmatpush1.bf16.msra.mxu0 0
      %1752 = vmatprep.subr.bf16.mxu0 0
      %1753 = vmatpush1.bf16.msra.mxu0 0
      %1754 = vmatprep.subr.bf16.mxu0 0
      %1755 = vmatpush1.bf16.msra.mxu0 0
      %1756 = vmatprep.subr.bf16.mxu0 0
      %1757 = vmatpush1.bf16.msra.mxu0 0
      %1758 = vmatprep.subr.bf16.mxu0 0
      %1759 = vmatpush1.bf16.msra.mxu0 0
      %1760 = vmatprep.subr.bf16.mxu0 0
      %1761 = vmatpush1.bf16.msra.mxu0 0
      %1762 = vmatprep.subr.bf16.mxu0 0
      %1763 = vmatpush1.bf16.msra.mxu0 0
      %1764 = vmatprep.subr.bf16.mxu0 0
      %1765 = vmatpush1.bf16.msra.mxu0 0
      %1766 = vmatprep.subr.bf16.mxu0 0
      %1767 = vmatpush1.bf16.msra.mxu0 0
      %1768 = vmatprep.subr.bf16.mxu0 0
      %1769 = vmatpush1.bf16.msra.mxu0 0
      %1770 = vmatprep.subr.bf16.mxu0 0
      %1771 = vmatpush1.bf16.msra.mxu0 0
      %1772 = vmatprep.subr.bf16.mxu0 0
      %1773 = vmatpush1.bf16.msra.mxu0 0
      %1774 = vmatprep.subr.bf16.mxu0 0
      %1775 = vmatpush1.bf16.msra.mxu0 0
      %1776 = vmatprep.subr.bf16.mxu0 0
      %1777 = vmatpush1.bf16.msra.mxu0 0
      %1778 = vmatprep.mubr.bf16.mxu0 0
      %1779 = vmatmul.mubr.bf16.gmra.mrb[0].mxu0 %v1732
      %v1780 = vpop.f32.mrb[0].mxu0
      %v1781 = vadd.f32 0.0, %v1780
      %v1782 = vpop.f32.mrb[0].mxu0
      %v1783 = vpop.f32.mrb[0].mxu0
      %v1784 = vadd.f32 0.0, %v1783
      %v1785 = vpop.f32.mrb[0].mxu0
      %1786 = vmatprep.mubr.bf16.mxu0 0
      %1787 = vmatmul.mubr.bf16.gmra.mrb[0].mxu0 %v1735
      %v1788 = vpop.f32.mrb[0].mxu0
      %v1789 = vadd.f32 0.0, %v1788
      %v1790 = vpop.f32.mrb[0].mxu0
      %v1791 = vpop.f32.mrb[0].mxu0
      %v1792 = vadd.f32 0.0, %v1791
      %v1793 = vpop.f32.mrb[0].mxu0
      %1794 = vmatprep.mubr.bf16.mxu0 0
      %1795 = vmatmul.mubr.bf16.gmra.mrb[0].mxu0 %v1738
      %v1796 = vpop.f32.mrb[0].mxu0
      %v1797 = vadd.f32 0.0, %v1796
      %v1798 = vpop.f32.mrb[0].mxu0
      %v1799 = vpop.f32.mrb[0].mxu0
      %v1800 = vadd.f32 0.0, %v1799
      %v1801 = vpop.f32.mrb[0].mxu0
      %1802 = vmatprep.mubr.bf16.mxu0 0
      %1803 = vmatmul.mubr.bf16.gmra.mrb[0].mxu0 %v1741
      %v1804 = vpop.f32.mrb[0].mxu0
      %v1805 = vadd.f32 0.0, %v1804
      %v1806 = vpop.f32.mrb[0].mxu0
      %v1807 = vpop.f32.mrb[0].mxu0
      %v1808 = vadd.f32 0.0, %v1807
      %v1809 = vpop.f32.mrb[0].mxu0
      %1810 = vdwg.mxu0
      %v1811 = vadd.f32 %v1708, %v1781
      %v1812 = vadd.f32 %v1709, %v1784
      %v1813 = vadd.f32 %v1710, %v1789
      %v1814 = vadd.f32 %v1711, %v1792
      %v1815 = vadd.f32 %v1712, %v1797
      %v1816 = vadd.f32 %v1713, %v1800
      %v1817 = vadd.f32 %v1714, %v1805
      %v1818 = vadd.f32 %v1715, %v1808
      %v1819 = vld [vmem:[%s274 + $0x28] sm:$0x3]
      %s1820 = scalar_lea.vmem %s280, 52
      %v1821 = vld [vmem:[%s1820] sm:$0xf]
      %v1823 = vunpack.c.l.b16 %v1819
      %v1824 = vpack.c.b16 %v1823, %v1823
      %v1826 = vshrl.u32 %v1721, 16
      %v1828 = vrot.slane %v1826, 1
      %v1829 = vshll.u32 %v1721, 16
      %v1831 = vrot.slane %v1829, 2
      %v1832 = vor.u32 %v1828, %v1831
      %v1833 = vrot.slane %v1604, 1
      %v1834 = vrot.slane %v1600, 2
      %v1835 = vor.u32 %v1833, %v1834
      %v1836 = vsel %vm655, %v1832, %v1835
      %v1837 = vrot.slane %v1612, 1
      %v1838 = vrot.slane %v1608, 2
      %v1839 = vor.u32 %v1837, %v1838
      %v1840 = vsel %vm655, %v1835, %v1839
      %v1841 = vrot.slane %v1620, 1
      %v1842 = vrot.slane %v1616, 2
      %v1843 = vor.u32 %v1841, %v1842
      %v1844 = vsel %vm655, %v1839, %v1843
      %v1846 = vshrl.u32 %v1824, 16
      %v1848 = vrot.slane %v1846, 1
      %v1849 = vshll.u32 %v1824, 16
      %v1851 = vrot.slane %v1849, 2
      %v1852 = vor.u32 %v1848, %v1851
      %v1853 = vsel %vm655, %v1843, %v1852
      %v1855 = vsel %vm387, %v1836, 0
      %v1858 = vsel %vm387, %v1840, 0
      %v1861 = vsel %vm387, %v1844, 0
      %v1864 = vsel %vm387, %v1853, 0
      %v1867 = vsel %vm400, %v1821, 0
      %1869 = vmatprep.subr.bf16.mxu0 0
      %1870 = vmatpush1.bf16.msra.mxu0 %v1867
      %1871 = vmatprep.subr.bf16.mxu0 0
      %1872 = vmatpush1.bf16.msra.mxu0 0
      %1873 = vmatprep.subr.bf16.mxu0 0
      %1874 = vmatpush1.bf16.msra.mxu0 0
      %1875 = vmatprep.subr.bf16.mxu0 0
      %1876 = vmatpush1.bf16.msra.mxu0 0
      %1877 = vmatprep.subr.bf16.mxu0 0
      %1878 = vmatpush1.bf16.msra.mxu0 0
      %1879 = vmatprep.subr.bf16.mxu0 0
      %1880 = vmatpush1.bf16.msra.mxu0 0
      %1881 = vmatprep.subr.bf16.mxu0 0
      %1882 = vmatpush1.bf16.msra.mxu0 0
      %1883 = vmatprep.subr.bf16.mxu0 0
      %1884 = vmatpush1.bf16.msra.mxu0 0
      %1885 = vmatprep.subr.bf16.mxu0 0
      %1886 = vmatpush1.bf16.msra.mxu0 0
      %1887 = vmatprep.subr.bf16.mxu0 0
      %1888 = vmatpush1.bf16.msra.mxu0 0
      %1889 = vmatprep.subr.bf16.mxu0 0
      %1890 = vmatpush1.bf16.msra.mxu0 0
      %1891 = vmatprep.subr.bf16.mxu0 0
      %1892 = vmatpush1.bf16.msra.mxu0 0
      %1893 = vmatprep.subr.bf16.mxu0 0
      %1894 = vmatpush1.bf16.msra.mxu0 0
      %1895 = vmatprep.subr.bf16.mxu0 0
      %1896 = vmatpush1.bf16.msra.mxu0 0
      %1897 = vmatprep.subr.bf16.mxu0 0
      %1898 = vmatpush1.bf16.msra.mxu0 0
      %1899 = vmatprep.subr.bf16.mxu0 0
      %1900 = vmatpush1.bf16.msra.mxu0 0
      %1901 = vmatprep.mubr.bf16.mxu0 0
      %1902 = vmatmul.mubr.bf16.gmra.mrb[0].mxu0 %v1855
      %v1903 = vpop.f32.mrb[0].mxu0
      %v1904 = vadd.f32 0.0, %v1903
      %v1905 = vpop.f32.mrb[0].mxu0
      %v1906 = vpop.f32.mrb[0].mxu0
      %v1907 = vadd.f32 0.0, %v1906
      %v1908 = vpop.f32.mrb[0].mxu0
      %1909 = vmatprep.mubr.bf16.mxu0 0
      %1910 = vmatmul.mubr.bf16.gmra.mrb[0].mxu0 %v1858
      %v1911 = vpop.f32.mrb[0].mxu0
      %v1912 = vadd.f32 0.0, %v1911
      %v1913 = vpop.f32.mrb[0].mxu0
      %v1914 = vpop.f32.mrb[0].mxu0
      %v1915 = vadd.f32 0.0, %v1914
      %v1916 = vpop.f32.mrb[0].mxu0
      %1917 = vmatprep.mubr.bf16.mxu0 0
      %1918 = vmatmul.mubr.bf16.gmra.mrb[0].mxu0 %v1861
      %v1919 = vpop.f32.mrb[0].mxu0
      %v1920 = vadd.f32 0.0, %v1919
      %v1921 = vpop.f32.mrb[0].mxu0
      %v1922 = vpop.f32.mrb[0].mxu0
      %v1923 = vadd.f32 0.0, %v1922
      %v1924 = vpop.f32.mrb[0].mxu0
      %1925 = vmatprep.mubr.bf16.mxu0 0
      %1926 = vmatmul.mubr.bf16.gmra.mrb[0].mxu0 %v1864
      %v1927 = vpop.f32.mrb[0].mxu0
      %v1928 = vadd.f32 0.0, %v1927
      %v1929 = vpop.f32.mrb[0].mxu0
      %v1930 = vpop.f32.mrb[0].mxu0
      %v1931 = vadd.f32 0.0, %v1930
      %v1932 = vpop.f32.mrb[0].mxu0
      %1933 = vdwg.mxu0
      %v1934 = vadd.f32 %v1811, %v1904
      %v1935 = vadd.f32 %v1812, %v1907
      %v1936 = vadd.f32 %v1813, %v1912
      %v1937 = vadd.f32 %v1814, %v1915
      %v1938 = vadd.f32 %v1815, %v1920
      %v1939 = vadd.f32 %v1816, %v1923
      %v1940 = vadd.f32 %v1817, %v1928
      %v1941 = vadd.f32 %v1818, %v1931
      %v1942 = vld [vmem:[%s274 + $0x8] sm:$0xc]
      %s1943 = scalar_lea.vmem %s280, 56
      %v1944 = vld [vmem:[%s1943] sm:$0xf]
      %v1946 = vunpack.c.l.b16 %v1942
      %v1947 = vpack.c.b16 %v1579, %v1946
      %v1948 = vrot.slane %v1947, 2
      %v1949 = vrot.slane %v1588, 2
      %v1950 = vsel %vm779, %v1948, %v1949
      %v1951 = vrot.slane %v1589, 2
      %v1952 = vsel %vm779, %v1949, %v1951
      %v1953 = vrot.slane %v1590, 2
      %v1954 = vsel %vm779, %v1951, %v1953
      %v1955 = vrot.slane %v1824, 2
      %v1956 = vsel %vm779, %v1953, %v1955
      %v1958 = vsel %vm387, %v1950, 0
      %v1961 = vsel %vm387, %v1952, 0
      %v1964 = vsel %vm387, %v1954, 0
      %v1967 = vsel %vm387, %v1956, 0
      %v1970 = vsel %vm400, %v1944, 0
      %1972 = vmatprep.subr.bf16.mxu0 0
      %1973 = vmatpush1.bf16.msra.mxu0 %v1970
      %1974 = vmatprep.subr.bf16.mxu0 0
      %1975 = vmatpush1.bf16.msra.mxu0 0
      %1976 = vmatprep.subr.bf16.mxu0 0
      %1977 = vmatpush1.bf16.msra.mxu0 0
      %1978 = vmatprep.subr.bf16.mxu0 0
      %1979 = vmatpush1.bf16.msra.mxu0 0
      %1980 = vmatprep.subr.bf16.mxu0 0
      %1981 = vmatpush1.bf16.msra.mxu0 0
      %1982 = vmatprep.subr.bf16.mxu0 0
      %1983 = vmatpush1.bf16.msra.mxu0 0
      %1984 = vmatprep.subr.bf16.mxu0 0
      %1985 = vmatpush1.bf16.msra.mxu0 0
      %1986 = vmatprep.subr.bf16.mxu0 0
      %1987 = vmatpush1.bf16.msra.mxu0 0
      %1988 = vmatprep.subr.bf16.mxu0 0
      %1989 = vmatpush1.bf16.msra.mxu0 0
      %1990 = vmatprep.subr.bf16.mxu0 0
      %1991 = vmatpush1.bf16.msra.mxu0 0
      %1992 = vmatprep.subr.bf16.mxu0 0
      %1993 = vmatpush1.bf16.msra.mxu0 0
      %1994 = vmatprep.subr.bf16.mxu0 0
      %1995 = vmatpush1.bf16.msra.mxu0 0
      %1996 = vmatprep.subr.bf16.mxu0 0
      %1997 = vmatpush1.bf16.msra.mxu0 0
      %1998 = vmatprep.subr.bf16.mxu0 0
      %1999 = vmatpush1.bf16.msra.mxu0 0
      %2000 = vmatprep.subr.bf16.mxu0 0
      %2001 = vmatpush1.bf16.msra.mxu0 0
      %2002 = vmatprep.subr.bf16.mxu0 0
      %2003 = vmatpush1.bf16.msra.mxu0 0
      %2004 = vmatprep.mubr.bf16.mxu0 0
      %2005 = vmatmul.mubr.bf16.gmra.mrb[0].mxu0 %v1958
      %v2006 = vpop.f32.mrb[0].mxu0
      %v2007 = vadd.f32 0.0, %v2006
      %v2008 = vpop.f32.mrb[0].mxu0
      %v2009 = vpop.f32.mrb[0].mxu0
      %v2010 = vadd.f32 0.0, %v2009
      %v2011 = vpop.f32.mrb[0].mxu0
      %2012 = vmatprep.mubr.bf16.mxu0 0
      %2013 = vmatmul.mubr.bf16.gmra.mrb[0].mxu0 %v1961
      %v2014 = vpop.f32.mrb[0].mxu0
      %v2015 = vadd.f32 0.0, %v2014
      %v2016 = vpop.f32.mrb[0].mxu0
      %v2017 = vpop.f32.mrb[0].mxu0
      %v2018 = vadd.f32 0.0, %v2017
      %v2019 = vpop.f32.mrb[0].mxu0
      %2020 = vmatprep.mubr.bf16.mxu0 0
      %2021 = vmatmul.mubr.bf16.gmra.mrb[0].mxu0 %v1964
      %v2022 = vpop.f32.mrb[0].mxu0
      %v2023 = vadd.f32 0.0, %v2022
      %v2024 = vpop.f32.mrb[0].mxu0
      %v2025 = vpop.f32.mrb[0].mxu0
      %v2026 = vadd.f32 0.0, %v2025
      %v2027 = vpop.f32.mrb[0].mxu0
      %2028 = vmatprep.mubr.bf16.mxu0 0
      %2029 = vmatmul.mubr.bf16.gmra.mrb[0].mxu0 %v1967
      %v2030 = vpop.f32.mrb[0].mxu0
      %v2031 = vadd.f32 0.0, %v2030
      %v2032 = vpop.f32.mrb[0].mxu0
      %v2033 = vpop.f32.mrb[0].mxu0
      %v2034 = vadd.f32 0.0, %v2033
      %v2035 = vpop.f32.mrb[0].mxu0
      %2036 = vdwg.mxu0
      %v2037 = vadd.f32 %v1934, %v2007
      %v2038 = vadd.f32 %v1935, %v2010
      %v2039 = vadd.f32 %v1936, %v2015
      %v2040 = vadd.f32 %v1937, %v2018
      %v2041 = vadd.f32 %v1938, %v2023
      %v2042 = vadd.f32 %v1939, %v2026
      %v2043 = vadd.f32 %v1940, %v2031
      %v2044 = vadd.f32 %v1941, %v2034
      %v2045 = vld [vmem:[%s274 + $0x28] sm:$0xf]
      %s2046 = scalar_lea.vmem %s280, 60
      %v2047 = vld [vmem:[%s2046] sm:$0xf]
      %v2049 = vunpack.c.l.b16 %v2045
      %v2050 = vpack.c.b16 %v1580, %v1579
      %v2051 = vpack.c.b16 %v1582, %v1581
      %v2052 = vpack.c.b16 %v1584, %v1583
      %v2053 = vpack.c.b16 %v2049, %v1585
      %v2055 = vsel %vm387, %v2050, 0
      %v2058 = vsel %vm387, %v2051, 0
      %v2061 = vsel %vm387, %v2052, 0
      %v2064 = vsel %vm387, %v2053, 0
      %v2067 = vsel %vm400, %v2047, 0
      %2069 = vmatprep.subr.bf16.mxu0 0
      %2070 = vmatpush1.bf16.msra.mxu0 %v2067
      %2071 = vmatprep.subr.bf16.mxu0 0
      %2072 = vmatpush1.bf16.msra.mxu0 0
      %2073 = vmatprep.subr.bf16.mxu0 0
      %2074 = vmatpush1.bf16.msra.mxu0 0
      %2075 = vmatprep.subr.bf16.mxu0 0
      %2076 = vmatpush1.bf16.msra.mxu0 0
      %2077 = vmatprep.subr.bf16.mxu0 0
      %2078 = vmatpush1.bf16.msra.mxu0 0
      %2079 = vmatprep.subr.bf16.mxu0 0
      %2080 = vmatpush1.bf16.msra.mxu0 0
      %2081 = vmatprep.subr.bf16.mxu0 0
      %2082 = vmatpush1.bf16.msra.mxu0 0
      %2083 = vmatprep.subr.bf16.mxu0 0
      %2084 = vmatpush1.bf16.msra.mxu0 0
      %2085 = vmatprep.subr.bf16.mxu0 0
      %2086 = vmatpush1.bf16.msra.mxu0 0
      %2087 = vmatprep.subr.bf16.mxu0 0
      %2088 = vmatpush1.bf16.msra.mxu0 0
      %2089 = vmatprep.subr.bf16.mxu0 0
      %2090 = vmatpush1.bf16.msra.mxu0 0
      %2091 = vmatprep.subr.bf16.mxu0 0
      %2092 = vmatpush1.bf16.msra.mxu0 0
      %2093 = vmatprep.subr.bf16.mxu0 0
      %2094 = vmatpush1.bf16.msra.mxu0 0
      %2095 = vmatprep.subr.bf16.mxu0 0
      %2096 = vmatpush1.bf16.msra.mxu0 0
      %2097 = vmatprep.subr.bf16.mxu0 0
      %2098 = vmatpush1.bf16.msra.mxu0 0
      %2099 = vmatprep.subr.bf16.mxu0 0
      %2100 = vmatpush1.bf16.msra.mxu0 0
      %2101 = vmatprep.mubr.bf16.mxu0 0
      %2102 = vmatmul.mubr.bf16.gmra.mrb[0].mxu0 %v2055
      %v2103 = vpop.f32.mrb[0].mxu0
      %v2104 = vadd.f32 0.0, %v2103
      %v2105 = vpop.f32.mrb[0].mxu0
      %v2106 = vpop.f32.mrb[0].mxu0
      %v2107 = vadd.f32 0.0, %v2106
      %v2108 = vpop.f32.mrb[0].mxu0
      %2109 = vmatprep.mubr.bf16.mxu0 0
      %2110 = vmatmul.mubr.bf16.gmra.mrb[0].mxu0 %v2058
      %v2111 = vpop.f32.mrb[0].mxu0
      %v2112 = vadd.f32 0.0, %v2111
      %v2113 = vpop.f32.mrb[0].mxu0
      %v2114 = vpop.f32.mrb[0].mxu0
      %v2115 = vadd.f32 0.0, %v2114
      %v2116 = vpop.f32.mrb[0].mxu0
      %2117 = vmatprep.mubr.bf16.mxu0 0
      %2118 = vmatmul.mubr.bf16.gmra.mrb[0].mxu0 %v2061
      %v2119 = vpop.f32.mrb[0].mxu0
      %v2120 = vadd.f32 0.0, %v2119
      %v2121 = vpop.f32.mrb[0].mxu0
      %v2122 = vpop.f32.mrb[0].mxu0
      %v2123 = vadd.f32 0.0, %v2122
      %v2124 = vpop.f32.mrb[0].mxu0
      %2125 = vmatprep.mubr.bf16.mxu0 0
      %2126 = vmatmul.mubr.bf16.gmra.mrb[0].mxu0 %v2064
      %v2127 = vpop.f32.mrb[0].mxu0
      %v2128 = vadd.f32 0.0, %v2127
      %v2129 = vpop.f32.mrb[0].mxu0
      %v2130 = vpop.f32.mrb[0].mxu0
      %v2131 = vadd.f32 0.0, %v2130
      %v2132 = vpop.f32.mrb[0].mxu0
      %2133 = vdwg.mxu0
      %v2134 = vadd.f32 %v2037, %v2104
      %v2135 = vadd.f32 %v2038, %v2107
      %v2136 = vadd.f32 %v2039, %v2112
      %v2137 = vadd.f32 %v2040, %v2115
      %v2138 = vadd.f32 %v2041, %v2120
      %v2139 = vadd.f32 %v2042, %v2123
      %v2140 = vadd.f32 %v2043, %v2128
      %v2141 = vadd.f32 %v2044, %v2131
      %v2142 = vld [vmem:[%s274 + $0xc] sm:$0xf]
      %v2143 = vld [vmem:[%s274 + $0x10] sm:$0xf]
      %v2144 = vld [vmem:[%s274 + $0x14] sm:$0xf]
      %v2145 = vld [vmem:[%s274 + $0x18] sm:$0xf]
      %v2146 = vld [vmem:[%s274 + $0x1c] sm:$0xf]
      %v2147 = vld [vmem:[%s274 + $0x20] sm:$0xf]
      %v2148 = vld [vmem:[%s274 + $0x24] sm:$0xf]
      %v2149 = vld [vmem:[%s274 + $0x28] sm:$0xf]
      %v2150 = vld [vmem:[%s274 + $0x2c] sm:$0x1]
      %s2151 = scalar_lea.vmem %s280, 64
      %v2152 = vld [vmem:[%s2151] sm:$0xf]
      %v2162 = vunpack.c.l.b16 %v2142
      %v2163 = vunpack.c.l.b16 %v2143
      %v2164 = vunpack.c.l.b16 %v2144
      %v2165 = vunpack.c.l.b16 %v2145
      %v2166 = vunpack.c.l.b16 %v2146
      %v2167 = vunpack.c.l.b16 %v2147
      %v2168 = vunpack.c.l.b16 %v2148
      %v2169 = vunpack.c.l.b16 %v2149
      %v2170 = vunpack.c.l.b16 %v2150
      %v2171 = vpack.c.b16 %v2163, %v2162
      %v2172 = vpack.c.b16 %v2165, %v2164
      %v2173 = vpack.c.b16 %v2167, %v2166
      %v2174 = vpack.c.b16 %v2169, %v2168
      %v2175 = vpack.c.b16 %v2170, %v2170
      %v2177 = vshrl.u32 %v2171, 16
      %v2179 = vshll.u32 %v2171, 16
      %v2181 = vrot.slane %v2179, 1
      %v2182 = vor.u32 %v2177, %v2181
      %v2184 = vshll.u32 %v2172, 16
      %v2186 = vrot.slane %v2184, 1
      %v2187 = vsel %vm350, %v2182, %v2186
      %v2188 = vshrl.u32 %v2172, 16
      %v2190 = vor.u32 %v2188, %v2186
      %v2192 = vshll.u32 %v2173, 16
      %v2194 = vrot.slane %v2192, 1
      %v2195 = vsel %vm350, %v2190, %v2194
      %v2196 = vshrl.u32 %v2173, 16
      %v2198 = vor.u32 %v2196, %v2194
      %v2200 = vshll.u32 %v2174, 16
      %v2202 = vrot.slane %v2200, 1
      %v2203 = vsel %vm350, %v2198, %v2202
      %v2204 = vshrl.u32 %v2174, 16
      %v2206 = vor.u32 %v2204, %v2202
      %v2208 = vshll.u32 %v2175, 16
      %v2210 = vrot.slane %v2208, 1
      %v2211 = vsel %vm350, %v2206, %v2210
      %v2213 = vsel %vm387, %v2187, 0
      %v2216 = vsel %vm387, %v2195, 0
      %v2219 = vsel %vm387, %v2203, 0
      %v2222 = vsel %vm387, %v2211, 0
      %v2225 = vsel %vm400, %v2152, 0
      %2227 = vmatprep.subr.bf16.mxu0 0
      %2228 = vmatpush1.bf16.msra.mxu0 %v2225
      %2229 = vmatprep.subr.bf16.mxu0 0
      %2230 = vmatpush1.bf16.msra.mxu0 0
      %2231 = vmatprep.subr.bf16.mxu0 0
      %2232 = vmatpush1.bf16.msra.mxu0 0
      %2233 = vmatprep.subr.bf16.mxu0 0
      %2234 = vmatpush1.bf16.msra.mxu0 0
      %2235 = vmatprep.subr.bf16.mxu0 0
      %2236 = vmatpush1.bf16.msra.mxu0 0
      %2237 = vmatprep.subr.bf16.mxu0 0
      %2238 = vmatpush1.bf16.msra.mxu0 0
      %2239 = vmatprep.subr.bf16.mxu0 0
      %2240 = vmatpush1.bf16.msra.mxu0 0
      %2241 = vmatprep.subr.bf16.mxu0 0
      %2242 = vmatpush1.bf16.msra.mxu0 0
      %2243 = vmatprep.subr.bf16.mxu0 0
      %2244 = vmatpush1.bf16.msra.mxu0 0
      %2245 = vmatprep.subr.bf16.mxu0 0
      %2246 = vmatpush1.bf16.msra.mxu0 0
      %2247 = vmatprep.subr.bf16.mxu0 0
      %2248 = vmatpush1.bf16.msra.mxu0 0
      %2249 = vmatprep.subr.bf16.mxu0 0
      %2250 = vmatpush1.bf16.msra.mxu0 0
      %2251 = vmatprep.subr.bf16.mxu0 0
      %2252 = vmatpush1.bf16.msra.mxu0 0
      %2253 = vmatprep.subr.bf16.mxu0 0
      %2254 = vmatpush1.bf16.msra.mxu0 0
      %2255 = vmatprep.subr.bf16.mxu0 0
      %2256 = vmatpush1.bf16.msra.mxu0 0
      %2257 = vmatprep.subr.bf16.mxu0 0
      %2258 = vmatpush1.bf16.msra.mxu0 0
      %2259 = vmatprep.mubr.bf16.mxu0 0
      %2260 = vmatmul.mubr.bf16.gmra.mrb[0].mxu0 %v2213
      %v2261 = vpop.f32.mrb[0].mxu0
      %v2262 = vadd.f32 0.0, %v2261
      %v2263 = vpop.f32.mrb[0].mxu0
      %v2264 = vpop.f32.mrb[0].mxu0
      %v2265 = vadd.f32 0.0, %v2264
      %v2266 = vpop.f32.mrb[0].mxu0
      %2267 = vmatprep.mubr.bf16.mxu0 0
      %2268 = vmatmul.mubr.bf16.gmra.mrb[0].mxu0 %v2216
      %v2269 = vpop.f32.mrb[0].mxu0
      %v2270 = vadd.f32 0.0, %v2269
      %v2271 = vpop.f32.mrb[0].mxu0
      %v2272 = vpop.f32.mrb[0].mxu0
      %v2273 = vadd.f32 0.0, %v2272
      %v2274 = vpop.f32.mrb[0].mxu0
      %2275 = vmatprep.mubr.bf16.mxu0 0
      %2276 = vmatmul.mubr.bf16.gmra.mrb[0].mxu0 %v2219
      %v2277 = vpop.f32.mrb[0].mxu0
      %v2278 = vadd.f32 0.0, %v2277
      %v2279 = vpop.f32.mrb[0].mxu0
      %v2280 = vpop.f32.mrb[0].mxu0
      %v2281 = vadd.f32 0.0, %v2280
      %v2282 = vpop.f32.mrb[0].mxu0
      %2283 = vmatprep.mubr.bf16.mxu0 0
      %2284 = vmatmul.mubr.bf16.gmra.mrb[0].mxu0 %v2222
      %v2285 = vpop.f32.mrb[0].mxu0
      %v2286 = vadd.f32 0.0, %v2285
      %v2287 = vpop.f32.mrb[0].mxu0
      %v2288 = vpop.f32.mrb[0].mxu0
      %v2289 = vadd.f32 0.0, %v2288
      %v2290 = vpop.f32.mrb[0].mxu0
      %2291 = vdwg.mxu0
      %v2292 = vadd.f32 %v2134, %v2262
      %v2293 = vadd.f32 %v2135, %v2265
      %v2294 = vadd.f32 %v2136, %v2270
      %v2295 = vadd.f32 %v2137, %v2273
      %v2296 = vadd.f32 %v2138, %v2278
      %v2297 = vadd.f32 %v2139, %v2281
      %v2298 = vadd.f32 %v2140, %v2286
      %v2299 = vadd.f32 %v2141, %v2289
      %v2300 = vld [vmem:[%s274 + $0xc] sm:$0xe]
      %s2301 = scalar_lea.vmem %s280, 68
      %v2302 = vld [vmem:[%s2301] sm:$0xf]
      %v2304 = vunpack.c.l.b16 %v2300
      %v2305 = vpack.c.b16 %v2163, %v2304
      %v2306 = vrot.slane %v2305, 1
      %v2307 = vrot.slane %v2172, 1
      %v2308 = vsel %vm551, %v2306, %v2307
      %v2309 = vrot.slane %v2173, 1
      %v2310 = vsel %vm551, %v2307, %v2309
      %v2311 = vrot.slane %v2174, 1
      %v2312 = vsel %vm551, %v2309, %v2311
      %v2313 = vrot.slane %v2175, 1
      %v2314 = vsel %vm551, %v2311, %v2313
      %v2316 = vsel %vm387, %v2308, 0
      %v2319 = vsel %vm387, %v2310, 0
      %v2322 = vsel %vm387, %v2312, 0
      %v2325 = vsel %vm387, %v2314, 0
      %v2328 = vsel %vm400, %v2302, 0
      %2330 = vmatprep.subr.bf16.mxu0 0
      %2331 = vmatpush1.bf16.msra.mxu0 %v2328
      %2332 = vmatprep.subr.bf16.mxu0 0
      %2333 = vmatpush1.bf16.msra.mxu0 0
      %2334 = vmatprep.subr.bf16.mxu0 0
      %2335 = vmatpush1.bf16.msra.mxu0 0
      %2336 = vmatprep.subr.bf16.mxu0 0
      %2337 = vmatpush1.bf16.msra.mxu0 0
      %2338 = vmatprep.subr.bf16.mxu0 0
      %2339 = vmatpush1.bf16.msra.mxu0 0
      %2340 = vmatprep.subr.bf16.mxu0 0
      %2341 = vmatpush1.bf16.msra.mxu0 0
      %2342 = vmatprep.subr.bf16.mxu0 0
      %2343 = vmatpush1.bf16.msra.mxu0 0
      %2344 = vmatprep.subr.bf16.mxu0 0
      %2345 = vmatpush1.bf16.msra.mxu0 0
      %2346 = vmatprep.subr.bf16.mxu0 0
      %2347 = vmatpush1.bf16.msra.mxu0 0
      %2348 = vmatprep.subr.bf16.mxu0 0
      %2349 = vmatpush1.bf16.msra.mxu0 0
      %2350 = vmatprep.subr.bf16.mxu0 0
      %2351 = vmatpush1.bf16.msra.mxu0 0
      %2352 = vmatprep.subr.bf16.mxu0 0
      %2353 = vmatpush1.bf16.msra.mxu0 0
      %2354 = vmatprep.subr.bf16.mxu0 0
      %2355 = vmatpush1.bf16.msra.mxu0 0
      %2356 = vmatprep.subr.bf16.mxu0 0
      %2357 = vmatpush1.bf16.msra.mxu0 0
      %2358 = vmatprep.subr.bf16.mxu0 0
      %2359 = vmatpush1.bf16.msra.mxu0 0
      %2360 = vmatprep.subr.bf16.mxu0 0
      %2361 = vmatpush1.bf16.msra.mxu0 0
      %2362 = vmatprep.mubr.bf16.mxu0 0
      %2363 = vmatmul.mubr.bf16.gmra.mrb[0].mxu0 %v2316
      %v2364 = vpop.f32.mrb[0].mxu0
      %v2365 = vadd.f32 0.0, %v2364
      %v2366 = vpop.f32.mrb[0].mxu0
      %v2367 = vpop.f32.mrb[0].mxu0
      %v2368 = vadd.f32 0.0, %v2367
      %v2369 = vpop.f32.mrb[0].mxu0
      %2370 = vmatprep.mubr.bf16.mxu0 0
      %2371 = vmatmul.mubr.bf16.gmra.mrb[0].mxu0 %v2319
      %v2372 = vpop.f32.mrb[0].mxu0
      %v2373 = vadd.f32 0.0, %v2372
      %v2374 = vpop.f32.mrb[0].mxu0
      %v2375 = vpop.f32.mrb[0].mxu0
      %v2376 = vadd.f32 0.0, %v2375
      %v2377 = vpop.f32.mrb[0].mxu0
      %2378 = vmatprep.mubr.bf16.mxu0 0
      %2379 = vmatmul.mubr.bf16.gmra.mrb[0].mxu0 %v2322
      %v2380 = vpop.f32.mrb[0].mxu0
      %v2381 = vadd.f32 0.0, %v2380
      %v2382 = vpop.f32.mrb[0].mxu0
      %v2383 = vpop.f32.mrb[0].mxu0
      %v2384 = vadd.f32 0.0, %v2383
      %v2385 = vpop.f32.mrb[0].mxu0
      %2386 = vmatprep.mubr.bf16.mxu0 0
      %2387 = vmatmul.mubr.bf16.gmra.mrb[0].mxu0 %v2325
      %v2388 = vpop.f32.mrb[0].mxu0
      %v2389 = vadd.f32 0.0, %v2388
      %v2390 = vpop.f32.mrb[0].mxu0
      %v2391 = vpop.f32.mrb[0].mxu0
      %v2392 = vadd.f32 0.0, %v2391
      %v2393 = vpop.f32.mrb[0].mxu0
      %2394 = vdwg.mxu0
      %v2395 = vadd.f32 %v2292, %v2365
      %v2396 = vadd.f32 %v2293, %v2368
      %v2397 = vadd.f32 %v2294, %v2373
      %v2398 = vadd.f32 %v2295, %v2376
      %v2399 = vadd.f32 %v2296, %v2381
      %v2400 = vadd.f32 %v2297, %v2384
      %v2401 = vadd.f32 %v2298, %v2389
      %v2402 = vadd.f32 %v2299, %v2392
      %v2403 = vld [vmem:[%s274 + $0x2c] sm:$0x3]
      %s2404 = scalar_lea.vmem %s280, 72
      %v2405 = vld [vmem:[%s2404] sm:$0xf]
      %v2407 = vunpack.c.l.b16 %v2403
      %v2408 = vpack.c.b16 %v2407, %v2407
      %v2410 = vshrl.u32 %v2305, 16
      %v2412 = vrot.slane %v2410, 1
      %v2413 = vshll.u32 %v2305, 16
      %v2415 = vrot.slane %v2413, 2
      %v2416 = vor.u32 %v2412, %v2415
      %v2417 = vrot.slane %v2188, 1
      %v2418 = vrot.slane %v2184, 2
      %v2419 = vor.u32 %v2417, %v2418
      %v2420 = vsel %vm655, %v2416, %v2419
      %v2421 = vrot.slane %v2196, 1
      %v2422 = vrot.slane %v2192, 2
      %v2423 = vor.u32 %v2421, %v2422
      %v2424 = vsel %vm655, %v2419, %v2423
      %v2425 = vrot.slane %v2204, 1
      %v2426 = vrot.slane %v2200, 2
      %v2427 = vor.u32 %v2425, %v2426
      %v2428 = vsel %vm655, %v2423, %v2427
      %v2430 = vshrl.u32 %v2408, 16
      %v2432 = vrot.slane %v2430, 1
      %v2433 = vshll.u32 %v2408, 16
      %v2435 = vrot.slane %v2433, 2
      %v2436 = vor.u32 %v2432, %v2435
      %v2437 = vsel %vm655, %v2427, %v2436
      %v2439 = vsel %vm387, %v2420, 0
      %v2442 = vsel %vm387, %v2424, 0
      %v2445 = vsel %vm387, %v2428, 0
      %v2448 = vsel %vm387, %v2437, 0
      %v2451 = vsel %vm400, %v2405, 0
      %2453 = vmatprep.subr.bf16.mxu0 0
      %2454 = vmatpush1.bf16.msra.mxu0 %v2451
      %2455 = vmatprep.subr.bf16.mxu0 0
      %2456 = vmatpush1.bf16.msra.mxu0 0
      %2457 = vmatprep.subr.bf16.mxu0 0
      %2458 = vmatpush1.bf16.msra.mxu0 0
      %2459 = vmatprep.subr.bf16.mxu0 0
      %2460 = vmatpush1.bf16.msra.mxu0 0
      %2461 = vmatprep.subr.bf16.mxu0 0
      %2462 = vmatpush1.bf16.msra.mxu0 0
      %2463 = vmatprep.subr.bf16.mxu0 0
      %2464 = vmatpush1.bf16.msra.mxu0 0
      %2465 = vmatprep.subr.bf16.mxu0 0
      %2466 = vmatpush1.bf16.msra.mxu0 0
      %2467 = vmatprep.subr.bf16.mxu0 0
      %2468 = vmatpush1.bf16.msra.mxu0 0
      %2469 = vmatprep.subr.bf16.mxu0 0
      %2470 = vmatpush1.bf16.msra.mxu0 0
      %2471 = vmatprep.subr.bf16.mxu0 0
      %2472 = vmatpush1.bf16.msra.mxu0 0
      %2473 = vmatprep.subr.bf16.mxu0 0
      %2474 = vmatpush1.bf16.msra.mxu0 0
      %2475 = vmatprep.subr.bf16.mxu0 0
      %2476 = vmatpush1.bf16.msra.mxu0 0
      %2477 = vmatprep.subr.bf16.mxu0 0
      %2478 = vmatpush1.bf16.msra.mxu0 0
      %2479 = vmatprep.subr.bf16.mxu0 0
      %2480 = vmatpush1.bf16.msra.mxu0 0
      %2481 = vmatprep.subr.bf16.mxu0 0
      %2482 = vmatpush1.bf16.msra.mxu0 0
      %2483 = vmatprep.subr.bf16.mxu0 0
      %2484 = vmatpush1.bf16.msra.mxu0 0
      %2485 = vmatprep.mubr.bf16.mxu0 0
      %2486 = vmatmul.mubr.bf16.gmra.mrb[0].mxu0 %v2439
      %v2487 = vpop.f32.mrb[0].mxu0
      %v2488 = vadd.f32 0.0, %v2487
      %v2489 = vpop.f32.mrb[0].mxu0
      %v2490 = vpop.f32.mrb[0].mxu0
      %v2491 = vadd.f32 0.0, %v2490
      %v2492 = vpop.f32.mrb[0].mxu0
      %2493 = vmatprep.mubr.bf16.mxu0 0
      %2494 = vmatmul.mubr.bf16.gmra.mrb[0].mxu0 %v2442
      %v2495 = vpop.f32.mrb[0].mxu0
      %v2496 = vadd.f32 0.0, %v2495
      %v2497 = vpop.f32.mrb[0].mxu0
      %v2498 = vpop.f32.mrb[0].mxu0
      %v2499 = vadd.f32 0.0, %v2498
      %v2500 = vpop.f32.mrb[0].mxu0
      %2501 = vmatprep.mubr.bf16.mxu0 0
      %2502 = vmatmul.mubr.bf16.gmra.mrb[0].mxu0 %v2445
      %v2503 = vpop.f32.mrb[0].mxu0
      %v2504 = vadd.f32 0.0, %v2503
      %v2505 = vpop.f32.mrb[0].mxu0
      %v2506 = vpop.f32.mrb[0].mxu0
      %v2507 = vadd.f32 0.0, %v2506
      %v2508 = vpop.f32.mrb[0].mxu0
      %2509 = vmatprep.mubr.bf16.mxu0 0
      %2510 = vmatmul.mubr.bf16.gmra.mrb[0].mxu0 %v2448
      %v2511 = vpop.f32.mrb[0].mxu0
      %v2512 = vadd.f32 0.0, %v2511
      %v2513 = vpop.f32.mrb[0].mxu0
      %v2514 = vpop.f32.mrb[0].mxu0
      %v2515 = vadd.f32 0.0, %v2514
      %v2516 = vpop.f32.mrb[0].mxu0
      %2517 = vdwg.mxu0
      %v2518 = vadd.f32 %v2395, %v2488
      %v2519 = vadd.f32 %v2396, %v2491
      %v2520 = vadd.f32 %v2397, %v2496
      %v2521 = vadd.f32 %v2398, %v2499
      %v2522 = vadd.f32 %v2399, %v2504
      %v2523 = vadd.f32 %v2400, %v2507
      %v2524 = vadd.f32 %v2401, %v2512
      %v2525 = vadd.f32 %v2402, %v2515
      %v2526 = vld [vmem:[%s274 + $0xc] sm:$0xc]
      %s2527 = scalar_lea.vmem %s280, 76
      %v2528 = vld [vmem:[%s2527] sm:$0xf]
      %v2530 = vunpack.c.l.b16 %v2526
      %v2531 = vpack.c.b16 %v2163, %v2530
      %v2532 = vrot.slane %v2531, 2
      %v2533 = vrot.slane %v2172, 2
      %v2534 = vsel %vm779, %v2532, %v2533
      %v2535 = vrot.slane %v2173, 2
      %v2536 = vsel %vm779, %v2533, %v2535
      %v2537 = vrot.slane %v2174, 2
      %v2538 = vsel %vm779, %v2535, %v2537
      %v2539 = vrot.slane %v2408, 2
      %v2540 = vsel %vm779, %v2537, %v2539
      %v2542 = vsel %vm387, %v2534, 0
      %v2545 = vsel %vm387, %v2536, 0
      %v2548 = vsel %vm387, %v2538, 0
      %v2551 = vsel %vm387, %v2540, 0
      %v2554 = vsel %vm400, %v2528, 0
      %2556 = vmatprep.subr.bf16.mxu0 0
      %2557 = vmatpush1.bf16.msra.mxu0 %v2554
      %2558 = vmatprep.subr.bf16.mxu0 0
      %2559 = vmatpush1.bf16.msra.mxu0 0
      %2560 = vmatprep.subr.bf16.mxu0 0
      %2561 = vmatpush1.bf16.msra.mxu0 0
      %2562 = vmatprep.subr.bf16.mxu0 0
      %2563 = vmatpush1.bf16.msra.mxu0 0
      %2564 = vmatprep.subr.bf16.mxu0 0
      %2565 = vmatpush1.bf16.msra.mxu0 0
      %2566 = vmatprep.subr.bf16.mxu0 0
      %2567 = vmatpush1.bf16.msra.mxu0 0
      %2568 = vmatprep.subr.bf16.mxu0 0
      %2569 = vmatpush1.bf16.msra.mxu0 0
      %2570 = vmatprep.subr.bf16.mxu0 0
      %2571 = vmatpush1.bf16.msra.mxu0 0
      %2572 = vmatprep.subr.bf16.mxu0 0
      %2573 = vmatpush1.bf16.msra.mxu0 0
      %2574 = vmatprep.subr.bf16.mxu0 0
      %2575 = vmatpush1.bf16.msra.mxu0 0
      %2576 = vmatprep.subr.bf16.mxu0 0
      %2577 = vmatpush1.bf16.msra.mxu0 0
      %2578 = vmatprep.subr.bf16.mxu0 0
      %2579 = vmatpush1.bf16.msra.mxu0 0
      %2580 = vmatprep.subr.bf16.mxu0 0
      %2581 = vmatpush1.bf16.msra.mxu0 0
      %2582 = vmatprep.subr.bf16.mxu0 0
      %2583 = vmatpush1.bf16.msra.mxu0 0
      %2584 = vmatprep.subr.bf16.mxu0 0
      %2585 = vmatpush1.bf16.msra.mxu0 0
      %2586 = vmatprep.subr.bf16.mxu0 0
      %2587 = vmatpush1.bf16.msra.mxu0 0
      %2588 = vmatprep.mubr.bf16.mxu0 0
      %2589 = vmatmul.mubr.bf16.gmra.mrb[0].mxu0 %v2542
      %v2590 = vpop.f32.mrb[0].mxu0
      %v2591 = vadd.f32 0.0, %v2590
      %v2592 = vpop.f32.mrb[0].mxu0
      %v2593 = vpop.f32.mrb[0].mxu0
      %v2594 = vadd.f32 0.0, %v2593
      %v2595 = vpop.f32.mrb[0].mxu0
      %2596 = vmatprep.mubr.bf16.mxu0 0
      %2597 = vmatmul.mubr.bf16.gmra.mrb[0].mxu0 %v2545
      %v2598 = vpop.f32.mrb[0].mxu0
      %v2599 = vadd.f32 0.0, %v2598
      %v2600 = vpop.f32.mrb[0].mxu0
      %v2601 = vpop.f32.mrb[0].mxu0
      %v2602 = vadd.f32 0.0, %v2601
      %v2603 = vpop.f32.mrb[0].mxu0
      %2604 = vmatprep.mubr.bf16.mxu0 0
      %2605 = vmatmul.mubr.bf16.gmra.mrb[0].mxu0 %v2548
      %v2606 = vpop.f32.mrb[0].mxu0
      %v2607 = vadd.f32 0.0, %v2606
      %v2608 = vpop.f32.mrb[0].mxu0
      %v2609 = vpop.f32.mrb[0].mxu0
      %v2610 = vadd.f32 0.0, %v2609
      %v2611 = vpop.f32.mrb[0].mxu0
      %2612 = vmatprep.mubr.bf16.mxu0 0
      %2613 = vmatmul.mubr.bf16.gmra.mrb[0].mxu0 %v2551
      %v2614 = vpop.f32.mrb[0].mxu0
      %v2615 = vadd.f32 0.0, %v2614
      %v2616 = vpop.f32.mrb[0].mxu0
      %v2617 = vpop.f32.mrb[0].mxu0
      %v2618 = vadd.f32 0.0, %v2617
      %v2619 = vpop.f32.mrb[0].mxu0
      %2620 = vdwg.mxu0
      %v2621 = vadd.f32 %v2518, %v2591
      %v2622 = vadd.f32 %v2519, %v2594
      %v2623 = vadd.f32 %v2520, %v2599
      %v2624 = vadd.f32 %v2521, %v2602
      %v2625 = vadd.f32 %v2522, %v2607
      %v2626 = vadd.f32 %v2523, %v2610
      %v2627 = vadd.f32 %v2524, %v2615
      %v2628 = vadd.f32 %v2525, %v2618
      %v2629 = vld [vmem:[%s274 + $0x2c] sm:$0xf]
      %s2630 = scalar_lea.vmem %s280, 80
      %v2631 = vld [vmem:[%s2630] sm:$0xf]
      %v2633 = vunpack.c.l.b16 %v2629
      %v2634 = vpack.c.b16 %v2164, %v2163
      %v2635 = vpack.c.b16 %v2166, %v2165
      %v2636 = vpack.c.b16 %v2168, %v2167
      %v2637 = vpack.c.b16 %v2633, %v2169
      %v2639 = vsel %vm387, %v2634, 0
      %v2642 = vsel %vm387, %v2635, 0
      %v2645 = vsel %vm387, %v2636, 0
      %v2648 = vsel %vm387, %v2637, 0
      %v2651 = vsel %vm400, %v2631, 0
      %2653 = vmatprep.subr.bf16.mxu0 0
      %2654 = vmatpush1.bf16.msra.mxu0 %v2651
      %2655 = vmatprep.subr.bf16.mxu0 0
      %2656 = vmatpush1.bf16.msra.mxu0 0
      %2657 = vmatprep.subr.bf16.mxu0 0
      %2658 = vmatpush1.bf16.msra.mxu0 0
      %2659 = vmatprep.subr.bf16.mxu0 0
      %2660 = vmatpush1.bf16.msra.mxu0 0
      %2661 = vmatprep.subr.bf16.mxu0 0
      %2662 = vmatpush1.bf16.msra.mxu0 0
      %2663 = vmatprep.subr.bf16.mxu0 0
      %2664 = vmatpush1.bf16.msra.mxu0 0
      %2665 = vmatprep.subr.bf16.mxu0 0
      %2666 = vmatpush1.bf16.msra.mxu0 0
      %2667 = vmatprep.subr.bf16.mxu0 0
      %2668 = vmatpush1.bf16.msra.mxu0 0
      %2669 = vmatprep.subr.bf16.mxu0 0
      %2670 = vmatpush1.bf16.msra.mxu0 0
      %2671 = vmatprep.subr.bf16.mxu0 0
      %2672 = vmatpush1.bf16.msra.mxu0 0
      %2673 = vmatprep.subr.bf16.mxu0 0
      %2674 = vmatpush1.bf16.msra.mxu0 0
      %2675 = vmatprep.subr.bf16.mxu0 0
      %2676 = vmatpush1.bf16.msra.mxu0 0
      %2677 = vmatprep.subr.bf16.mxu0 0
      %2678 = vmatpush1.bf16.msra.mxu0 0
      %2679 = vmatprep.subr.bf16.mxu0 0
      %2680 = vmatpush1.bf16.msra.mxu0 0
      %2681 = vmatprep.subr.bf16.mxu0 0
      %2682 = vmatpush1.bf16.msra.mxu0 0
      %2683 = vmatprep.subr.bf16.mxu0 0
      %2684 = vmatpush1.bf16.msra.mxu0 0
      %2685 = vmatprep.mubr.bf16.mxu0 0
      %2686 = vmatmul.mubr.bf16.gmra.mrb[0].mxu0 %v2639
      %v2687 = vpop.f32.mrb[0].mxu0
      %v2688 = vadd.f32 0.0, %v2687
      %v2689 = vpop.f32.mrb[0].mxu0
      %v2690 = vpop.f32.mrb[0].mxu0
      %v2691 = vadd.f32 0.0, %v2690
      %v2692 = vpop.f32.mrb[0].mxu0
      %2693 = vmatprep.mubr.bf16.mxu0 0
      %2694 = vmatmul.mubr.bf16.gmra.mrb[0].mxu0 %v2642
      %v2695 = vpop.f32.mrb[0].mxu0
      %v2696 = vadd.f32 0.0, %v2695
      %v2697 = vpop.f32.mrb[0].mxu0
      %v2698 = vpop.f32.mrb[0].mxu0
      %v2699 = vadd.f32 0.0, %v2698
      %v2700 = vpop.f32.mrb[0].mxu0
      %2701 = vmatprep.mubr.bf16.mxu0 0
      %2702 = vmatmul.mubr.bf16.gmra.mrb[0].mxu0 %v2645
      %v2703 = vpop.f32.mrb[0].mxu0
      %v2704 = vadd.f32 0.0, %v2703
      %v2705 = vpop.f32.mrb[0].mxu0
      %v2706 = vpop.f32.mrb[0].mxu0
      %v2707 = vadd.f32 0.0, %v2706
      %v2708 = vpop.f32.mrb[0].mxu0
      %2709 = vmatprep.mubr.bf16.mxu0 0
      %2710 = vmatmul.mubr.bf16.gmra.mrb[0].mxu0 %v2648
      %v2711 = vpop.f32.mrb[0].mxu0
      %v2712 = vadd.f32 0.0, %v2711
      %v2713 = vpop.f32.mrb[0].mxu0
      %v2714 = vpop.f32.mrb[0].mxu0
      %v2715 = vadd.f32 0.0, %v2714
      %v2716 = vpop.f32.mrb[0].mxu0
      %2717 = vdwg.mxu0
      %v2718 = vadd.f32 %v2621, %v2688
      %v2719 = vadd.f32 %v2622, %v2691
      %v2720 = vadd.f32 %v2623, %v2696
      %v2721 = vadd.f32 %v2624, %v2699
      %v2722 = vadd.f32 %v2625, %v2704
      %v2723 = vadd.f32 %v2626, %v2707
      %v2724 = vadd.f32 %v2627, %v2712
      %v2725 = vadd.f32 %v2628, %v2715
      %v2726 = vld [vmem:[%s274 + $0x10] sm:$0xf]
      %v2727 = vld [vmem:[%s274 + $0x14] sm:$0xf]
      %v2728 = vld [vmem:[%s274 + $0x18] sm:$0xf]
      %v2729 = vld [vmem:[%s274 + $0x1c] sm:$0xf]
      %v2730 = vld [vmem:[%s274 + $0x20] sm:$0xf]
      %v2731 = vld [vmem:[%s274 + $0x24] sm:$0xf]
      %v2732 = vld [vmem:[%s274 + $0x28] sm:$0xf]
      %v2733 = vld [vmem:[%s274 + $0x2c] sm:$0xf]
      %v2734 = vld [vmem:[%s274 + $0x30] sm:$0x1]
      %s2735 = scalar_lea.vmem %s280, 84
      %v2736 = vld [vmem:[%s2735] sm:$0xf]
      %v2746 = vunpack.c.l.b16 %v2726
      %v2747 = vunpack.c.l.b16 %v2727
      %v2748 = vunpack.c.l.b16 %v2728
      %v2749 = vunpack.c.l.b16 %v2729
      %v2750 = vunpack.c.l.b16 %v2730
      %v2751 = vunpack.c.l.b16 %v2731
      %v2752 = vunpack.c.l.b16 %v2732
      %v2753 = vunpack.c.l.b16 %v2733
      %v2754 = vunpack.c.l.b16 %v2734
      %v2755 = vpack.c.b16 %v2747, %v2746
      %v2756 = vpack.c.b16 %v2749, %v2748
      %v2757 = vpack.c.b16 %v2751, %v2750
      %v2758 = vpack.c.b16 %v2753, %v2752
      %v2759 = vpack.c.b16 %v2754, %v2754
      %v2761 = vshrl.u32 %v2755, 16
      %v2763 = vshll.u32 %v2755, 16
      %v2765 = vrot.slane %v2763, 1
      %v2766 = vor.u32 %v2761, %v2765
      %v2768 = vshll.u32 %v2756, 16
      %v2770 = vrot.slane %v2768, 1
      %v2771 = vsel %vm350, %v2766, %v2770
      %v2772 = vshrl.u32 %v2756, 16
      %v2774 = vor.u32 %v2772, %v2770
      %v2776 = vshll.u32 %v2757, 16
      %v2778 = vrot.slane %v2776, 1
      %v2779 = vsel %vm350, %v2774, %v2778
      %v2780 = vshrl.u32 %v2757, 16
      %v2782 = vor.u32 %v2780, %v2778
      %v2784 = vshll.u32 %v2758, 16
      %v2786 = vrot.slane %v2784, 1
      %v2787 = vsel %vm350, %v2782, %v2786
      %v2788 = vshrl.u32 %v2758, 16
      %v2790 = vor.u32 %v2788, %v2786
      %v2792 = vshll.u32 %v2759, 16
      %v2794 = vrot.slane %v2792, 1
      %v2795 = vsel %vm350, %v2790, %v2794
      %v2797 = vsel %vm387, %v2771, 0
      %v2800 = vsel %vm387, %v2779, 0
      %v2803 = vsel %vm387, %v2787, 0
      %v2806 = vsel %vm387, %v2795, 0
      %v2809 = vsel %vm400, %v2736, 0
      %2811 = vmatprep.subr.bf16.mxu0 0
      %2812 = vmatpush1.bf16.msra.mxu0 %v2809
      %2813 = vmatprep.subr.bf16.mxu0 0
      %2814 = vmatpush1.bf16.msra.mxu0 0
      %2815 = vmatprep.subr.bf16.mxu0 0
      %2816 = vmatpush1.bf16.msra.mxu0 0
      %2817 = vmatprep.subr.bf16.mxu0 0
      %2818 = vmatpush1.bf16.msra.mxu0 0
      %2819 = vmatprep.subr.bf16.mxu0 0
      %2820 = vmatpush1.bf16.msra.mxu0 0
      %2821 = vmatprep.subr.bf16.mxu0 0
      %2822 = vmatpush1.bf16.msra.mxu0 0
      %2823 = vmatprep.subr.bf16.mxu0 0
      %2824 = vmatpush1.bf16.msra.mxu0 0
      %2825 = vmatprep.subr.bf16.mxu0 0
      %2826 = vmatpush1.bf16.msra.mxu0 0
      %2827 = vmatprep.subr.bf16.mxu0 0
      %2828 = vmatpush1.bf16.msra.mxu0 0
      %2829 = vmatprep.subr.bf16.mxu0 0
      %2830 = vmatpush1.bf16.msra.mxu0 0
      %2831 = vmatprep.subr.bf16.mxu0 0
      %2832 = vmatpush1.bf16.msra.mxu0 0
      %2833 = vmatprep.subr.bf16.mxu0 0
      %2834 = vmatpush1.bf16.msra.mxu0 0
      %2835 = vmatprep.subr.bf16.mxu0 0
      %2836 = vmatpush1.bf16.msra.mxu0 0
      %2837 = vmatprep.subr.bf16.mxu0 0
      %2838 = vmatpush1.bf16.msra.mxu0 0
      %2839 = vmatprep.subr.bf16.mxu0 0
      %2840 = vmatpush1.bf16.msra.mxu0 0
      %2841 = vmatprep.subr.bf16.mxu0 0
      %2842 = vmatpush1.bf16.msra.mxu0 0
      %2843 = vmatprep.mubr.bf16.mxu0 0
      %2844 = vmatmul.mubr.bf16.gmra.mrb[0].mxu0 %v2797
      %v2845 = vpop.f32.mrb[0].mxu0
      %v2846 = vadd.f32 0.0, %v2845
      %v2847 = vpop.f32.mrb[0].mxu0
      %v2848 = vpop.f32.mrb[0].mxu0
      %v2849 = vadd.f32 0.0, %v2848
      %v2850 = vpop.f32.mrb[0].mxu0
      %2851 = vmatprep.mubr.bf16.mxu0 0
      %2852 = vmatmul.mubr.bf16.gmra.mrb[0].mxu0 %v2800
      %v2853 = vpop.f32.mrb[0].mxu0
      %v2854 = vadd.f32 0.0, %v2853
      %v2855 = vpop.f32.mrb[0].mxu0
      %v2856 = vpop.f32.mrb[0].mxu0
      %v2857 = vadd.f32 0.0, %v2856
      %v2858 = vpop.f32.mrb[0].mxu0
      %2859 = vmatprep.mubr.bf16.mxu0 0
      %2860 = vmatmul.mubr.bf16.gmra.mrb[0].mxu0 %v2803
      %v2861 = vpop.f32.mrb[0].mxu0
      %v2862 = vadd.f32 0.0, %v2861
      %v2863 = vpop.f32.mrb[0].mxu0
      %v2864 = vpop.f32.mrb[0].mxu0
      %v2865 = vadd.f32 0.0, %v2864
      %v2866 = vpop.f32.mrb[0].mxu0
      %2867 = vmatprep.mubr.bf16.mxu0 0
      %2868 = vmatmul.mubr.bf16.gmra.mrb[0].mxu0 %v2806
      %v2869 = vpop.f32.mrb[0].mxu0
      %v2870 = vadd.f32 0.0, %v2869
      %v2871 = vpop.f32.mrb[0].mxu0
      %v2872 = vpop.f32.mrb[0].mxu0
      %v2873 = vadd.f32 0.0, %v2872
      %v2874 = vpop.f32.mrb[0].mxu0
      %2875 = vdwg.mxu0
      %v2876 = vadd.f32 %v2718, %v2846
      %v2877 = vadd.f32 %v2719, %v2849
      %v2878 = vadd.f32 %v2720, %v2854
      %v2879 = vadd.f32 %v2721, %v2857
      %v2880 = vadd.f32 %v2722, %v2862
      %v2881 = vadd.f32 %v2723, %v2865
      %v2882 = vadd.f32 %v2724, %v2870
      %v2883 = vadd.f32 %v2725, %v2873
      %v2884 = vld [vmem:[%s274 + $0x10] sm:$0xe]
      %s2885 = scalar_lea.vmem %s280, 88
      %v2886 = vld [vmem:[%s2885] sm:$0xf]
      %v2888 = vunpack.c.l.b16 %v2884
      %v2889 = vpack.c.b16 %v2747, %v2888
      %v2890 = vrot.slane %v2889, 1
      %v2891 = vrot.slane %v2756, 1
      %v2892 = vsel %vm551, %v2890, %v2891
      %v2893 = vrot.slane %v2757, 1
      %v2894 = vsel %vm551, %v2891, %v2893
      %v2895 = vrot.slane %v2758, 1
      %v2896 = vsel %vm551, %v2893, %v2895
      %v2897 = vrot.slane %v2759, 1
      %v2898 = vsel %vm551, %v2895, %v2897
      %v2900 = vsel %vm387, %v2892, 0
      %v2903 = vsel %vm387, %v2894, 0
      %v2906 = vsel %vm387, %v2896, 0
      %v2909 = vsel %vm387, %v2898, 0
      %v2912 = vsel %vm400, %v2886, 0
      %2914 = vmatprep.subr.bf16.mxu0 0
      %2915 = vmatpush1.bf16.msra.mxu0 %v2912
      %2916 = vmatprep.subr.bf16.mxu0 0
      %2917 = vmatpush1.bf16.msra.mxu0 0
      %2918 = vmatprep.subr.bf16.mxu0 0
      %2919 = vmatpush1.bf16.msra.mxu0 0
      %2920 = vmatprep.subr.bf16.mxu0 0
      %2921 = vmatpush1.bf16.msra.mxu0 0
      %2922 = vmatprep.subr.bf16.mxu0 0
      %2923 = vmatpush1.bf16.msra.mxu0 0
      %2924 = vmatprep.subr.bf16.mxu0 0
      %2925 = vmatpush1.bf16.msra.mxu0 0
      %2926 = vmatprep.subr.bf16.mxu0 0
      %2927 = vmatpush1.bf16.msra.mxu0 0
      %2928 = vmatprep.subr.bf16.mxu0 0
      %2929 = vmatpush1.bf16.msra.mxu0 0
      %2930 = vmatprep.subr.bf16.mxu0 0
      %2931 = vmatpush1.bf16.msra.mxu0 0
      %2932 = vmatprep.subr.bf16.mxu0 0
      %2933 = vmatpush1.bf16.msra.mxu0 0
      %2934 = vmatprep.subr.bf16.mxu0 0
      %2935 = vmatpush1.bf16.msra.mxu0 0
      %2936 = vmatprep.subr.bf16.mxu0 0
      %2937 = vmatpush1.bf16.msra.mxu0 0
      %2938 = vmatprep.subr.bf16.mxu0 0
      %2939 = vmatpush1.bf16.msra.mxu0 0
      %2940 = vmatprep.subr.bf16.mxu0 0
      %2941 = vmatpush1.bf16.msra.mxu0 0
      %2942 = vmatprep.subr.bf16.mxu0 0
      %2943 = vmatpush1.bf16.msra.mxu0 0
      %2944 = vmatprep.subr.bf16.mxu0 0
      %2945 = vmatpush1.bf16.msra.mxu0 0
      %2946 = vmatprep.mubr.bf16.mxu0 0
      %2947 = vmatmul.mubr.bf16.gmra.mrb[0].mxu0 %v2900
      %v2948 = vpop.f32.mrb[0].mxu0
      %v2949 = vadd.f32 0.0, %v2948
      %v2950 = vpop.f32.mrb[0].mxu0
      %v2951 = vpop.f32.mrb[0].mxu0
      %v2952 = vadd.f32 0.0, %v2951
      %v2953 = vpop.f32.mrb[0].mxu0
      %2954 = vmatprep.mubr.bf16.mxu0 0
      %2955 = vmatmul.mubr.bf16.gmra.mrb[0].mxu0 %v2903
      %v2956 = vpop.f32.mrb[0].mxu0
      %v2957 = vadd.f32 0.0, %v2956
      %v2958 = vpop.f32.mrb[0].mxu0
      %v2959 = vpop.f32.mrb[0].mxu0
      %v2960 = vadd.f32 0.0, %v2959
      %v2961 = vpop.f32.mrb[0].mxu0
      %2962 = vmatprep.mubr.bf16.mxu0 0
      %2963 = vmatmul.mubr.bf16.gmra.mrb[0].mxu0 %v2906
      %v2964 = vpop.f32.mrb[0].mxu0
      %v2965 = vadd.f32 0.0, %v2964
      %v2966 = vpop.f32.mrb[0].mxu0
      %v2967 = vpop.f32.mrb[0].mxu0
      %v2968 = vadd.f32 0.0, %v2967
      %v2969 = vpop.f32.mrb[0].mxu0
      %2970 = vmatprep.mubr.bf16.mxu0 0
      %2971 = vmatmul.mubr.bf16.gmra.mrb[0].mxu0 %v2909
      %v2972 = vpop.f32.mrb[0].mxu0
      %v2973 = vadd.f32 0.0, %v2972
      %v2974 = vpop.f32.mrb[0].mxu0
      %v2975 = vpop.f32.mrb[0].mxu0
      %v2976 = vadd.f32 0.0, %v2975
      %v2977 = vpop.f32.mrb[0].mxu0
      %2978 = vdwg.mxu0
      %v2979 = vadd.f32 %v2876, %v2949
      %v2980 = vadd.f32 %v2877, %v2952
      %v2981 = vadd.f32 %v2878, %v2957
      %v2982 = vadd.f32 %v2879, %v2960
      %v2983 = vadd.f32 %v2880, %v2965
      %v2984 = vadd.f32 %v2881, %v2968
      %v2985 = vadd.f32 %v2882, %v2973
      %v2986 = vadd.f32 %v2883, %v2976
      %v2987 = vld [vmem:[%s274 + $0x30] sm:$0x3]
      %s2988 = scalar_lea.vmem %s280, 92
      %v2989 = vld [vmem:[%s2988] sm:$0xf]
      %v2991 = vunpack.c.l.b16 %v2987
      %v2992 = vpack.c.b16 %v2991, %v2991
      %v2994 = vshrl.u32 %v2889, 16
      %v2996 = vrot.slane %v2994, 1
      %v2997 = vshll.u32 %v2889, 16
      %v2999 = vrot.slane %v2997, 2
      %v3000 = vor.u32 %v2996, %v2999
      %v3001 = vrot.slane %v2772, 1
      %v3002 = vrot.slane %v2768, 2
      %v3003 = vor.u32 %v3001, %v3002
      %v3004 = vsel %vm655, %v3000, %v3003
      %v3005 = vrot.slane %v2780, 1
      %v3006 = vrot.slane %v2776, 2
      %v3007 = vor.u32 %v3005, %v3006
      %v3008 = vsel %vm655, %v3003, %v3007
      %v3009 = vrot.slane %v2788, 1
      %v3010 = vrot.slane %v2784, 2
      %v3011 = vor.u32 %v3009, %v3010
      %v3012 = vsel %vm655, %v3007, %v3011
      %v3014 = vshrl.u32 %v2992, 16
      %v3016 = vrot.slane %v3014, 1
      %v3017 = vshll.u32 %v2992, 16
      %v3019 = vrot.slane %v3017, 2
      %v3020 = vor.u32 %v3016, %v3019
      %v3021 = vsel %vm655, %v3011, %v3020
      %v3023 = vsel %vm387, %v3004, 0
      %v3026 = vsel %vm387, %v3008, 0
      %v3029 = vsel %vm387, %v3012, 0
      %v3032 = vsel %vm387, %v3021, 0
      %v3035 = vsel %vm400, %v2989, 0
      %3037 = vmatprep.subr.bf16.mxu0 0
      %3038 = vmatpush1.bf16.msra.mxu0 %v3035
      %3039 = vmatprep.subr.bf16.mxu0 0
      %3040 = vmatpush1.bf16.msra.mxu0 0
      %3041 = vmatprep.subr.bf16.mxu0 0
      %3042 = vmatpush1.bf16.msra.mxu0 0
      %3043 = vmatprep.subr.bf16.mxu0 0
      %3044 = vmatpush1.bf16.msra.mxu0 0
      %3045 = vmatprep.subr.bf16.mxu0 0
      %3046 = vmatpush1.bf16.msra.mxu0 0
      %3047 = vmatprep.subr.bf16.mxu0 0
      %3048 = vmatpush1.bf16.msra.mxu0 0
      %3049 = vmatprep.subr.bf16.mxu0 0
      %3050 = vmatpush1.bf16.msra.mxu0 0
      %3051 = vmatprep.subr.bf16.mxu0 0
      %3052 = vmatpush1.bf16.msra.mxu0 0
      %3053 = vmatprep.subr.bf16.mxu0 0
      %3054 = vmatpush1.bf16.msra.mxu0 0
      %3055 = vmatprep.subr.bf16.mxu0 0
      %3056 = vmatpush1.bf16.msra.mxu0 0
      %3057 = vmatprep.subr.bf16.mxu0 0
      %3058 = vmatpush1.bf16.msra.mxu0 0
      %3059 = vmatprep.subr.bf16.mxu0 0
      %3060 = vmatpush1.bf16.msra.mxu0 0
      %3061 = vmatprep.subr.bf16.mxu0 0
      %3062 = vmatpush1.bf16.msra.mxu0 0
      %3063 = vmatprep.subr.bf16.mxu0 0
      %3064 = vmatpush1.bf16.msra.mxu0 0
      %3065 = vmatprep.subr.bf16.mxu0 0
      %3066 = vmatpush1.bf16.msra.mxu0 0
      %3067 = vmatprep.subr.bf16.mxu0 0
      %3068 = vmatpush1.bf16.msra.mxu0 0
      %3069 = vmatprep.mubr.bf16.mxu0 0
      %3070 = vmatmul.mubr.bf16.gmra.mrb[0].mxu0 %v3023
      %v3071 = vpop.f32.mrb[0].mxu0
      %v3072 = vadd.f32 0.0, %v3071
      %v3073 = vpop.f32.mrb[0].mxu0
      %v3074 = vpop.f32.mrb[0].mxu0
      %v3075 = vadd.f32 0.0, %v3074
      %v3076 = vpop.f32.mrb[0].mxu0
      %3077 = vmatprep.mubr.bf16.mxu0 0
      %3078 = vmatmul.mubr.bf16.gmra.mrb[0].mxu0 %v3026
      %v3079 = vpop.f32.mrb[0].mxu0
      %v3080 = vadd.f32 0.0, %v3079
      %v3081 = vpop.f32.mrb[0].mxu0
      %v3082 = vpop.f32.mrb[0].mxu0
      %v3083 = vadd.f32 0.0, %v3082
      %v3084 = vpop.f32.mrb[0].mxu0
      %3085 = vmatprep.mubr.bf16.mxu0 0
      %3086 = vmatmul.mubr.bf16.gmra.mrb[0].mxu0 %v3029
      %v3087 = vpop.f32.mrb[0].mxu0
      %v3088 = vadd.f32 0.0, %v3087
      %v3089 = vpop.f32.mrb[0].mxu0
      %v3090 = vpop.f32.mrb[0].mxu0
      %v3091 = vadd.f32 0.0, %v3090
      %v3092 = vpop.f32.mrb[0].mxu0
      %3093 = vmatprep.mubr.bf16.mxu0 0
      %3094 = vmatmul.mubr.bf16.gmra.mrb[0].mxu0 %v3032
      %v3095 = vpop.f32.mrb[0].mxu0
      %v3096 = vadd.f32 0.0, %v3095
      %v3097 = vpop.f32.mrb[0].mxu0
      %v3098 = vpop.f32.mrb[0].mxu0
      %v3099 = vadd.f32 0.0, %v3098
      %v3100 = vpop.f32.mrb[0].mxu0
      %3101 = vdwg.mxu0
      %v3102 = vadd.f32 %v2979, %v3072
      %v3103 = vadd.f32 %v2980, %v3075
      %v3104 = vadd.f32 %v2981, %v3080
      %v3105 = vadd.f32 %v2982, %v3083
      %v3106 = vadd.f32 %v2983, %v3088
      %v3107 = vadd.f32 %v2984, %v3091
      %v3108 = vadd.f32 %v2985, %v3096
      %v3109 = vadd.f32 %v2986, %v3099
      %v3110 = vld [vmem:[%s274 + $0x10] sm:$0xc]
      %s3111 = scalar_lea.vmem %s280, 96
      %v3112 = vld [vmem:[%s3111] sm:$0xf]
      %v3114 = vunpack.c.l.b16 %v3110
      %v3115 = vpack.c.b16 %v2747, %v3114
      %v3116 = vrot.slane %v3115, 2
      %v3117 = vrot.slane %v2756, 2
      %v3118 = vsel %vm779, %v3116, %v3117
      %v3119 = vrot.slane %v2757, 2
      %v3120 = vsel %vm779, %v3117, %v3119
      %v3121 = vrot.slane %v2758, 2
      %v3122 = vsel %vm779, %v3119, %v3121
      %v3123 = vrot.slane %v2992, 2
      %v3124 = vsel %vm779, %v3121, %v3123
      %v3126 = vsel %vm387, %v3118, 0
      %v3129 = vsel %vm387, %v3120, 0
      %v3132 = vsel %vm387, %v3122, 0
      %v3135 = vsel %vm387, %v3124, 0
      %v3138 = vsel %vm400, %v3112, 0
      %3140 = vmatprep.subr.bf16.mxu0 0
      %3141 = vmatpush1.bf16.msra.mxu0 %v3138
      %3142 = vmatprep.subr.bf16.mxu0 0
      %3143 = vmatpush1.bf16.msra.mxu0 0
      %3144 = vmatprep.subr.bf16.mxu0 0
      %3145 = vmatpush1.bf16.msra.mxu0 0
      %3146 = vmatprep.subr.bf16.mxu0 0
      %3147 = vmatpush1.bf16.msra.mxu0 0
      %3148 = vmatprep.subr.bf16.mxu0 0
      %3149 = vmatpush1.bf16.msra.mxu0 0
      %3150 = vmatprep.subr.bf16.mxu0 0
      %3151 = vmatpush1.bf16.msra.mxu0 0
      %3152 = vmatprep.subr.bf16.mxu0 0
      %3153 = vmatpush1.bf16.msra.mxu0 0
      %3154 = vmatprep.subr.bf16.mxu0 0
      %3155 = vmatpush1.bf16.msra.mxu0 0
      %3156 = vmatprep.subr.bf16.mxu0 0
      %3157 = vmatpush1.bf16.msra.mxu0 0
      %3158 = vmatprep.subr.bf16.mxu0 0
      %3159 = vmatpush1.bf16.msra.mxu0 0
      %3160 = vmatprep.subr.bf16.mxu0 0
      %3161 = vmatpush1.bf16.msra.mxu0 0
      %3162 = vmatprep.subr.bf16.mxu0 0
      %3163 = vmatpush1.bf16.msra.mxu0 0
      %3164 = vmatprep.subr.bf16.mxu0 0
      %3165 = vmatpush1.bf16.msra.mxu0 0
      %3166 = vmatprep.subr.bf16.mxu0 0
      %3167 = vmatpush1.bf16.msra.mxu0 0
      %3168 = vmatprep.subr.bf16.mxu0 0
      %3169 = vmatpush1.bf16.msra.mxu0 0
      %3170 = vmatprep.subr.bf16.mxu0 0
      %3171 = vmatpush1.bf16.msra.mxu0 0
      %3172 = vmatprep.mubr.bf16.mxu0 0
      %3173 = vmatmul.mubr.bf16.gmra.mrb[0].mxu0 %v3126
      %v3174 = vpop.f32.mrb[0].mxu0
      %v3175 = vadd.f32 0.0, %v3174
      %v3176 = vpop.f32.mrb[0].mxu0
      %v3177 = vpop.f32.mrb[0].mxu0
      %v3178 = vadd.f32 0.0, %v3177
      %v3179 = vpop.f32.mrb[0].mxu0
      %3180 = vmatprep.mubr.bf16.mxu0 0
      %3181 = vmatmul.mubr.bf16.gmra.mrb[0].mxu0 %v3129
      %v3182 = vpop.f32.mrb[0].mxu0
      %v3183 = vadd.f32 0.0, %v3182
      %v3184 = vpop.f32.mrb[0].mxu0
      %v3185 = vpop.f32.mrb[0].mxu0
      %v3186 = vadd.f32 0.0, %v3185
      %v3187 = vpop.f32.mrb[0].mxu0
      %3188 = vmatprep.mubr.bf16.mxu0 0
      %3189 = vmatmul.mubr.bf16.gmra.mrb[0].mxu0 %v3132
      %v3190 = vpop.f32.mrb[0].mxu0
      %v3191 = vadd.f32 0.0, %v3190
      %v3192 = vpop.f32.mrb[0].mxu0
      %v3193 = vpop.f32.mrb[0].mxu0
      %v3194 = vadd.f32 0.0, %v3193
      %v3195 = vpop.f32.mrb[0].mxu0
      %3196 = vmatprep.mubr.bf16.mxu0 0
      %3197 = vmatmul.mubr.bf16.gmra.mrb[0].mxu0 %v3135
      %v3198 = vpop.f32.mrb[0].mxu0
      %v3199 = vadd.f32 0.0, %v3198
      %v3200 = vpop.f32.mrb[0].mxu0
      %v3201 = vpop.f32.mrb[0].mxu0
      %v3202 = vadd.f32 0.0, %v3201
      %v3203 = vpop.f32.mrb[0].mxu0
      %3204 = vdwg.mxu0
      %v3205 = vadd.f32 %v3102, %v3175
      %v3206 = vadd.f32 %v3103, %v3178
      %v3207 = vadd.f32 %v3104, %v3183
      %v3208 = vadd.f32 %v3105, %v3186
      %v3209 = vadd.f32 %v3106, %v3191
      %v3210 = vadd.f32 %v3107, %v3194
      %v3211 = vadd.f32 %v3108, %v3199
      %v3212 = vadd.f32 %v3109, %v3202
      %v3213 = vld [vmem:[%s289] sm:$0xff]
      %v3214 = vld [vmem:[%s289 + $0x8] sm:$0xff]
      %v3215 = vld [vmem:[%s289 + $0x10] sm:$0xff]
      %v3216 = vld [vmem:[%s289 + $0x18] sm:$0xff]
      %v3217 = vld [vmem:[%s289 + $0x20] sm:$0xff]
      %v3218 = vld [vmem:[%s289 + $0x28] sm:$0xff]
      %v3219 = vld [vmem:[%s289 + $0x30] sm:$0xff]
      %v3220 = vld [vmem:[%s289 + $0x38] sm:$0xff]
      %v3221 = vadd.f32 %v3213, %v3205
      %v3222 = vadd.f32 %v3214, %v3206
      %v3223 = vadd.f32 %v3215, %v3207
      %v3224 = vadd.f32 %v3216, %v3208
      %v3225 = vadd.f32 %v3217, %v3209
      %v3226 = vadd.f32 %v3218, %v3210
      %v3227 = vadd.f32 %v3219, %v3211
      %v3228 = vadd.f32 %v3220, %v3212
      %3229 = vst.msk [vmem:[%s289] sm:$0xff] %vm387, %v3221
      %3230 = vst.msk [vmem:[%s289 + $0x8] sm:$0xff] %vm387, %v3222
      %3231 = vst.msk [vmem:[%s289 + $0x10] sm:$0xff] %vm387, %v3223
      %3232 = vst.msk [vmem:[%s289 + $0x18] sm:$0xff] %vm387, %v3224
      %3233 = vst.msk [vmem:[%s289 + $0x20] sm:$0xff] %vm387, %v3225
      %3234 = vst.msk [vmem:[%s289 + $0x28] sm:$0xff] %vm387, %v3226
      %3235 = vst.msk [vmem:[%s289 + $0x30] sm:$0xff] %vm387, %v3227
      %3236 = vst.msk [vmem:[%s289 + $0x38] sm:$0xff] %vm387, %v3228
      %p3237 = scmp.eq.s32.totalorder %s24, 4
      // Predicated region
      $region41: #{down_transition_forward.8} parent=31 // pred_check
        %p3238 = pneg %p3237
      $region42: #{down_transition_forward.8} parent=31 // pred_check_branch
        %3240 = sbr.rel (%p3238) target = $region44
      $region43: #{down_transition_forward.8} parent=31 // pred_region
        %v3241 = vld [vmem:[%s289] sm:$0xff]
        %v3242 = vld [vmem:[%s289 + $0x8] sm:$0xff]
        %v3243 = vld [vmem:[%s289 + $0x10] sm:$0xff]
        %v3244 = vld [vmem:[%s289 + $0x18] sm:$0xff]
        %v3245 = vld [vmem:[%s289 + $0x20] sm:$0xff]
        %v3246 = vld [vmem:[%s289 + $0x28] sm:$0xff]
        %v3247 = vld [vmem:[%s289 + $0x30] sm:$0xff]
        %v3248 = vld [vmem:[%s289 + $0x38] sm:$0xff]
        %v3249 = vld [vmem:[%s2] sm:$0xff]
        %v3250 = vld [vmem:[%s2 + $0x8] sm:$0xff]
        %v3251 = vld [vmem:[%s2 + $0x10] sm:$0xff]
        %v3252 = vld [vmem:[%s2 + $0x18] sm:$0xff]
        %v3253 = vld [vmem:[%s2 + $0x20] sm:$0xff]
        %v3254 = vld [vmem:[%s2 + $0x28] sm:$0xff]
        %v3255 = vld [vmem:[%s2 + $0x30] sm:$0xff]
        %v3256 = vld [vmem:[%s2 + $0x38] sm:$0xff]
        %3258 = vset.pattern.permute.xlu0 0
        %3259 = vperm.xlu0 %3258, %v3249
        %v3260 = vpop.permute.xlu0 %3259
        %3263 = vset.pattern.permute.xlu0 0
        %3264 = vperm.xlu0 %3263, %v3250
        %v3265 = vpop.permute.xlu0 %3264
        %3268 = vset.pattern.permute.xlu0 0
        %3269 = vperm.xlu0 %3268, %v3251
        %v3270 = vpop.permute.xlu0 %3269
        %3273 = vset.pattern.permute.xlu0 0
        %3274 = vperm.xlu0 %3273, %v3252
        %v3275 = vpop.permute.xlu0 %3274
        %3278 = vset.pattern.permute.xlu0 0
        %3279 = vperm.xlu0 %3278, %v3253
        %v3280 = vpop.permute.xlu0 %3279
        %3283 = vset.pattern.permute.xlu0 0
        %3284 = vperm.xlu0 %3283, %v3254
        %v3285 = vpop.permute.xlu0 %3284
        %3288 = vset.pattern.permute.xlu0 0
        %3289 = vperm.xlu0 %3288, %v3255
        %v3290 = vpop.permute.xlu0 %3289
        %3293 = vset.pattern.permute.xlu0 0
        %3294 = vperm.xlu0 %3293, %v3256
        %v3295 = vpop.permute.xlu0 %3294
        %v3297 = vmul.f32 %v3241, %v3260
        %v3298 = vmul.f32 %v3242, %v3265
        %v3299 = vmul.f32 %v3243, %v3270
        %v3300 = vmul.f32 %v3244, %v3275
        %v3301 = vmul.f32 %v3245, %v3280
        %v3302 = vmul.f32 %v3246, %v3285
        %v3303 = vmul.f32 %v3247, %v3290
        %v3304 = vmul.f32 %v3248, %v3295
        %v3305 = vld [vmem:[%s4] sm:$0x1]
        %v3306 = vsel %vm387, %v3297, 0.0
        %v3307 = vsel %vm387, %v3298, 0.0
        %v3308 = vadd.f32 %v3306, %v3307
        %v3309 = vsel %vm387, %v3299, 0.0
        %v3310 = vadd.f32 %v3308, %v3309
        %v3311 = vsel %vm387, %v3300, 0.0
        %v3312 = vadd.f32 %v3310, %v3311
        %v3313 = vsel %vm387, %v3301, 0.0
        %v3314 = vadd.f32 %v3312, %v3313
        %v3315 = vsel %vm387, %v3302, 0.0
        %v3316 = vadd.f32 %v3314, %v3315
        %v3317 = vsel %vm387, %v3303, 0.0
        %v3318 = vadd.f32 %v3316, %v3317
        %v3319 = vsel %vm387, %v3304, 0.0
        %v3320 = vadd.f32 %v3318, %v3319
        %v3321 = vrot.slane %v3320, 4
        %v3322 = vadd.f32 %v3320, %v3321
        %v3323 = vrot.slane %v3322, 2
        %v3324 = vadd.f32 %v3322, %v3323
        %v3325 = vrot.slane %v3324, 1
        %v3326 = vadd.f32 %v3324, %v3325
        %v3327 = vadd.f32 %v3305, %v3326
        %vm3328 = vcmask 57344
        %3329 = vst.msk [vmem:[%s4] sm:$0x1] %vm3328, %v3327
        %v3330 = vld [vmem:[%s5] sm:$0x1]
        %v3331 = vmul.f32 %v3297, %v3241
        %v3332 = vmul.f32 %v3298, %v3242
        %v3333 = vmul.f32 %v3299, %v3243
        %v3334 = vmul.f32 %v3300, %v3244
        %v3335 = vmul.f32 %v3301, %v3245
        %v3336 = vmul.f32 %v3302, %v3246
        %v3337 = vmul.f32 %v3303, %v3247
        %v3338 = vmul.f32 %v3304, %v3248
        %v3339 = vsel %vm387, %v3331, 0.0
        %v3340 = vsel %vm387, %v3332, 0.0
        %v3341 = vadd.f32 %v3339, %v3340
        %v3342 = vsel %vm387, %v3333, 0.0
        %v3343 = vadd.f32 %v3341, %v3342
        %v3344 = vsel %vm387, %v3334, 0.0
        %v3345 = vadd.f32 %v3343, %v3344
        %v3346 = vsel %vm387, %v3335, 0.0
        %v3347 = vadd.f32 %v3345, %v3346
        %v3348 = vsel %vm387, %v3336, 0.0
        %v3349 = vadd.f32 %v3347, %v3348
        %v3350 = vsel %vm387, %v3337, 0.0
        %v3351 = vadd.f32 %v3349, %v3350
        %v3352 = vsel %vm387, %v3338, 0.0
        %v3353 = vadd.f32 %v3351, %v3352
        %v3354 = vrot.slane %v3353, 4
        %v3355 = vadd.f32 %v3353, %v3354
        %v3356 = vrot.slane %v3355, 2
        %v3357 = vadd.f32 %v3355, %v3356
        %v3358 = vrot.slane %v3357, 1
        %v3359 = vadd.f32 %v3357, %v3358
        %v3360 = vadd.f32 %v3330, %v3359
        %3361 = vst.msk [vmem:[%s5] sm:$0x1] %vm3328, %v3360
      $region44: #{down_transition_forward.8} parent=31 // pred_fallthru
        _
      %p3362 = scmp.lt.s32.totalorder %s22, 1
      %s3363 = scalar_select %p3362, %s22, 1
      %p3364 = scmp.lt.s32.totalorder %s23, 3
      %s3365 = scalar_select %p3364, %s23, 3
      %s3366 = smul.addr %s3365, 8
      %s3367 = smul.addr %s3363, 32
      %s3368 = sadd.s32 %s3366, %s3367
      %s3369 = smul.addr %s3368, 8
      %s3370 = scalar_lea.vmem %s3, %s3369
      // Predicated region
      $region45: #{down_transition_forward.8} parent=31 // pred_check
        %p3371 = pneg %p133
      $region46: #{down_transition_forward.8} parent=31 // pred_check_branch
        %3373 = sbr.rel (%p3371) target = $region48
      $region47: #{down_transition_forward.8} parent=31 // pred_region
        _
      $region48: #{down_transition_forward.8} parent=31 // pred_fallthru
        _
      // Predicated region
      $region49: #{down_transition_forward.8} parent=31 // pred_check
        %p3374 = pneg %p154
      $region50: #{down_transition_forward.8} parent=31 // pred_check_branch
        %3376 = sbr.rel (%p3374) target = $region52
      $region51: #{down_transition_forward.8} parent=31 // pred_region
        _
      $region52: #{down_transition_forward.8} parent=31 // pred_fallthru
        _
      // Predicated region
      $region53: #{down_transition_forward.8} parent=31 // pred_check
        %p3377 = pneg %p175
      $region54: #{down_transition_forward.8} parent=31 // pred_check_branch
        %3379 = sbr.rel (%p3377) target = $region56
      $region55: #{down_transition_forward.8} parent=31 // pred_region
        _
      $region56: #{down_transition_forward.8} parent=31 // pred_fallthru
        _
      // Predicated region
      $region57: #{down_transition_forward.8} parent=31 // pred_check
        %p3380 = pneg %p154
      $region58: #{down_transition_forward.8} parent=31 // pred_check_branch
        %3382 = sbr.rel (%p3380) target = $region60
      $region59: #{down_transition_forward.8} parent=31 // pred_region
        _
      $region60: #{down_transition_forward.8} parent=31 // pred_fallthru
        _
      // Predicated region
      $region61: #{down_transition_forward.8} parent=31 // pred_check
        %p3383 = pneg %p175
      $region62: #{down_transition_forward.8} parent=31 // pred_check_branch
        %3385 = sbr.rel (%p3383) target = $region64
      $region63: #{down_transition_forward.8} parent=31 // pred_region
        _
      $region64: #{down_transition_forward.8} parent=31 // pred_fallthru
        _
    $region32: #{down_transition_forward.8} parent=5 // pred_fallthru
      _
    %p3386 = scmp.le.s32.totalorder 2, %s12
    // Predicated region
    $region65: #{down_transition_forward.8} parent=5 // pred_check
      %p3387 = pneg %p3386
    $region66: #{down_transition_forward.8} parent=5 // pred_check_branch
      %3389 = sbr.rel (%p3387) target = $region68
    $region67: #{down_transition_forward.8} parent=5 // pred_region
      %s3390 = ssub.s32 %s12, 2
      // Predicated region
      $region69: #{down_transition_forward.8} parent=67 // pred_check
        %p3391 = pneg %p139
      $region70: #{down_transition_forward.8} parent=67 // pred_check_branch
        %3393 = sbr.rel (%p3391) target = $region72
      $region71: #{down_transition_forward.8} parent=67 // pred_region
        %p3394 = scmp.lt.s32.totalorder %s25, 1
        %s3395 = scalar_select %p3394, %s25, 1
        %p3396 = scmp.lt.s32.totalorder %s26, 3
        %s3397 = scalar_select %p3396, %s26, 3
        %s3398 = smul.addr %s3397, 8
        %s3399 = smul.addr %s3395, 32
        %s3400 = sadd.s32 %s3398, %s3399
        %s3401 = smul.addr %s3400, 8
        %s3402 = scalar_lea.vmem %s3, %s3401
      $region72: #{down_transition_forward.8} parent=67 // pred_fallthru
        _
    $region68: #{down_transition_forward.8} parent=5 // pred_fallthru
      _
  $region6: #{down_transition_forward.8} parent=0 // loop_footer
    %s16 = sadd.s32 1, %s12
  $region7: #{down_transition_forward.8} parent=0 // loop_footer_branch
    %11 = sbr.rel target = $region3
  $region8: #{down_transition_forward.8} parent=0 // loop_exit
    _

</llo_original>
